<compile_context>
chip_gen: v5e
topology: v5e:2x2
jax: 0.10.0
libtpu: 0.0.40
codegen_flags: <defaults>
</compile_context>

<pallas_src>
import functools

import jax
import jax.numpy as jnp
from jax import lax
from jax.experimental import pallas as pl
from jax.experimental.pallas import tpu as pltpu


# ----------------------------- Config (small, deterministic) -----------------------------
PLM_HIDDEN = 768      # fixed by the module (fc in_features = rnn_hidden*2 + 768)
RNN_HIDDEN = 64
NUM_LAYERS = 2
NUM_CLASSES = 4
CLASS_PAD = 128       # lane-dense head output (sliced back to NUM_CLASSES outside)
MAX_LENGTH = 8        # sequence length == MaxPool1d kernel size
BATCH = 2
VOCAB = 100


# ----------------------------- Fused Pallas kernel -----------------------------
def _rcnn_fused_kernel(enc_ref, wih1_ref, whh1_ref, b1_ref,
                       wih2_ref, whh2_ref, b2_ref,
                       fwe_ref, fwl_ref, fb_ref, out_ref, *, B, L):
    """Entire RCNN forward (2-layer BiLSTM + cat/ReLU/max-pool/Linear head).

    enc_ref:  (L*B, 768)  encoder activations, time-major, bf16
    wih1_ref: (768, 8H)   layer-1 packed input->gates weight (bf16)
    whh1_ref: (2H, 8H)    layer-1 packed recurrent weight (block-diagonal, bf16)
    b1_ref:   (1, 8H)     layer-1 combined bias (f32)
    wih2_ref: (2H, 8H)    layer-2 packed input->gates weight (bf16)
    whh2_ref: (2H, 8H)    layer-2 packed recurrent weight (bf16)
    b2_ref:   (1, 8H)     layer-2 combined bias (f32)
    fwe_ref:  (768, 128)  fc weight, encoder part, class-dim padded (bf16)
    fwl_ref:  (2H, 128)   fc weight, lstm part, class-dim padded (bf16)
    fb_ref:   (1, 128)    fc bias, class-dim padded (f32)
    out_ref:  (B, 128)    padded logits (f32)
    """
    D = enc_ref.shape[1]
    H2, G = whh1_ref.shape          # 2H, 8H
    H = H2 // 2

    # Lane masks. Packed gate-column order is [i_f|i_b|f_f|f_b|g_f|g_b|o_f|o_b];
    # the first H lanes of every 2H chunk belong to the forward direction.
    lane_g = lax.broadcasted_iota(jnp.int32, (1, G), 1)
    fwd_g = (lane_g % H2) < H                       # (1, 8H) over gate columns
    lane_h = lax.broadcasted_iota(jnp.int32, (1, H2), 1)
    fwd_h = lane_h < H                              # (1, 2H) over hidden lanes

    def gates_to_h(g, c):
        # PyTorch gate order i, f, g, o; every slice is 128-lane aligned and covers
        # both directions at once. Elementwise/EUP math stays in f32.
        i = jax.nn.sigmoid(g[:, 0 * H2:1 * H2])
        f = jax.nn.sigmoid(g[:, 1 * H2:2 * H2])
        gg = jnp.tanh(g[:, 2 * H2:3 * H2])
        o = jax.nn.sigmoid(g[:, 3 * H2:4 * H2])
        c_new = f * c + i * gg
        return o * jnp.tanh(c_new), c_new

    enc = enc_ref[...]                               # (L*B, 768) bf16, time-major

    # ---------------- Layer 1 ----------------
    # Hoisted input->gates matmul: one (L*B, D) x (D, 8H) bf16 matmul (f32 acc).
    gx1 = jnp.dot(enc, wih1_ref[...],
                  preferred_element_type=jnp.float32) + b1_ref[...]     # (L*B, 8H)
    # Pre-built per-step gate inputs (direction select happens OFF the recurrence
    # critical path): forward gate cols read t = s, backward cols read t = L-1-s.
    gxp1 = [jnp.where(fwd_g, gx1[s * B:(s + 1) * B, :],
                      gx1[(L - 1 - s) * B:(L - s) * B, :]) for s in range(L)]

    whh1 = whh1_ref[...]                             # (2H, 8H) bf16
    h1 = jnp.zeros((B, H2), jnp.float32)
    c1 = jnp.zeros((B, H2), jnp.float32)
    hs1 = []
    for s in range(L):                               # unrolled recurrence
        g = gxp1[s] + jnp.dot(h1.astype(jnp.bfloat16), whh1,
                              preferred_element_type=jnp.float32)
        h1, c1 = gates_to_h(g, c1)
        hs1.append(h1)                               # lanes: [h1_fwd(t=s) | h1_bwd(t=L-1-s)]

    # ---------------- Layer 2 ----------------
    # Time-aligned layer-1 output x2(t) = [h1_fwd(t) | h1_bwd(t)], stacked time-major,
    # then a SINGLE hoisted (L*B, 2H) x (2H, 8H) input->gates matmul (same as layer 1).
    x2 = [jnp.where(fwd_h, hs1[t], hs1[L - 1 - t]) for t in range(L)]
    x2_all = jnp.concatenate(x2, axis=0).astype(jnp.bfloat16)           # (L*B, 2H)
    gx2 = jnp.dot(x2_all, wih2_ref[...],
                  preferred_element_type=jnp.float32) + b2_ref[...]     # (L*B, 8H)
    gxp2 = [jnp.where(fwd_g, gx2[s * B:(s + 1) * B, :],
                      gx2[(L - 1 - s) * B:(L - s) * B, :]) for s in range(L)]

    whh2 = whh2_ref[...]                             # (2H, 8H) bf16
    h2 = jnp.zeros((B, H2), jnp.float32)
    c2 = jnp.zeros((B, H2), jnp.float32)
    # Initializing the running max at 0 makes the head's ReLU implicit:
    # max(0, max_t h) == max_t relu(h). Backward lanes are just a time permutation.
    pooled_lstm = jnp.zeros((B, H2), jnp.float32)
    for s in range(L):                               # unrolled recurrence
        g = gxp2[s] + jnp.dot(h2.astype(jnp.bfloat16), whh2,
                              preferred_element_type=jnp.float32)
        h2, c2 = gates_to_h(g, c2)
        pooled_lstm = jnp.maximum(pooled_lstm, h2)

    # ---------------- Head ----------------
    # relu(max_t(x)) == max_t(relu(x)); max-pool the encoder slab in-kernel
    # (running max over static time slices), then split the fc matmul into
    # encoder / lstm parts — the (B, L, 896) concat is never materialized.
    pe = enc[0:B, :]
    for t in range(1, L):
        pe = jnp.maximum(pe, enc[t * B:(t + 1) * B, :])
    pooled_enc = jnp.maximum(pe, 0.0)                                   # (B, 768) bf16

    out_ref[...] = (
        jnp.dot(pooled_enc, fwe_ref[...], preferred_element_type=jnp.float32)
        + jnp.dot(pooled_lstm.astype(jnp.bfloat16), fwl_ref[...],
                  preferred_element_type=jnp.float32)
        + fb_ref[...]
    )


# ----------------------------- pallas_call wrapper -----------------------------
_VMEM_SPEC = pl.BlockSpec(memory_space=pltpu.MemorySpace.VMEM)


def rcnn_forward_fused(enc_tm, params, *, batch, seq_len):
    B, L = batch, seq_len
    D = enc_tm.shape[1]
    H2, G = params["whh1"].shape
    C_pad = params["fc_b"].shape[1]

    operands = (enc_tm, params["wih1"], params["whh1"], params["b1"],
                params["wih2"], params["whh2"], params["b2"],
                params["fc_w_enc"], params["fc_w_lstm"], params["fc_b"])

    flops = (2 * L * B * D * G          # layer-1 input->gates (hoisted)
             + 2 * L * B * H2 * G       # layer-1 recurrence
             + 2 * L * B * H2 * G       # layer-2 input->gates (hoisted)
             + 2 * L * B * H2 * G       # layer-2 recurrence
             + 2 * B * D * C_pad        # head, encoder part
             + 2 * B * H2 * C_pad)      # head, lstm part
    transcendentals = NUM_LAYERS * L * B * 5 * H2   # 3 sigmoid + 2 tanh per step/layer
    bytes_accessed = (sum(int(x.size) * x.dtype.itemsize for x in operands)
                      + B * C_pad * 4)

    out = pl.pallas_call(
        functools.partial(_rcnn_fused_kernel, B=B, L=L),
        out_shape=jax.ShapeDtypeStruct((B, C_pad), jnp.float32),
        in_specs=[_VMEM_SPEC] * len(operands),
        out_specs=_VMEM_SPEC,
        cost_estimate=pl.CostEstimate(flops=flops,
                                      transcendentals=transcendentals,
                                      bytes_accessed=bytes_accessed),
    )(*operands)
    return out[:, :NUM_CLASSES]


# ----------------------------- Weight packing (done once at init) -----------------------------
def _pack_direction_blocks(fwd, bwd):
    """Pack per-direction PyTorch-layout LSTM params into the fused lane layout.

    fwd/bwd: dicts with
      wih: (4H, D_in)  PyTorch weight_ih (gate order i, f, g, o)
      whh: (4H, H)     PyTorch weight_hh
      b:   (4H,)       bias_ih + bias_hh
    Returns
      wih_p: (D_in, 8H)  columns packed [i_f|i_b|f_f|f_b|g_f|g_b|o_f|o_b]
      whh_p: (2H, 8H)    rows [h_fwd | h_bwd], block-diagonal per direction
      b_p:   (1, 8H)
    """
    H4, _ = fwd["wih"].shape
    H = H4 // 4
    # The lane-mask / 128-lane slicing scheme requires 2H to be a multiple of 128.
    assert (2 * H) % 128 == 0, f"RNN_HIDDEN must be a multiple of 64, got H={H}"
    wih_cols, b_cols = [], []
    whh_p = jnp.zeros((2 * H, 8 * H), jnp.float32)
    for g in range(4):
        wih_cols += [fwd["wih"][g * H:(g + 1) * H, :].T, bwd["wih"][g * H:(g + 1) * H, :].T]
        b_cols += [fwd["b"][g * H:(g + 1) * H], bwd["b"][g * H:(g + 1) * H]]
        whh_p = whh_p.at[:H, (2 * g) * H:(2 * g + 1) * H].set(fwd["whh"][g * H:(g + 1) * H, :].T)
        whh_p = whh_p.at[H:, (2 * g + 1) * H:(2 * g + 2) * H].set(bwd["whh"][g * H:(g + 1) * H, :].T)
    return jnp.concatenate(wih_cols, axis=1), whh_p, jnp.concatenate(b_cols)[None, :]


# ----------------------------- Parameter init (deterministic) -----------------------------
def init_params(key):
    params, raw = {}, {}
    key, k_emb = jax.random.split(key)
    # Stand-in for the frozen PLM encoder: deterministic embedding table (bf16 so
    # the gather output is bf16 for free -> half the enc DMA into the kernel).
    emb = jax.random.normal(k_emb, (VOCAB, PLM_HIDDEN), jnp.float32) * 0.02
    params["emb"] = emb.astype(jnp.bfloat16)

    scale = 1.0 / float(RNN_HIDDEN) ** 0.5

    def raw_dir(key, d_in):
        key, k1, k2, k3, k4 = jax.random.split(key, 5)
        wih = jax.random.uniform(k1, (4 * RNN_HIDDEN, d_in), jnp.float32, -scale, scale)
        whh = jax.random.uniform(k2, (4 * RNN_HIDDEN, RNN_HIDDEN), jnp.float32, -scale, scale)
        b_ih = jax.random.uniform(k3, (4 * RNN_HIDDEN,), jnp.float32, -scale, scale)
        b_hh = jax.random.uniform(k4, (4 * RNN_HIDDEN,), jnp.float32, -scale, scale)
        return key, {"wih": wih, "whh": whh, "b": b_ih + b_hh}

    # Layer 1 (input dim 768).
    key, raw["fwd1"] = raw_dir(key, PLM_HIDDEN)
    key, raw["bwd1"] = raw_dir(key, PLM_HIDDEN)
    wih1, whh1, b1 = _pack_direction_blocks(raw["fwd1"], raw["bwd1"])
    params["wih1"] = wih1.astype(jnp.bfloat16)   # bf16 MXU operands, f32 accumulate in-kernel
    params["whh1"] = whh1.astype(jnp.bfloat16)
    params["b1"] = b1

    # Layer 2 (input dim 2H).
    key, raw["fwd2"] = raw_dir(key, 2 * RNN_HIDDEN)
    key, raw["bwd2"] = raw_dir(key, 2 * RNN_HIDDEN)
    wih2, whh2, b2 = _pack_direction_blocks(raw["fwd2"], raw["bwd2"])
    params["wih2"] = wih2.astype(jnp.bfloat16)
    params["whh2"] = whh2.astype(jnp.bfloat16)
    params["b2"] = b2

    # Final linear layer, split into encoder / lstm parts (cat order: encoder first)
    # and zero-padded on the class dim to 128 lanes (lane-dense head output).
    d_fc = 2 * RNN_HIDDEN + PLM_HIDDEN
    fc_scale = 1.0 / float(d_fc) ** 0.5
    key, k1, k2 = jax.random.split(key, 3)
    fc_w = jax.random.uniform(k1, (NUM_CLASSES, d_fc), jnp.float32, -fc_scale, fc_scale)
    fc_b = jax.random.uniform(k2, (NUM_CLASSES,), jnp.float32, -fc_scale, fc_scale)
    raw["fc_w"], raw["fc_b"] = fc_w, fc_b

    fwe = jnp.zeros((PLM_HIDDEN, CLASS_PAD), jnp.float32).at[:, :NUM_CLASSES].set(
        fc_w[:, :PLM_HIDDEN].T)
    fwl = jnp.zeros((2 * RNN_HIDDEN, CLASS_PAD), jnp.float32).at[:, :NUM_CLASSES].set(
        fc_w[:, PLM_HIDDEN:].T)
    fb = jnp.zeros((1, CLASS_PAD), jnp.float32).at[:, :NUM_CLASSES].set(fc_b[None, :])
    params["fc_w_enc"] = fwe.astype(jnp.bfloat16)
    params["fc_w_lstm"] = fwl.astype(jnp.bfloat16)
    params["fc_b"] = fb
    return params, raw


# ----------------------------- Model forward -----------------------------
@jax.jit
def forward(params, batch_inputs):
    # "PLM" encoder stand-in: bf16 embedding lookup producing last_hidden_state-
    # shaped activations. Transpose to time-major and flatten in XLA so the kernel
    # gets a ready-to-matmul (L*B, 768) bf16 slab (no in-kernel reshape/cast).
    enc = params["emb"][batch_inputs]                       # (B, L, 768) bf16
    B, L, D = enc.shape
    enc_tm = jnp.transpose(enc, (1, 0, 2)).reshape(L * B, D)
    return rcnn_forward_fused(enc_tm, params, batch=B, seq_len=L)   # (B, num_classes)


# ----------------------------- Pure-JAX f32 reference (PyTorch semantics) -----------------------------
def _reference_forward(raw, emb_f32, batch_inputs):
    enc = emb_f32[batch_inputs]                             # (B, L, 768) f32
    B, L, _ = enc.shape

    def run_dir(p, xs):
        H = p["whh"].shape[1]
        h = jnp.zeros((B, H), jnp.float32)
        c = jnp.zeros((B, H), jnp.float32)
        outs = []
        for xt in xs:
            gates = xt @ p["wih"].T + h @ p["whh"].T + p["b"]
            i, f, g, o = jnp.split(gates, 4, axis=1)
            c = jax.nn.sigmoid(f) * c + jax.nn.sigmoid(i) * jnp.tanh(g)
            h = jax.nn.sigmoid(o) * jnp.tanh(c)
            outs.append(h)
        return outs

    def bilstm(x, fwd, bwd):
        xs = [x[:, t, :] for t in range(L)]
        hf = run_dir(fwd, xs)
        hb = run_dir(bwd, xs[::-1])[::-1]
        return jnp.stack([jnp.concatenate([hf[t], hb[t]], axis=1) for t in range(L)], axis=1)

    out1 = bilstm(enc, raw["fwd1"], raw["bwd1"])
    out2 = bilstm(out1, raw["fwd2"], raw["bwd2"])
    cat = jnp.concatenate([enc, out2], axis=2)              # (B, L, 896)
    pooled = jnp.max(jax.nn.relu(cat), axis=1)              # (B, 896)
    return pooled @ raw["fc_w"].T + raw["fc_b"]             # (B, C)


# ----------------------------- Main -----------------------------
if __name__ == "__main__":
    key = jax.random.PRNGKey(0)
    k_param, k_ids = jax.random.split(key)

    params, raw = init_params(k_param)
    batch_inputs = jax.random.randint(k_ids, (BATCH, MAX_LENGTH), 0, VOCAB, dtype=jnp.int32)

    logits = forward(params, batch_inputs)
    logits = jax.block_until_ready(logits)

    assert logits.shape == (BATCH, NUM_CLASSES), logits.shape
    assert bool(jnp.all(jnp.isfinite(logits)))

    # Validate against a pure-JAX f32 reference (bounds bf16-with-f32-accumulate drift).
    ref = _reference_forward(raw, params["emb"].astype(jnp.float32), batch_inputs)
    max_abs_err = float(jnp.max(jnp.abs(logits - ref)))
    assert max_abs_err < 1e-2, f"max |logits - ref| = {max_abs_err}"

    print("KERNEL_OK")
</pallas_src>

<mosaic_0001>
module attributes {stable_mosaic.version = 11 : i64} {
  func.func @_rcnn_fused_kernel(%arg0: memref<16x768xbf16, #tpu.memory_space<vmem>>, %arg1: memref<768x512xbf16, #tpu.memory_space<vmem>>, %arg2: memref<128x512xbf16, #tpu.memory_space<vmem>>, %arg3: memref<1x512xf32, #tpu.memory_space<vmem>>, %arg4: memref<128x512xbf16, #tpu.memory_space<vmem>>, %arg5: memref<128x512xbf16, #tpu.memory_space<vmem>>, %arg6: memref<1x512xf32, #tpu.memory_space<vmem>>, %arg7: memref<768x128xbf16, #tpu.memory_space<vmem>>, %arg8: memref<128x128xbf16, #tpu.memory_space<vmem>>, %arg9: memref<1x128xf32, #tpu.memory_space<vmem>>, %arg10: memref<2x128xf32, #tpu.memory_space<vmem>>) attributes {dimension_semantics = [], scalar_prefetch = 0 : i64, scratch_operands = 0 : i64, tpu.core_type = #tpu.core_type<tc>} {
    %0 = tpu.iota {dimensions = array<i32: 1>} : vector<1x512xi32>
    %c128_i32 = arith.constant 128 : i32
    %c0_i32 = arith.constant 0 : i32
    %1 = arith.cmpi eq, %c128_i32, %c0_i32 : i32
    %c1_i32 = arith.constant 1 : i32
    %2 = arith.select %1, %c1_i32, %c128_i32 : i32
    %3 = vector.broadcast %2 : i32 to vector<1x512xi32>
    %4 = arith.remsi %0, %3 : vector<1x512xi32>
    %c0_i32_0 = arith.constant 0 : i32
    %5 = vector.broadcast %c0_i32_0 : i32 to vector<1x512xi32>
    %6 = arith.cmpi ne, %4, %5 : vector<1x512xi32>
    %c0_i32_1 = arith.constant 0 : i32
    %7 = vector.broadcast %c0_i32_1 : i32 to vector<1x512xi32>
    %8 = arith.cmpi slt, %4, %7 : vector<1x512xi32>
    %c0_i32_2 = arith.constant 0 : i32
    %9 = arith.cmpi slt, %2, %c0_i32_2 : i32
    %10 = vector.broadcast %9 : i1 to vector<1x512xi1>
    %11 = vector.broadcast %10 : vector<1x512xi1> to vector<1x512xi1>
    %12 = arith.xori %8, %11 : vector<1x512xi1>
    %13 = arith.andi %12, %6 : vector<1x512xi1>
    %14 = vector.broadcast %2 : i32 to vector<1x512xi32>
    %15 = arith.addi %4, %14 : vector<1x512xi32>
    %16 = arith.select %13, %15, %4 : vector<1x512xi1>, vector<1x512xi32>
    %c64_i32 = arith.constant 64 : i32
    %17 = vector.broadcast %c64_i32 : i32 to vector<1x512xi32>
    %18 = arith.cmpi slt, %16, %17 : vector<1x512xi32>
    %19 = tpu.iota {dimensions = array<i32: 1>} : vector<1x128xi32>
    %c64_i32_3 = arith.constant 64 : i32
    %20 = vector.broadcast %c64_i32_3 : i32 to vector<1x128xi32>
    %21 = arith.cmpi slt, %19, %20 : vector<1x128xi32>
    %c0 = arith.constant 0 : index
    %c0_4 = arith.constant 0 : index
    %22 = vector.load %arg0[%c0, %c0_4] : memref<16x768xbf16, #tpu.memory_space<vmem>>, vector<16x768xbf16>
    %c0_5 = arith.constant 0 : index
    %c0_6 = arith.constant 0 : index
    %23 = vector.load %arg1[%c0_5, %c0_6] : memref<768x512xbf16, #tpu.memory_space<vmem>>, vector<768x512xbf16>
    %cst = arith.constant dense<0.000000e+00> : vector<16x512xf32>
    %24 = tpu.matmul %22, %23, %cst {dimension_numbers = #tpu.dot_dimension_numbers<[1], [0], [0], [1], [0, 0, 1, 1], [], []>} : vector<16x768xbf16>, vector<768x512xbf16>, vector<16x512xf32> -> vector<16x512xf32>
    %c0_7 = arith.constant 0 : index
    %c0_8 = arith.constant 0 : index
    %25 = vector.load %arg3[%c0_7, %c0_8] : memref<1x512xf32, #tpu.memory_space<vmem>>, vector<1x512xf32>
    %26 = vector.broadcast %25 : vector<1x512xf32> to vector<16x512xf32>
    %27 = arith.addf %24, %26 : vector<16x512xf32>
    %28 = vector.extract_strided_slice %27 {offsets = [0, 0], sizes = [2, 512], strides = [1, 1]} : vector<16x512xf32> to vector<2x512xf32>
    %29 = vector.extract_strided_slice %27 {offsets = [14, 0], sizes = [2, 512], strides = [1, 1]} : vector<16x512xf32> to vector<2x512xf32>
    %30 = vector.shape_cast %18 : vector<1x512xi1> to vector<1x512xi1>
    %31 = vector.broadcast %30 : vector<1x512xi1> to vector<2x512xi1>
    %32 = arith.select %31, %28, %29 : vector<2x512xi1>, vector<2x512xf32>
    %33 = vector.extract_strided_slice %27 {offsets = [2, 0], sizes = [2, 512], strides = [1, 1]} : vector<16x512xf32> to vector<2x512xf32>
    %34 = vector.extract_strided_slice %27 {offsets = [12, 0], sizes = [2, 512], strides = [1, 1]} : vector<16x512xf32> to vector<2x512xf32>
    %35 = vector.shape_cast %18 : vector<1x512xi1> to vector<1x512xi1>
    %36 = vector.broadcast %35 : vector<1x512xi1> to vector<2x512xi1>
    %37 = arith.select %36, %33, %34 : vector<2x512xi1>, vector<2x512xf32>
    %38 = vector.extract_strided_slice %27 {offsets = [4, 0], sizes = [2, 512], strides = [1, 1]} : vector<16x512xf32> to vector<2x512xf32>
    %39 = vector.extract_strided_slice %27 {offsets = [10, 0], sizes = [2, 512], strides = [1, 1]} : vector<16x512xf32> to vector<2x512xf32>
    %40 = vector.shape_cast %18 : vector<1x512xi1> to vector<1x512xi1>
    %41 = vector.broadcast %40 : vector<1x512xi1> to vector<2x512xi1>
    %42 = arith.select %41, %38, %39 : vector<2x512xi1>, vector<2x512xf32>
    %43 = vector.extract_strided_slice %27 {offsets = [6, 0], sizes = [2, 512], strides = [1, 1]} : vector<16x512xf32> to vector<2x512xf32>
    %44 = vector.extract_strided_slice %27 {offsets = [8, 0], sizes = [2, 512], strides = [1, 1]} : vector<16x512xf32> to vector<2x512xf32>
    %45 = vector.shape_cast %18 : vector<1x512xi1> to vector<1x512xi1>
    %46 = vector.broadcast %45 : vector<1x512xi1> to vector<2x512xi1>
    %47 = arith.select %46, %43, %44 : vector<2x512xi1>, vector<2x512xf32>
    %48 = vector.extract_strided_slice %27 {offsets = [8, 0], sizes = [2, 512], strides = [1, 1]} : vector<16x512xf32> to vector<2x512xf32>
    %49 = vector.extract_strided_slice %27 {offsets = [6, 0], sizes = [2, 512], strides = [1, 1]} : vector<16x512xf32> to vector<2x512xf32>
    %50 = vector.shape_cast %18 : vector<1x512xi1> to vector<1x512xi1>
    %51 = vector.broadcast %50 : vector<1x512xi1> to vector<2x512xi1>
    %52 = arith.select %51, %48, %49 : vector<2x512xi1>, vector<2x512xf32>
    %53 = vector.extract_strided_slice %27 {offsets = [10, 0], sizes = [2, 512], strides = [1, 1]} : vector<16x512xf32> to vector<2x512xf32>
    %54 = vector.extract_strided_slice %27 {offsets = [4, 0], sizes = [2, 512], strides = [1, 1]} : vector<16x512xf32> to vector<2x512xf32>
    %55 = vector.shape_cast %18 : vector<1x512xi1> to vector<1x512xi1>
    %56 = vector.broadcast %55 : vector<1x512xi1> to vector<2x512xi1>
    %57 = arith.select %56, %53, %54 : vector<2x512xi1>, vector<2x512xf32>
    %58 = vector.extract_strided_slice %27 {offsets = [12, 0], sizes = [2, 512], strides = [1, 1]} : vector<16x512xf32> to vector<2x512xf32>
    %59 = vector.extract_strided_slice %27 {offsets = [2, 0], sizes = [2, 512], strides = [1, 1]} : vector<16x512xf32> to vector<2x512xf32>
    %60 = vector.shape_cast %18 : vector<1x512xi1> to vector<1x512xi1>
    %61 = vector.broadcast %60 : vector<1x512xi1> to vector<2x512xi1>
    %62 = arith.select %61, %58, %59 : vector<2x512xi1>, vector<2x512xf32>
    %63 = vector.extract_strided_slice %27 {offsets = [14, 0], sizes = [2, 512], strides = [1, 1]} : vector<16x512xf32> to vector<2x512xf32>
    %64 = vector.extract_strided_slice %27 {offsets = [0, 0], sizes = [2, 512], strides = [1, 1]} : vector<16x512xf32> to vector<2x512xf32>
    %65 = vector.shape_cast %18 : vector<1x512xi1> to vector<1x512xi1>
    %66 = vector.broadcast %65 : vector<1x512xi1> to vector<2x512xi1>
    %67 = arith.select %66, %63, %64 : vector<2x512xi1>, vector<2x512xf32>
    %c0_9 = arith.constant 0 : index
    %c0_10 = arith.constant 0 : index
    %68 = vector.load %arg2[%c0_9, %c0_10] : memref<128x512xbf16, #tpu.memory_space<vmem>>, vector<128x512xbf16>
    %cst_11 = arith.constant 0.000000e+00 : f32
    %69 = vector.broadcast %cst_11 : f32 to vector<2x128xf32>
    %cst_12 = arith.constant 0.000000e+00 : f32
    %70 = vector.broadcast %cst_12 : f32 to vector<2x128xf32>
    %71 = arith.truncf %69 : vector<2x128xf32> to vector<2x128xbf16>
    %cst_13 = arith.constant dense<0.000000e+00> : vector<2x512xf32>
    %72 = tpu.matmul %71, %68, %cst_13 {dimension_numbers = #tpu.dot_dimension_numbers<[1], [0], [0], [1], [0, 0, 1, 1], [], []>} : vector<2x128xbf16>, vector<128x512xbf16>, vector<2x512xf32> -> vector<2x512xf32>
    %73 = arith.addf %32, %72 : vector<2x512xf32>
    %74 = vector.extract_strided_slice %73 {offsets = [0, 0], sizes = [2, 128], strides = [1, 1]} : vector<2x512xf32> to vector<2x128xf32>
    %75 = arith.negf %74 : vector<2x128xf32>
    %76 = math.exp %75 : vector<2x128xf32>
    %cst_14 = arith.constant 1.000000e+00 : f32
    %77 = vector.broadcast %cst_14 : f32 to vector<2x128xf32>
    %78 = arith.addf %77, %76 : vector<2x128xf32>
    %79 = arith.divf %77, %78 : vector<2x128xf32>
    %80 = vector.extract_strided_slice %73 {offsets = [0, 128], sizes = [2, 128], strides = [1, 1]} : vector<2x512xf32> to vector<2x128xf32>
    %81 = arith.negf %80 : vector<2x128xf32>
    %82 = math.exp %81 : vector<2x128xf32>
    %cst_15 = arith.constant 1.000000e+00 : f32
    %83 = vector.broadcast %cst_15 : f32 to vector<2x128xf32>
    %84 = arith.addf %83, %82 : vector<2x128xf32>
    %85 = arith.divf %83, %84 : vector<2x128xf32>
    %86 = vector.extract_strided_slice %73 {offsets = [0, 256], sizes = [2, 128], strides = [1, 1]} : vector<2x512xf32> to vector<2x128xf32>
    %87 = math.tanh %86 : vector<2x128xf32>
    %88 = vector.extract_strided_slice %73 {offsets = [0, 384], sizes = [2, 128], strides = [1, 1]} : vector<2x512xf32> to vector<2x128xf32>
    %89 = arith.negf %88 : vector<2x128xf32>
    %90 = math.exp %89 : vector<2x128xf32>
    %cst_16 = arith.constant 1.000000e+00 : f32
    %91 = vector.broadcast %cst_16 : f32 to vector<2x128xf32>
    %92 = arith.addf %91, %90 : vector<2x128xf32>
    %93 = arith.divf %91, %92 : vector<2x128xf32>
    %94 = arith.mulf %85, %70 : vector<2x128xf32>
    %95 = arith.mulf %79, %87 : vector<2x128xf32>
    %96 = arith.addf %94, %95 : vector<2x128xf32>
    %97 = math.tanh %96 : vector<2x128xf32>
    %98 = arith.mulf %93, %97 : vector<2x128xf32>
    %99 = arith.truncf %98 : vector<2x128xf32> to vector<2x128xbf16>
    %cst_17 = arith.constant dense<0.000000e+00> : vector<2x512xf32>
    %100 = tpu.matmul %99, %68, %cst_17 {dimension_numbers = #tpu.dot_dimension_numbers<[1], [0], [0], [1], [0, 0, 1, 1], [], []>} : vector<2x128xbf16>, vector<128x512xbf16>, vector<2x512xf32> -> vector<2x512xf32>
    %101 = arith.addf %37, %100 : vector<2x512xf32>
    %102 = vector.extract_strided_slice %101 {offsets = [0, 0], sizes = [2, 128], strides = [1, 1]} : vector<2x512xf32> to vector<2x128xf32>
    %103 = arith.negf %102 : vector<2x128xf32>
    %104 = math.exp %103 : vector<2x128xf32>
    %cst_18 = arith.constant 1.000000e+00 : f32
    %105 = vector.broadcast %cst_18 : f32 to vector<2x128xf32>
    %106 = arith.addf %105, %104 : vector<2x128xf32>
    %107 = arith.divf %105, %106 : vector<2x128xf32>
    %108 = vector.extract_strided_slice %101 {offsets = [0, 128], sizes = [2, 128], strides = [1, 1]} : vector<2x512xf32> to vector<2x128xf32>
    %109 = arith.negf %108 : vector<2x128xf32>
    %110 = math.exp %109 : vector<2x128xf32>
    %cst_19 = arith.constant 1.000000e+00 : f32
    %111 = vector.broadcast %cst_19 : f32 to vector<2x128xf32>
    %112 = arith.addf %111, %110 : vector<2x128xf32>
    %113 = arith.divf %111, %112 : vector<2x128xf32>
    %114 = vector.extract_strided_slice %101 {offsets = [0, 256], sizes = [2, 128], strides = [1, 1]} : vector<2x512xf32> to vector<2x128xf32>
    %115 = math.tanh %114 : vector<2x128xf32>
    %116 = vector.extract_strided_slice %101 {offsets = [0, 384], sizes = [2, 128], strides = [1, 1]} : vector<2x512xf32> to vector<2x128xf32>
    %117 = arith.negf %116 : vector<2x128xf32>
    %118 = math.exp %117 : vector<2x128xf32>
    %cst_20 = arith.constant 1.000000e+00 : f32
    %119 = vector.broadcast %cst_20 : f32 to vector<2x128xf32>
    %120 = arith.addf %119, %118 : vector<2x128xf32>
    %121 = arith.divf %119, %120 : vector<2x128xf32>
    %122 = arith.mulf %113, %96 : vector<2x128xf32>
    %123 = arith.mulf %107, %115 : vector<2x128xf32>
    %124 = arith.addf %122, %123 : vector<2x128xf32>
    %125 = math.tanh %124 : vector<2x128xf32>
    %126 = arith.mulf %121, %125 : vector<2x128xf32>
    %127 = arith.truncf %126 : vector<2x128xf32> to vector<2x128xbf16>
    %cst_21 = arith.constant dense<0.000000e+00> : vector<2x512xf32>
    %128 = tpu.matmul %127, %68, %cst_21 {dimension_numbers = #tpu.dot_dimension_numbers<[1], [0], [0], [1], [0, 0, 1, 1], [], []>} : vector<2x128xbf16>, vector<128x512xbf16>, vector<2x512xf32> -> vector<2x512xf32>
    %129 = arith.addf %42, %128 : vector<2x512xf32>
    %130 = vector.extract_strided_slice %129 {offsets = [0, 0], sizes = [2, 128], strides = [1, 1]} : vector<2x512xf32> to vector<2x128xf32>
    %131 = arith.negf %130 : vector<2x128xf32>
    %132 = math.exp %131 : vector<2x128xf32>
    %cst_22 = arith.constant 1.000000e+00 : f32
    %133 = vector.broadcast %cst_22 : f32 to vector<2x128xf32>
    %134 = arith.addf %133, %132 : vector<2x128xf32>
    %135 = arith.divf %133, %134 : vector<2x128xf32>
    %136 = vector.extract_strided_slice %129 {offsets = [0, 128], sizes = [2, 128], strides = [1, 1]} : vector<2x512xf32> to vector<2x128xf32>
    %137 = arith.negf %136 : vector<2x128xf32>
    %138 = math.exp %137 : vector<2x128xf32>
    %cst_23 = arith.constant 1.000000e+00 : f32
    %139 = vector.broadcast %cst_23 : f32 to vector<2x128xf32>
    %140 = arith.addf %139, %138 : vector<2x128xf32>
    %141 = arith.divf %139, %140 : vector<2x128xf32>
    %142 = vector.extract_strided_slice %129 {offsets = [0, 256], sizes = [2, 128], strides = [1, 1]} : vector<2x512xf32> to vector<2x128xf32>
    %143 = math.tanh %142 : vector<2x128xf32>
    %144 = vector.extract_strided_slice %129 {offsets = [0, 384], sizes = [2, 128], strides = [1, 1]} : vector<2x512xf32> to vector<2x128xf32>
    %145 = arith.negf %144 : vector<2x128xf32>
    %146 = math.exp %145 : vector<2x128xf32>
    %cst_24 = arith.constant 1.000000e+00 : f32
    %147 = vector.broadcast %cst_24 : f32 to vector<2x128xf32>
    %148 = arith.addf %147, %146 : vector<2x128xf32>
    %149 = arith.divf %147, %148 : vector<2x128xf32>
    %150 = arith.mulf %141, %124 : vector<2x128xf32>
    %151 = arith.mulf %135, %143 : vector<2x128xf32>
    %152 = arith.addf %150, %151 : vector<2x128xf32>
    %153 = math.tanh %152 : vector<2x128xf32>
    %154 = arith.mulf %149, %153 : vector<2x128xf32>
    %155 = arith.truncf %154 : vector<2x128xf32> to vector<2x128xbf16>
    %cst_25 = arith.constant dense<0.000000e+00> : vector<2x512xf32>
    %156 = tpu.matmul %155, %68, %cst_25 {dimension_numbers = #tpu.dot_dimension_numbers<[1], [0], [0], [1], [0, 0, 1, 1], [], []>} : vector<2x128xbf16>, vector<128x512xbf16>, vector<2x512xf32> -> vector<2x512xf32>
    %157 = arith.addf %47, %156 : vector<2x512xf32>
    %158 = vector.extract_strided_slice %157 {offsets = [0, 0], sizes = [2, 128], strides = [1, 1]} : vector<2x512xf32> to vector<2x128xf32>
    %159 = arith.negf %158 : vector<2x128xf32>
    %160 = math.exp %159 : vector<2x128xf32>
    %cst_26 = arith.constant 1.000000e+00 : f32
    %161 = vector.broadcast %cst_26 : f32 to vector<2x128xf32>
    %162 = arith.addf %161, %160 : vector<2x128xf32>
    %163 = arith.divf %161, %162 : vector<2x128xf32>
    %164 = vector.extract_strided_slice %157 {offsets = [0, 128], sizes = [2, 128], strides = [1, 1]} : vector<2x512xf32> to vector<2x128xf32>
    %165 = arith.negf %164 : vector<2x128xf32>
    %166 = math.exp %165 : vector<2x128xf32>
    %cst_27 = arith.constant 1.000000e+00 : f32
    %167 = vector.broadcast %cst_27 : f32 to vector<2x128xf32>
    %168 = arith.addf %167, %166 : vector<2x128xf32>
    %169 = arith.divf %167, %168 : vector<2x128xf32>
    %170 = vector.extract_strided_slice %157 {offsets = [0, 256], sizes = [2, 128], strides = [1, 1]} : vector<2x512xf32> to vector<2x128xf32>
    %171 = math.tanh %170 : vector<2x128xf32>
    %172 = vector.extract_strided_slice %157 {offsets = [0, 384], sizes = [2, 128], strides = [1, 1]} : vector<2x512xf32> to vector<2x128xf32>
    %173 = arith.negf %172 : vector<2x128xf32>
    %174 = math.exp %173 : vector<2x128xf32>
    %cst_28 = arith.constant 1.000000e+00 : f32
    %175 = vector.broadcast %cst_28 : f32 to vector<2x128xf32>
    %176 = arith.addf %175, %174 : vector<2x128xf32>
    %177 = arith.divf %175, %176 : vector<2x128xf32>
    %178 = arith.mulf %169, %152 : vector<2x128xf32>
    %179 = arith.mulf %163, %171 : vector<2x128xf32>
    %180 = arith.addf %178, %179 : vector<2x128xf32>
    %181 = math.tanh %180 : vector<2x128xf32>
    %182 = arith.mulf %177, %181 : vector<2x128xf32>
    %183 = arith.truncf %182 : vector<2x128xf32> to vector<2x128xbf16>
    %cst_29 = arith.constant dense<0.000000e+00> : vector<2x512xf32>
    %184 = tpu.matmul %183, %68, %cst_29 {dimension_numbers = #tpu.dot_dimension_numbers<[1], [0], [0], [1], [0, 0, 1, 1], [], []>} : vector<2x128xbf16>, vector<128x512xbf16>, vector<2x512xf32> -> vector<2x512xf32>
    %185 = arith.addf %52, %184 : vector<2x512xf32>
    %186 = vector.extract_strided_slice %185 {offsets = [0, 0], sizes = [2, 128], strides = [1, 1]} : vector<2x512xf32> to vector<2x128xf32>
    %187 = arith.negf %186 : vector<2x128xf32>
    %188 = math.exp %187 : vector<2x128xf32>
    %cst_30 = arith.constant 1.000000e+00 : f32
    %189 = vector.broadcast %cst_30 : f32 to vector<2x128xf32>
    %190 = arith.addf %189, %188 : vector<2x128xf32>
    %191 = arith.divf %189, %190 : vector<2x128xf32>
    %192 = vector.extract_strided_slice %185 {offsets = [0, 128], sizes = [2, 128], strides = [1, 1]} : vector<2x512xf32> to vector<2x128xf32>
    %193 = arith.negf %192 : vector<2x128xf32>
    %194 = math.exp %193 : vector<2x128xf32>
    %cst_31 = arith.constant 1.000000e+00 : f32
    %195 = vector.broadcast %cst_31 : f32 to vector<2x128xf32>
    %196 = arith.addf %195, %194 : vector<2x128xf32>
    %197 = arith.divf %195, %196 : vector<2x128xf32>
    %198 = vector.extract_strided_slice %185 {offsets = [0, 256], sizes = [2, 128], strides = [1, 1]} : vector<2x512xf32> to vector<2x128xf32>
    %199 = math.tanh %198 : vector<2x128xf32>
    %200 = vector.extract_strided_slice %185 {offsets = [0, 384], sizes = [2, 128], strides = [1, 1]} : vector<2x512xf32> to vector<2x128xf32>
    %201 = arith.negf %200 : vector<2x128xf32>
    %202 = math.exp %201 : vector<2x128xf32>
    %cst_32 = arith.constant 1.000000e+00 : f32
    %203 = vector.broadcast %cst_32 : f32 to vector<2x128xf32>
    %204 = arith.addf %203, %202 : vector<2x128xf32>
    %205 = arith.divf %203, %204 : vector<2x128xf32>
    %206 = arith.mulf %197, %180 : vector<2x128xf32>
    %207 = arith.mulf %191, %199 : vector<2x128xf32>
    %208 = arith.addf %206, %207 : vector<2x128xf32>
    %209 = math.tanh %208 : vector<2x128xf32>
    %210 = arith.mulf %205, %209 : vector<2x128xf32>
    %211 = arith.truncf %210 : vector<2x128xf32> to vector<2x128xbf16>
    %cst_33 = arith.constant dense<0.000000e+00> : vector<2x512xf32>
    %212 = tpu.matmul %211, %68, %cst_33 {dimension_numbers = #tpu.dot_dimension_numbers<[1], [0], [0], [1], [0, 0, 1, 1], [], []>} : vector<2x128xbf16>, vector<128x512xbf16>, vector<2x512xf32> -> vector<2x512xf32>
    %213 = arith.addf %57, %212 : vector<2x512xf32>
    %214 = vector.extract_strided_slice %213 {offsets = [0, 0], sizes = [2, 128], strides = [1, 1]} : vector<2x512xf32> to vector<2x128xf32>
    %215 = arith.negf %214 : vector<2x128xf32>
    %216 = math.exp %215 : vector<2x128xf32>
    %cst_34 = arith.constant 1.000000e+00 : f32
    %217 = vector.broadcast %cst_34 : f32 to vector<2x128xf32>
    %218 = arith.addf %217, %216 : vector<2x128xf32>
    %219 = arith.divf %217, %218 : vector<2x128xf32>
    %220 = vector.extract_strided_slice %213 {offsets = [0, 128], sizes = [2, 128], strides = [1, 1]} : vector<2x512xf32> to vector<2x128xf32>
    %221 = arith.negf %220 : vector<2x128xf32>
    %222 = math.exp %221 : vector<2x128xf32>
    %cst_35 = arith.constant 1.000000e+00 : f32
    %223 = vector.broadcast %cst_35 : f32 to vector<2x128xf32>
    %224 = arith.addf %223, %222 : vector<2x128xf32>
    %225 = arith.divf %223, %224 : vector<2x128xf32>
    %226 = vector.extract_strided_slice %213 {offsets = [0, 256], sizes = [2, 128], strides = [1, 1]} : vector<2x512xf32> to vector<2x128xf32>
    %227 = math.tanh %226 : vector<2x128xf32>
    %228 = vector.extract_strided_slice %213 {offsets = [0, 384], sizes = [2, 128], strides = [1, 1]} : vector<2x512xf32> to vector<2x128xf32>
    %229 = arith.negf %228 : vector<2x128xf32>
    %230 = math.exp %229 : vector<2x128xf32>
    %cst_36 = arith.constant 1.000000e+00 : f32
    %231 = vector.broadcast %cst_36 : f32 to vector<2x128xf32>
    %232 = arith.addf %231, %230 : vector<2x128xf32>
    %233 = arith.divf %231, %232 : vector<2x128xf32>
    %234 = arith.mulf %225, %208 : vector<2x128xf32>
    %235 = arith.mulf %219, %227 : vector<2x128xf32>
    %236 = arith.addf %234, %235 : vector<2x128xf32>
    %237 = math.tanh %236 : vector<2x128xf32>
    %238 = arith.mulf %233, %237 : vector<2x128xf32>
    %239 = arith.truncf %238 : vector<2x128xf32> to vector<2x128xbf16>
    %cst_37 = arith.constant dense<0.000000e+00> : vector<2x512xf32>
    %240 = tpu.matmul %239, %68, %cst_37 {dimension_numbers = #tpu.dot_dimension_numbers<[1], [0], [0], [1], [0, 0, 1, 1], [], []>} : vector<2x128xbf16>, vector<128x512xbf16>, vector<2x512xf32> -> vector<2x512xf32>
    %241 = arith.addf %62, %240 : vector<2x512xf32>
    %242 = vector.extract_strided_slice %241 {offsets = [0, 0], sizes = [2, 128], strides = [1, 1]} : vector<2x512xf32> to vector<2x128xf32>
    %243 = arith.negf %242 : vector<2x128xf32>
    %244 = math.exp %243 : vector<2x128xf32>
    %cst_38 = arith.constant 1.000000e+00 : f32
    %245 = vector.broadcast %cst_38 : f32 to vector<2x128xf32>
    %246 = arith.addf %245, %244 : vector<2x128xf32>
    %247 = arith.divf %245, %246 : vector<2x128xf32>
    %248 = vector.extract_strided_slice %241 {offsets = [0, 128], sizes = [2, 128], strides = [1, 1]} : vector<2x512xf32> to vector<2x128xf32>
    %249 = arith.negf %248 : vector<2x128xf32>
    %250 = math.exp %249 : vector<2x128xf32>
    %cst_39 = arith.constant 1.000000e+00 : f32
    %251 = vector.broadcast %cst_39 : f32 to vector<2x128xf32>
    %252 = arith.addf %251, %250 : vector<2x128xf32>
    %253 = arith.divf %251, %252 : vector<2x128xf32>
    %254 = vector.extract_strided_slice %241 {offsets = [0, 256], sizes = [2, 128], strides = [1, 1]} : vector<2x512xf32> to vector<2x128xf32>
    %255 = math.tanh %254 : vector<2x128xf32>
    %256 = vector.extract_strided_slice %241 {offsets = [0, 384], sizes = [2, 128], strides = [1, 1]} : vector<2x512xf32> to vector<2x128xf32>
    %257 = arith.negf %256 : vector<2x128xf32>
    %258 = math.exp %257 : vector<2x128xf32>
    %cst_40 = arith.constant 1.000000e+00 : f32
    %259 = vector.broadcast %cst_40 : f32 to vector<2x128xf32>
    %260 = arith.addf %259, %258 : vector<2x128xf32>
    %261 = arith.divf %259, %260 : vector<2x128xf32>
    %262 = arith.mulf %253, %236 : vector<2x128xf32>
    %263 = arith.mulf %247, %255 : vector<2x128xf32>
    %264 = arith.addf %262, %263 : vector<2x128xf32>
    %265 = math.tanh %264 : vector<2x128xf32>
    %266 = arith.mulf %261, %265 : vector<2x128xf32>
    %267 = arith.truncf %266 : vector<2x128xf32> to vector<2x128xbf16>
    %cst_41 = arith.constant dense<0.000000e+00> : vector<2x512xf32>
    %268 = tpu.matmul %267, %68, %cst_41 {dimension_numbers = #tpu.dot_dimension_numbers<[1], [0], [0], [1], [0, 0, 1, 1], [], []>} : vector<2x128xbf16>, vector<128x512xbf16>, vector<2x512xf32> -> vector<2x512xf32>
    %269 = arith.addf %67, %268 : vector<2x512xf32>
    %270 = vector.extract_strided_slice %269 {offsets = [0, 0], sizes = [2, 128], strides = [1, 1]} : vector<2x512xf32> to vector<2x128xf32>
    %271 = arith.negf %270 : vector<2x128xf32>
    %272 = math.exp %271 : vector<2x128xf32>
    %cst_42 = arith.constant 1.000000e+00 : f32
    %273 = vector.broadcast %cst_42 : f32 to vector<2x128xf32>
    %274 = arith.addf %273, %272 : vector<2x128xf32>
    %275 = arith.divf %273, %274 : vector<2x128xf32>
    %276 = vector.extract_strided_slice %269 {offsets = [0, 128], sizes = [2, 128], strides = [1, 1]} : vector<2x512xf32> to vector<2x128xf32>
    %277 = arith.negf %276 : vector<2x128xf32>
    %278 = math.exp %277 : vector<2x128xf32>
    %cst_43 = arith.constant 1.000000e+00 : f32
    %279 = vector.broadcast %cst_43 : f32 to vector<2x128xf32>
    %280 = arith.addf %279, %278 : vector<2x128xf32>
    %281 = arith.divf %279, %280 : vector<2x128xf32>
    %282 = vector.extract_strided_slice %269 {offsets = [0, 256], sizes = [2, 128], strides = [1, 1]} : vector<2x512xf32> to vector<2x128xf32>
    %283 = math.tanh %282 : vector<2x128xf32>
    %284 = vector.extract_strided_slice %269 {offsets = [0, 384], sizes = [2, 128], strides = [1, 1]} : vector<2x512xf32> to vector<2x128xf32>
    %285 = arith.negf %284 : vector<2x128xf32>
    %286 = math.exp %285 : vector<2x128xf32>
    %cst_44 = arith.constant 1.000000e+00 : f32
    %287 = vector.broadcast %cst_44 : f32 to vector<2x128xf32>
    %288 = arith.addf %287, %286 : vector<2x128xf32>
    %289 = arith.divf %287, %288 : vector<2x128xf32>
    %290 = arith.mulf %281, %264 : vector<2x128xf32>
    %291 = arith.mulf %275, %283 : vector<2x128xf32>
    %292 = arith.addf %290, %291 : vector<2x128xf32>
    %293 = math.tanh %292 : vector<2x128xf32>
    %294 = arith.mulf %289, %293 : vector<2x128xf32>
    %295 = vector.shape_cast %21 : vector<1x128xi1> to vector<1x128xi1>
    %296 = vector.broadcast %295 : vector<1x128xi1> to vector<2x128xi1>
    %297 = arith.select %296, %98, %294 : vector<2x128xi1>, vector<2x128xf32>
    %298 = vector.shape_cast %21 : vector<1x128xi1> to vector<1x128xi1>
    %299 = vector.broadcast %298 : vector<1x128xi1> to vector<2x128xi1>
    %300 = arith.select %299, %126, %266 : vector<2x128xi1>, vector<2x128xf32>
    %301 = vector.shape_cast %21 : vector<1x128xi1> to vector<1x128xi1>
    %302 = vector.broadcast %301 : vector<1x128xi1> to vector<2x128xi1>
    %303 = arith.select %302, %154, %238 : vector<2x128xi1>, vector<2x128xf32>
    %304 = vector.shape_cast %21 : vector<1x128xi1> to vector<1x128xi1>
    %305 = vector.broadcast %304 : vector<1x128xi1> to vector<2x128xi1>
    %306 = arith.select %305, %182, %210 : vector<2x128xi1>, vector<2x128xf32>
    %307 = vector.shape_cast %21 : vector<1x128xi1> to vector<1x128xi1>
    %308 = vector.broadcast %307 : vector<1x128xi1> to vector<2x128xi1>
    %309 = arith.select %308, %210, %182 : vector<2x128xi1>, vector<2x128xf32>
    %310 = vector.shape_cast %21 : vector<1x128xi1> to vector<1x128xi1>
    %311 = vector.broadcast %310 : vector<1x128xi1> to vector<2x128xi1>
    %312 = arith.select %311, %238, %154 : vector<2x128xi1>, vector<2x128xf32>
    %313 = vector.shape_cast %21 : vector<1x128xi1> to vector<1x128xi1>
    %314 = vector.broadcast %313 : vector<1x128xi1> to vector<2x128xi1>
    %315 = arith.select %314, %266, %126 : vector<2x128xi1>, vector<2x128xf32>
    %316 = vector.shape_cast %21 : vector<1x128xi1> to vector<1x128xi1>
    %317 = vector.broadcast %316 : vector<1x128xi1> to vector<2x128xi1>
    %318 = arith.select %317, %294, %98 : vector<2x128xi1>, vector<2x128xf32>
    %319 = tpu.concatenate %297, %300, %303, %306, %309, %312, %315, %318 in 0 : vector<2x128xf32>, vector<2x128xf32>, vector<2x128xf32>, vector<2x128xf32>, vector<2x128xf32>, vector<2x128xf32>, vector<2x128xf32>, vector<2x128xf32> -> vector<16x128xf32>
    %320 = arith.truncf %319 : vector<16x128xf32> to vector<16x128xbf16>
    %c0_45 = arith.constant 0 : index
    %c0_46 = arith.constant 0 : index
    %321 = vector.load %arg4[%c0_45, %c0_46] : memref<128x512xbf16, #tpu.memory_space<vmem>>, vector<128x512xbf16>
    %cst_47 = arith.constant dense<0.000000e+00> : vector<16x512xf32>
    %322 = tpu.matmul %320, %321, %cst_47 {dimension_numbers = #tpu.dot_dimension_numbers<[1], [0], [0], [1], [0, 0, 1, 1], [], []>} : vector<16x128xbf16>, vector<128x512xbf16>, vector<16x512xf32> -> vector<16x512xf32>
    %c0_48 = arith.constant 0 : index
    %c0_49 = arith.constant 0 : index
    %323 = vector.load %arg6[%c0_48, %c0_49] : memref<1x512xf32, #tpu.memory_space<vmem>>, vector<1x512xf32>
    %324 = vector.broadcast %323 : vector<1x512xf32> to vector<16x512xf32>
    %325 = arith.addf %322, %324 : vector<16x512xf32>
    %326 = vector.extract_strided_slice %325 {offsets = [0, 0], sizes = [2, 512], strides = [1, 1]} : vector<16x512xf32> to vector<2x512xf32>
    %327 = vector.extract_strided_slice %325 {offsets = [14, 0], sizes = [2, 512], strides = [1, 1]} : vector<16x512xf32> to vector<2x512xf32>
    %328 = vector.shape_cast %18 : vector<1x512xi1> to vector<1x512xi1>
    %329 = vector.broadcast %328 : vector<1x512xi1> to vector<2x512xi1>
    %330 = arith.select %329, %326, %327 : vector<2x512xi1>, vector<2x512xf32>
    %331 = vector.extract_strided_slice %325 {offsets = [2, 0], sizes = [2, 512], strides = [1, 1]} : vector<16x512xf32> to vector<2x512xf32>
    %332 = vector.extract_strided_slice %325 {offsets = [12, 0], sizes = [2, 512], strides = [1, 1]} : vector<16x512xf32> to vector<2x512xf32>
    %333 = vector.shape_cast %18 : vector<1x512xi1> to vector<1x512xi1>
    %334 = vector.broadcast %333 : vector<1x512xi1> to vector<2x512xi1>
    %335 = arith.select %334, %331, %332 : vector<2x512xi1>, vector<2x512xf32>
    %336 = vector.extract_strided_slice %325 {offsets = [4, 0], sizes = [2, 512], strides = [1, 1]} : vector<16x512xf32> to vector<2x512xf32>
    %337 = vector.extract_strided_slice %325 {offsets = [10, 0], sizes = [2, 512], strides = [1, 1]} : vector<16x512xf32> to vector<2x512xf32>
    %338 = vector.shape_cast %18 : vector<1x512xi1> to vector<1x512xi1>
    %339 = vector.broadcast %338 : vector<1x512xi1> to vector<2x512xi1>
    %340 = arith.select %339, %336, %337 : vector<2x512xi1>, vector<2x512xf32>
    %341 = vector.extract_strided_slice %325 {offsets = [6, 0], sizes = [2, 512], strides = [1, 1]} : vector<16x512xf32> to vector<2x512xf32>
    %342 = vector.extract_strided_slice %325 {offsets = [8, 0], sizes = [2, 512], strides = [1, 1]} : vector<16x512xf32> to vector<2x512xf32>
    %343 = vector.shape_cast %18 : vector<1x512xi1> to vector<1x512xi1>
    %344 = vector.broadcast %343 : vector<1x512xi1> to vector<2x512xi1>
    %345 = arith.select %344, %341, %342 : vector<2x512xi1>, vector<2x512xf32>
    %346 = vector.extract_strided_slice %325 {offsets = [8, 0], sizes = [2, 512], strides = [1, 1]} : vector<16x512xf32> to vector<2x512xf32>
    %347 = vector.extract_strided_slice %325 {offsets = [6, 0], sizes = [2, 512], strides = [1, 1]} : vector<16x512xf32> to vector<2x512xf32>
    %348 = vector.shape_cast %18 : vector<1x512xi1> to vector<1x512xi1>
    %349 = vector.broadcast %348 : vector<1x512xi1> to vector<2x512xi1>
    %350 = arith.select %349, %346, %347 : vector<2x512xi1>, vector<2x512xf32>
    %351 = vector.extract_strided_slice %325 {offsets = [10, 0], sizes = [2, 512], strides = [1, 1]} : vector<16x512xf32> to vector<2x512xf32>
    %352 = vector.extract_strided_slice %325 {offsets = [4, 0], sizes = [2, 512], strides = [1, 1]} : vector<16x512xf32> to vector<2x512xf32>
    %353 = vector.shape_cast %18 : vector<1x512xi1> to vector<1x512xi1>
    %354 = vector.broadcast %353 : vector<1x512xi1> to vector<2x512xi1>
    %355 = arith.select %354, %351, %352 : vector<2x512xi1>, vector<2x512xf32>
    %356 = vector.extract_strided_slice %325 {offsets = [12, 0], sizes = [2, 512], strides = [1, 1]} : vector<16x512xf32> to vector<2x512xf32>
    %357 = vector.extract_strided_slice %325 {offsets = [2, 0], sizes = [2, 512], strides = [1, 1]} : vector<16x512xf32> to vector<2x512xf32>
    %358 = vector.shape_cast %18 : vector<1x512xi1> to vector<1x512xi1>
    %359 = vector.broadcast %358 : vector<1x512xi1> to vector<2x512xi1>
    %360 = arith.select %359, %356, %357 : vector<2x512xi1>, vector<2x512xf32>
    %361 = vector.extract_strided_slice %325 {offsets = [14, 0], sizes = [2, 512], strides = [1, 1]} : vector<16x512xf32> to vector<2x512xf32>
    %362 = vector.extract_strided_slice %325 {offsets = [0, 0], sizes = [2, 512], strides = [1, 1]} : vector<16x512xf32> to vector<2x512xf32>
    %363 = vector.shape_cast %18 : vector<1x512xi1> to vector<1x512xi1>
    %364 = vector.broadcast %363 : vector<1x512xi1> to vector<2x512xi1>
    %365 = arith.select %364, %361, %362 : vector<2x512xi1>, vector<2x512xf32>
    %c0_50 = arith.constant 0 : index
    %c0_51 = arith.constant 0 : index
    %366 = vector.load %arg5[%c0_50, %c0_51] : memref<128x512xbf16, #tpu.memory_space<vmem>>, vector<128x512xbf16>
    %cst_52 = arith.constant 0.000000e+00 : f32
    %367 = vector.broadcast %cst_52 : f32 to vector<2x128xf32>
    %cst_53 = arith.constant 0.000000e+00 : f32
    %368 = vector.broadcast %cst_53 : f32 to vector<2x128xf32>
    %cst_54 = arith.constant 0.000000e+00 : f32
    %369 = vector.broadcast %cst_54 : f32 to vector<2x128xf32>
    %370 = arith.truncf %367 : vector<2x128xf32> to vector<2x128xbf16>
    %cst_55 = arith.constant dense<0.000000e+00> : vector<2x512xf32>
    %371 = tpu.matmul %370, %366, %cst_55 {dimension_numbers = #tpu.dot_dimension_numbers<[1], [0], [0], [1], [0, 0, 1, 1], [], []>} : vector<2x128xbf16>, vector<128x512xbf16>, vector<2x512xf32> -> vector<2x512xf32>
    %372 = arith.addf %330, %371 : vector<2x512xf32>
    %373 = vector.extract_strided_slice %372 {offsets = [0, 0], sizes = [2, 128], strides = [1, 1]} : vector<2x512xf32> to vector<2x128xf32>
    %374 = arith.negf %373 : vector<2x128xf32>
    %375 = math.exp %374 : vector<2x128xf32>
    %cst_56 = arith.constant 1.000000e+00 : f32
    %376 = vector.broadcast %cst_56 : f32 to vector<2x128xf32>
    %377 = arith.addf %376, %375 : vector<2x128xf32>
    %378 = arith.divf %376, %377 : vector<2x128xf32>
    %379 = vector.extract_strided_slice %372 {offsets = [0, 128], sizes = [2, 128], strides = [1, 1]} : vector<2x512xf32> to vector<2x128xf32>
    %380 = arith.negf %379 : vector<2x128xf32>
    %381 = math.exp %380 : vector<2x128xf32>
    %cst_57 = arith.constant 1.000000e+00 : f32
    %382 = vector.broadcast %cst_57 : f32 to vector<2x128xf32>
    %383 = arith.addf %382, %381 : vector<2x128xf32>
    %384 = arith.divf %382, %383 : vector<2x128xf32>
    %385 = vector.extract_strided_slice %372 {offsets = [0, 256], sizes = [2, 128], strides = [1, 1]} : vector<2x512xf32> to vector<2x128xf32>
    %386 = math.tanh %385 : vector<2x128xf32>
    %387 = vector.extract_strided_slice %372 {offsets = [0, 384], sizes = [2, 128], strides = [1, 1]} : vector<2x512xf32> to vector<2x128xf32>
    %388 = arith.negf %387 : vector<2x128xf32>
    %389 = math.exp %388 : vector<2x128xf32>
    %cst_58 = arith.constant 1.000000e+00 : f32
    %390 = vector.broadcast %cst_58 : f32 to vector<2x128xf32>
    %391 = arith.addf %390, %389 : vector<2x128xf32>
    %392 = arith.divf %390, %391 : vector<2x128xf32>
    %393 = arith.mulf %384, %368 : vector<2x128xf32>
    %394 = arith.mulf %378, %386 : vector<2x128xf32>
    %395 = arith.addf %393, %394 : vector<2x128xf32>
    %396 = math.tanh %395 : vector<2x128xf32>
    %397 = arith.mulf %392, %396 : vector<2x128xf32>
    %398 = arith.maximumf %369, %397 : vector<2x128xf32>
    %399 = arith.truncf %397 : vector<2x128xf32> to vector<2x128xbf16>
    %cst_59 = arith.constant dense<0.000000e+00> : vector<2x512xf32>
    %400 = tpu.matmul %399, %366, %cst_59 {dimension_numbers = #tpu.dot_dimension_numbers<[1], [0], [0], [1], [0, 0, 1, 1], [], []>} : vector<2x128xbf16>, vector<128x512xbf16>, vector<2x512xf32> -> vector<2x512xf32>
    %401 = arith.addf %335, %400 : vector<2x512xf32>
    %402 = vector.extract_strided_slice %401 {offsets = [0, 0], sizes = [2, 128], strides = [1, 1]} : vector<2x512xf32> to vector<2x128xf32>
    %403 = arith.negf %402 : vector<2x128xf32>
    %404 = math.exp %403 : vector<2x128xf32>
    %cst_60 = arith.constant 1.000000e+00 : f32
    %405 = vector.broadcast %cst_60 : f32 to vector<2x128xf32>
    %406 = arith.addf %405, %404 : vector<2x128xf32>
    %407 = arith.divf %405, %406 : vector<2x128xf32>
    %408 = vector.extract_strided_slice %401 {offsets = [0, 128], sizes = [2, 128], strides = [1, 1]} : vector<2x512xf32> to vector<2x128xf32>
    %409 = arith.negf %408 : vector<2x128xf32>
    %410 = math.exp %409 : vector<2x128xf32>
    %cst_61 = arith.constant 1.000000e+00 : f32
    %411 = vector.broadcast %cst_61 : f32 to vector<2x128xf32>
    %412 = arith.addf %411, %410 : vector<2x128xf32>
    %413 = arith.divf %411, %412 : vector<2x128xf32>
    %414 = vector.extract_strided_slice %401 {offsets = [0, 256], sizes = [2, 128], strides = [1, 1]} : vector<2x512xf32> to vector<2x128xf32>
    %415 = math.tanh %414 : vector<2x128xf32>
    %416 = vector.extract_strided_slice %401 {offsets = [0, 384], sizes = [2, 128], strides = [1, 1]} : vector<2x512xf32> to vector<2x128xf32>
    %417 = arith.negf %416 : vector<2x128xf32>
    %418 = math.exp %417 : vector<2x128xf32>
    %cst_62 = arith.constant 1.000000e+00 : f32
    %419 = vector.broadcast %cst_62 : f32 to vector<2x128xf32>
    %420 = arith.addf %419, %418 : vector<2x128xf32>
    %421 = arith.divf %419, %420 : vector<2x128xf32>
    %422 = arith.mulf %413, %395 : vector<2x128xf32>
    %423 = arith.mulf %407, %415 : vector<2x128xf32>
    %424 = arith.addf %422, %423 : vector<2x128xf32>
    %425 = math.tanh %424 : vector<2x128xf32>
    %426 = arith.mulf %421, %425 : vector<2x128xf32>
    %427 = arith.maximumf %398, %426 : vector<2x128xf32>
    %428 = arith.truncf %426 : vector<2x128xf32> to vector<2x128xbf16>
    %cst_63 = arith.constant dense<0.000000e+00> : vector<2x512xf32>
    %429 = tpu.matmul %428, %366, %cst_63 {dimension_numbers = #tpu.dot_dimension_numbers<[1], [0], [0], [1], [0, 0, 1, 1], [], []>} : vector<2x128xbf16>, vector<128x512xbf16>, vector<2x512xf32> -> vector<2x512xf32>
    %430 = arith.addf %340, %429 : vector<2x512xf32>
    %431 = vector.extract_strided_slice %430 {offsets = [0, 0], sizes = [2, 128], strides = [1, 1]} : vector<2x512xf32> to vector<2x128xf32>
    %432 = arith.negf %431 : vector<2x128xf32>
    %433 = math.exp %432 : vector<2x128xf32>
    %cst_64 = arith.constant 1.000000e+00 : f32
    %434 = vector.broadcast %cst_64 : f32 to vector<2x128xf32>
    %435 = arith.addf %434, %433 : vector<2x128xf32>
    %436 = arith.divf %434, %435 : vector<2x128xf32>
    %437 = vector.extract_strided_slice %430 {offsets = [0, 128], sizes = [2, 128], strides = [1, 1]} : vector<2x512xf32> to vector<2x128xf32>
    %438 = arith.negf %437 : vector<2x128xf32>
    %439 = math.exp %438 : vector<2x128xf32>
    %cst_65 = arith.constant 1.000000e+00 : f32
    %440 = vector.broadcast %cst_65 : f32 to vector<2x128xf32>
    %441 = arith.addf %440, %439 : vector<2x128xf32>
    %442 = arith.divf %440, %441 : vector<2x128xf32>
    %443 = vector.extract_strided_slice %430 {offsets = [0, 256], sizes = [2, 128], strides = [1, 1]} : vector<2x512xf32> to vector<2x128xf32>
    %444 = math.tanh %443 : vector<2x128xf32>
    %445 = vector.extract_strided_slice %430 {offsets = [0, 384], sizes = [2, 128], strides = [1, 1]} : vector<2x512xf32> to vector<2x128xf32>
    %446 = arith.negf %445 : vector<2x128xf32>
    %447 = math.exp %446 : vector<2x128xf32>
    %cst_66 = arith.constant 1.000000e+00 : f32
    %448 = vector.broadcast %cst_66 : f32 to vector<2x128xf32>
    %449 = arith.addf %448, %447 : vector<2x128xf32>
    %450 = arith.divf %448, %449 : vector<2x128xf32>
    %451 = arith.mulf %442, %424 : vector<2x128xf32>
    %452 = arith.mulf %436, %444 : vector<2x128xf32>
    %453 = arith.addf %451, %452 : vector<2x128xf32>
    %454 = math.tanh %453 : vector<2x128xf32>
    %455 = arith.mulf %450, %454 : vector<2x128xf32>
    %456 = arith.maximumf %427, %455 : vector<2x128xf32>
    %457 = arith.truncf %455 : vector<2x128xf32> to vector<2x128xbf16>
    %cst_67 = arith.constant dense<0.000000e+00> : vector<2x512xf32>
    %458 = tpu.matmul %457, %366, %cst_67 {dimension_numbers = #tpu.dot_dimension_numbers<[1], [0], [0], [1], [0, 0, 1, 1], [], []>} : vector<2x128xbf16>, vector<128x512xbf16>, vector<2x512xf32> -> vector<2x512xf32>
    %459 = arith.addf %345, %458 : vector<2x512xf32>
    %460 = vector.extract_strided_slice %459 {offsets = [0, 0], sizes = [2, 128], strides = [1, 1]} : vector<2x512xf32> to vector<2x128xf32>
    %461 = arith.negf %460 : vector<2x128xf32>
    %462 = math.exp %461 : vector<2x128xf32>
    %cst_68 = arith.constant 1.000000e+00 : f32
    %463 = vector.broadcast %cst_68 : f32 to vector<2x128xf32>
    %464 = arith.addf %463, %462 : vector<2x128xf32>
    %465 = arith.divf %463, %464 : vector<2x128xf32>
    %466 = vector.extract_strided_slice %459 {offsets = [0, 128], sizes = [2, 128], strides = [1, 1]} : vector<2x512xf32> to vector<2x128xf32>
    %467 = arith.negf %466 : vector<2x128xf32>
    %468 = math.exp %467 : vector<2x128xf32>
    %cst_69 = arith.constant 1.000000e+00 : f32
    %469 = vector.broadcast %cst_69 : f32 to vector<2x128xf32>
    %470 = arith.addf %469, %468 : vector<2x128xf32>
    %471 = arith.divf %469, %470 : vector<2x128xf32>
    %472 = vector.extract_strided_slice %459 {offsets = [0, 256], sizes = [2, 128], strides = [1, 1]} : vector<2x512xf32> to vector<2x128xf32>
    %473 = math.tanh %472 : vector<2x128xf32>
    %474 = vector.extract_strided_slice %459 {offsets = [0, 384], sizes = [2, 128], strides = [1, 1]} : vector<2x512xf32> to vector<2x128xf32>
    %475 = arith.negf %474 : vector<2x128xf32>
    %476 = math.exp %475 : vector<2x128xf32>
    %cst_70 = arith.constant 1.000000e+00 : f32
    %477 = vector.broadcast %cst_70 : f32 to vector<2x128xf32>
    %478 = arith.addf %477, %476 : vector<2x128xf32>
    %479 = arith.divf %477, %478 : vector<2x128xf32>
    %480 = arith.mulf %471, %453 : vector<2x128xf32>
    %481 = arith.mulf %465, %473 : vector<2x128xf32>
    %482 = arith.addf %480, %481 : vector<2x128xf32>
    %483 = math.tanh %482 : vector<2x128xf32>
    %484 = arith.mulf %479, %483 : vector<2x128xf32>
    %485 = arith.maximumf %456, %484 : vector<2x128xf32>
    %486 = arith.truncf %484 : vector<2x128xf32> to vector<2x128xbf16>
    %cst_71 = arith.constant dense<0.000000e+00> : vector<2x512xf32>
    %487 = tpu.matmul %486, %366, %cst_71 {dimension_numbers = #tpu.dot_dimension_numbers<[1], [0], [0], [1], [0, 0, 1, 1], [], []>} : vector<2x128xbf16>, vector<128x512xbf16>, vector<2x512xf32> -> vector<2x512xf32>
    %488 = arith.addf %350, %487 : vector<2x512xf32>
    %489 = vector.extract_strided_slice %488 {offsets = [0, 0], sizes = [2, 128], strides = [1, 1]} : vector<2x512xf32> to vector<2x128xf32>
    %490 = arith.negf %489 : vector<2x128xf32>
    %491 = math.exp %490 : vector<2x128xf32>
    %cst_72 = arith.constant 1.000000e+00 : f32
    %492 = vector.broadcast %cst_72 : f32 to vector<2x128xf32>
    %493 = arith.addf %492, %491 : vector<2x128xf32>
    %494 = arith.divf %492, %493 : vector<2x128xf32>
    %495 = vector.extract_strided_slice %488 {offsets = [0, 128], sizes = [2, 128], strides = [1, 1]} : vector<2x512xf32> to vector<2x128xf32>
    %496 = arith.negf %495 : vector<2x128xf32>
    %497 = math.exp %496 : vector<2x128xf32>
    %cst_73 = arith.constant 1.000000e+00 : f32
    %498 = vector.broadcast %cst_73 : f32 to vector<2x128xf32>
    %499 = arith.addf %498, %497 : vector<2x128xf32>
    %500 = arith.divf %498, %499 : vector<2x128xf32>
    %501 = vector.extract_strided_slice %488 {offsets = [0, 256], sizes = [2, 128], strides = [1, 1]} : vector<2x512xf32> to vector<2x128xf32>
    %502 = math.tanh %501 : vector<2x128xf32>
    %503 = vector.extract_strided_slice %488 {offsets = [0, 384], sizes = [2, 128], strides = [1, 1]} : vector<2x512xf32> to vector<2x128xf32>
    %504 = arith.negf %503 : vector<2x128xf32>
    %505 = math.exp %504 : vector<2x128xf32>
    %cst_74 = arith.constant 1.000000e+00 : f32
    %506 = vector.broadcast %cst_74 : f32 to vector<2x128xf32>
    %507 = arith.addf %506, %505 : vector<2x128xf32>
    %508 = arith.divf %506, %507 : vector<2x128xf32>
    %509 = arith.mulf %500, %482 : vector<2x128xf32>
    %510 = arith.mulf %494, %502 : vector<2x128xf32>
    %511 = arith.addf %509, %510 : vector<2x128xf32>
    %512 = math.tanh %511 : vector<2x128xf32>
    %513 = arith.mulf %508, %512 : vector<2x128xf32>
    %514 = arith.maximumf %485, %513 : vector<2x128xf32>
    %515 = arith.truncf %513 : vector<2x128xf32> to vector<2x128xbf16>
    %cst_75 = arith.constant dense<0.000000e+00> : vector<2x512xf32>
    %516 = tpu.matmul %515, %366, %cst_75 {dimension_numbers = #tpu.dot_dimension_numbers<[1], [0], [0], [1], [0, 0, 1, 1], [], []>} : vector<2x128xbf16>, vector<128x512xbf16>, vector<2x512xf32> -> vector<2x512xf32>
    %517 = arith.addf %355, %516 : vector<2x512xf32>
    %518 = vector.extract_strided_slice %517 {offsets = [0, 0], sizes = [2, 128], strides = [1, 1]} : vector<2x512xf32> to vector<2x128xf32>
    %519 = arith.negf %518 : vector<2x128xf32>
    %520 = math.exp %519 : vector<2x128xf32>
    %cst_76 = arith.constant 1.000000e+00 : f32
    %521 = vector.broadcast %cst_76 : f32 to vector<2x128xf32>
    %522 = arith.addf %521, %520 : vector<2x128xf32>
    %523 = arith.divf %521, %522 : vector<2x128xf32>
    %524 = vector.extract_strided_slice %517 {offsets = [0, 128], sizes = [2, 128], strides = [1, 1]} : vector<2x512xf32> to vector<2x128xf32>
    %525 = arith.negf %524 : vector<2x128xf32>
    %526 = math.exp %525 : vector<2x128xf32>
    %cst_77 = arith.constant 1.000000e+00 : f32
    %527 = vector.broadcast %cst_77 : f32 to vector<2x128xf32>
    %528 = arith.addf %527, %526 : vector<2x128xf32>
    %529 = arith.divf %527, %528 : vector<2x128xf32>
    %530 = vector.extract_strided_slice %517 {offsets = [0, 256], sizes = [2, 128], strides = [1, 1]} : vector<2x512xf32> to vector<2x128xf32>
    %531 = math.tanh %530 : vector<2x128xf32>
    %532 = vector.extract_strided_slice %517 {offsets = [0, 384], sizes = [2, 128], strides = [1, 1]} : vector<2x512xf32> to vector<2x128xf32>
    %533 = arith.negf %532 : vector<2x128xf32>
    %534 = math.exp %533 : vector<2x128xf32>
    %cst_78 = arith.constant 1.000000e+00 : f32
    %535 = vector.broadcast %cst_78 : f32 to vector<2x128xf32>
    %536 = arith.addf %535, %534 : vector<2x128xf32>
    %537 = arith.divf %535, %536 : vector<2x128xf32>
    %538 = arith.mulf %529, %511 : vector<2x128xf32>
    %539 = arith.mulf %523, %531 : vector<2x128xf32>
    %540 = arith.addf %538, %539 : vector<2x128xf32>
    %541 = math.tanh %540 : vector<2x128xf32>
    %542 = arith.mulf %537, %541 : vector<2x128xf32>
    %543 = arith.maximumf %514, %542 : vector<2x128xf32>
    %544 = arith.truncf %542 : vector<2x128xf32> to vector<2x128xbf16>
    %cst_79 = arith.constant dense<0.000000e+00> : vector<2x512xf32>
    %545 = tpu.matmul %544, %366, %cst_79 {dimension_numbers = #tpu.dot_dimension_numbers<[1], [0], [0], [1], [0, 0, 1, 1], [], []>} : vector<2x128xbf16>, vector<128x512xbf16>, vector<2x512xf32> -> vector<2x512xf32>
    %546 = arith.addf %360, %545 : vector<2x512xf32>
    %547 = vector.extract_strided_slice %546 {offsets = [0, 0], sizes = [2, 128], strides = [1, 1]} : vector<2x512xf32> to vector<2x128xf32>
    %548 = arith.negf %547 : vector<2x128xf32>
    %549 = math.exp %548 : vector<2x128xf32>
    %cst_80 = arith.constant 1.000000e+00 : f32
    %550 = vector.broadcast %cst_80 : f32 to vector<2x128xf32>
    %551 = arith.addf %550, %549 : vector<2x128xf32>
    %552 = arith.divf %550, %551 : vector<2x128xf32>
    %553 = vector.extract_strided_slice %546 {offsets = [0, 128], sizes = [2, 128], strides = [1, 1]} : vector<2x512xf32> to vector<2x128xf32>
    %554 = arith.negf %553 : vector<2x128xf32>
    %555 = math.exp %554 : vector<2x128xf32>
    %cst_81 = arith.constant 1.000000e+00 : f32
    %556 = vector.broadcast %cst_81 : f32 to vector<2x128xf32>
    %557 = arith.addf %556, %555 : vector<2x128xf32>
    %558 = arith.divf %556, %557 : vector<2x128xf32>
    %559 = vector.extract_strided_slice %546 {offsets = [0, 256], sizes = [2, 128], strides = [1, 1]} : vector<2x512xf32> to vector<2x128xf32>
    %560 = math.tanh %559 : vector<2x128xf32>
    %561 = vector.extract_strided_slice %546 {offsets = [0, 384], sizes = [2, 128], strides = [1, 1]} : vector<2x512xf32> to vector<2x128xf32>
    %562 = arith.negf %561 : vector<2x128xf32>
    %563 = math.exp %562 : vector<2x128xf32>
    %cst_82 = arith.constant 1.000000e+00 : f32
    %564 = vector.broadcast %cst_82 : f32 to vector<2x128xf32>
    %565 = arith.addf %564, %563 : vector<2x128xf32>
    %566 = arith.divf %564, %565 : vector<2x128xf32>
    %567 = arith.mulf %558, %540 : vector<2x128xf32>
    %568 = arith.mulf %552, %560 : vector<2x128xf32>
    %569 = arith.addf %567, %568 : vector<2x128xf32>
    %570 = math.tanh %569 : vector<2x128xf32>
    %571 = arith.mulf %566, %570 : vector<2x128xf32>
    %572 = arith.maximumf %543, %571 : vector<2x128xf32>
    %573 = arith.truncf %571 : vector<2x128xf32> to vector<2x128xbf16>
    %cst_83 = arith.constant dense<0.000000e+00> : vector<2x512xf32>
    %574 = tpu.matmul %573, %366, %cst_83 {dimension_numbers = #tpu.dot_dimension_numbers<[1], [0], [0], [1], [0, 0, 1, 1], [], []>} : vector<2x128xbf16>, vector<128x512xbf16>, vector<2x512xf32> -> vector<2x512xf32>
    %575 = arith.addf %365, %574 : vector<2x512xf32>
    %576 = vector.extract_strided_slice %575 {offsets = [0, 0], sizes = [2, 128], strides = [1, 1]} : vector<2x512xf32> to vector<2x128xf32>
    %577 = arith.negf %576 : vector<2x128xf32>
    %578 = math.exp %577 : vector<2x128xf32>
    %cst_84 = arith.constant 1.000000e+00 : f32
    %579 = vector.broadcast %cst_84 : f32 to vector<2x128xf32>
    %580 = arith.addf %579, %578 : vector<2x128xf32>
    %581 = arith.divf %579, %580 : vector<2x128xf32>
    %582 = vector.extract_strided_slice %575 {offsets = [0, 128], sizes = [2, 128], strides = [1, 1]} : vector<2x512xf32> to vector<2x128xf32>
    %583 = arith.negf %582 : vector<2x128xf32>
    %584 = math.exp %583 : vector<2x128xf32>
    %cst_85 = arith.constant 1.000000e+00 : f32
    %585 = vector.broadcast %cst_85 : f32 to vector<2x128xf32>
    %586 = arith.addf %585, %584 : vector<2x128xf32>
    %587 = arith.divf %585, %586 : vector<2x128xf32>
    %588 = vector.extract_strided_slice %575 {offsets = [0, 256], sizes = [2, 128], strides = [1, 1]} : vector<2x512xf32> to vector<2x128xf32>
    %589 = math.tanh %588 : vector<2x128xf32>
    %590 = vector.extract_strided_slice %575 {offsets = [0, 384], sizes = [2, 128], strides = [1, 1]} : vector<2x512xf32> to vector<2x128xf32>
    %591 = arith.negf %590 : vector<2x128xf32>
    %592 = math.exp %591 : vector<2x128xf32>
    %cst_86 = arith.constant 1.000000e+00 : f32
    %593 = vector.broadcast %cst_86 : f32 to vector<2x128xf32>
    %594 = arith.addf %593, %592 : vector<2x128xf32>
    %595 = arith.divf %593, %594 : vector<2x128xf32>
    %596 = arith.mulf %587, %569 : vector<2x128xf32>
    %597 = arith.mulf %581, %589 : vector<2x128xf32>
    %598 = arith.addf %596, %597 : vector<2x128xf32>
    %599 = math.tanh %598 : vector<2x128xf32>
    %600 = arith.mulf %595, %599 : vector<2x128xf32>
    %601 = arith.maximumf %572, %600 : vector<2x128xf32>
    %602 = vector.extract_strided_slice %22 {offsets = [0, 0], sizes = [2, 768], strides = [1, 1]} : vector<16x768xbf16> to vector<2x768xbf16>
    %603 = vector.extract_strided_slice %22 {offsets = [2, 0], sizes = [2, 768], strides = [1, 1]} : vector<16x768xbf16> to vector<2x768xbf16>
    %604 = arith.maximumf %602, %603 : vector<2x768xbf16>
    %605 = vector.extract_strided_slice %22 {offsets = [4, 0], sizes = [2, 768], strides = [1, 1]} : vector<16x768xbf16> to vector<2x768xbf16>
    %606 = arith.maximumf %604, %605 : vector<2x768xbf16>
    %607 = vector.extract_strided_slice %22 {offsets = [6, 0], sizes = [2, 768], strides = [1, 1]} : vector<16x768xbf16> to vector<2x768xbf16>
    %608 = arith.maximumf %606, %607 : vector<2x768xbf16>
    %609 = vector.extract_strided_slice %22 {offsets = [8, 0], sizes = [2, 768], strides = [1, 1]} : vector<16x768xbf16> to vector<2x768xbf16>
    %610 = arith.maximumf %608, %609 : vector<2x768xbf16>
    %611 = vector.extract_strided_slice %22 {offsets = [10, 0], sizes = [2, 768], strides = [1, 1]} : vector<16x768xbf16> to vector<2x768xbf16>
    %612 = arith.maximumf %610, %611 : vector<2x768xbf16>
    %613 = vector.extract_strided_slice %22 {offsets = [12, 0], sizes = [2, 768], strides = [1, 1]} : vector<16x768xbf16> to vector<2x768xbf16>
    %614 = arith.maximumf %612, %613 : vector<2x768xbf16>
    %615 = vector.extract_strided_slice %22 {offsets = [14, 0], sizes = [2, 768], strides = [1, 1]} : vector<16x768xbf16> to vector<2x768xbf16>
    %616 = arith.maximumf %614, %615 : vector<2x768xbf16>
    %cst_87 = arith.constant 0.000000e+00 : bf16
    %617 = vector.broadcast %cst_87 : bf16 to vector<2x768xbf16>
    %618 = arith.maximumf %616, %617 : vector<2x768xbf16>
    %c0_88 = arith.constant 0 : index
    %c0_89 = arith.constant 0 : index
    %619 = vector.load %arg7[%c0_88, %c0_89] : memref<768x128xbf16, #tpu.memory_space<vmem>>, vector<768x128xbf16>
    %cst_90 = arith.constant dense<0.000000e+00> : vector<2x128xf32>
    %620 = tpu.matmul %618, %619, %cst_90 {dimension_numbers = #tpu.dot_dimension_numbers<[1], [0], [0], [1], [0, 0, 1, 1], [], []>} : vector<2x768xbf16>, vector<768x128xbf16>, vector<2x128xf32> -> vector<2x128xf32>
    %621 = arith.truncf %601 : vector<2x128xf32> to vector<2x128xbf16>
    %c0_91 = arith.constant 0 : index
    %c0_92 = arith.constant 0 : index
    %622 = vector.load %arg8[%c0_91, %c0_92] : memref<128x128xbf16, #tpu.memory_space<vmem>>, vector<128x128xbf16>
    %cst_93 = arith.constant dense<0.000000e+00> : vector<2x128xf32>
    %623 = tpu.matmul %621, %622, %cst_93 {dimension_numbers = #tpu.dot_dimension_numbers<[1], [0], [0], [1], [0, 0, 1, 1], [], []>} : vector<2x128xbf16>, vector<128x128xbf16>, vector<2x128xf32> -> vector<2x128xf32>
    %624 = arith.addf %620, %623 : vector<2x128xf32>
    %c0_94 = arith.constant 0 : index
    %c0_95 = arith.constant 0 : index
    %625 = vector.load %arg9[%c0_94, %c0_95] : memref<1x128xf32, #tpu.memory_space<vmem>>, vector<1x128xf32>
    %626 = vector.broadcast %625 : vector<1x128xf32> to vector<2x128xf32>
    %627 = arith.addf %624, %626 : vector<2x128xf32>
    %c0_96 = arith.constant 0 : index
    %c0_97 = arith.constant 0 : index
    %628 = vector.load %arg10[%c0_96, %c0_97] : memref<2x128xf32, #tpu.memory_space<vmem>>, vector<2x128xf32>
    tpu.vector_store %arg10[%c0_96, %c0_97], %627 {strides = array<i32>} : memref<2x128xf32, #tpu.memory_space<vmem>>, vector<2x128xf32>,
    return
  }
}

</mosaic_0001>

<llo_original>
// kernel: forward.1
$region0: #{forward.1}
  #allocation0 [shape = 'u32[]', space=smem, size = 0x4, offset = 0x4, fixed_abs, tag = 'smem constant byte address 0x4 - core index']
  #allocation1 [shape = 'u32[72,128]{1,0:T(1,128)}', space=vmem, size = 0x9000, scoped, tag = 'internal scratch']
  %s0 = inlined_call_operand.vmem [shape: bf16[16,768], index: 0, kind: input, shape index: {}]
  %s1 = inlined_call_operand.hbm [shape: bf16[768,512], index: 1, kind: input, shape index: {}]
  %s2 = inlined_call_operand.vmem [shape: bf16[128,512], index: 2, kind: input, shape index: {}]
  %s3 = inlined_call_operand.vmem [shape: f32[1,512], index: 3, kind: input, shape index: {}]
  %s4 = inlined_call_operand.hbm [shape: bf16[128,512], index: 4, kind: input, shape index: {}]
  %s5 = inlined_call_operand.hbm [shape: bf16[128,512], index: 5, kind: input, shape index: {}]
  %s6 = inlined_call_operand.hbm [shape: f32[1,512], index: 6, kind: input, shape index: {}]
  %s7 = inlined_call_operand.vmem [shape: bf16[768,128], index: 7, kind: input, shape index: {}]
  %s8 = inlined_call_operand.hbm [shape: bf16[128,128], index: 8, kind: input, shape index: {}]
  %s9 = inlined_call_operand.vmem [shape: f32[1,128], index: 9, kind: input, shape index: {}]
  %s10 = inlined_call_operand.hbm [shape: f32[2,128], index: 10, kind: output, shape index: {}]
  %s11 = sld [smem:[#allocation0]]
  $region70: #{forward.1} parent=0
    _
  %s13 = ssub.s32 1, %s11
  %s14 = scalar_select 0, %s13, %s11
  $region1: #{forward.1} parent=0
    #allocation2 [shape = 'u8[786432]{0}', space=vmem, size = 0xc0000, scoped, tag = 'input window, operand 1, single buffered']
    #allocation3 [shape = 's32[1]{0}', space=sflag, size = 0x4, scoped, tag = 'scoped memory for forward.1']
    #allocation4 [shape = 's32[1]{0}', space=sflag, size = 0x4, scoped, tag = 'scoped memory for forward.1']
    #allocation5 [shape = 'u8[131072]{0}', space=vmem, size = 0x20000, scoped, tag = 'input window, operand 4, single buffered']
    #allocation6 [shape = 's32[1]{0}', space=sflag, size = 0x4, scoped, tag = 'scoped memory for forward.1']
    #allocation7 [shape = 'u8[131072]{0}', space=vmem, size = 0x20000, scoped, tag = 'input window, operand 5, single buffered']
    #allocation8 [shape = 'u8[2048]{0}', space=vmem, size = 0x800, scoped, tag = 'input window, operand 6, single buffered']
    #allocation9 [shape = 's32[1]{0}', space=sflag, size = 0x4, scoped, tag = 'scoped memory for forward.1']
    #allocation10 [shape = 'u8[32768]{0}', space=vmem, size = 0x8000, scoped, tag = 'input window, operand 8, single buffered']
    #allocation11 [shape = 'u8[1024]{0}', space=vmem, size = 0x400, scoped, tag = 'output window, operand 0, single buffered']
    %15 = vsyncpa [#allocation3], 0
    %16 = vsyncpa [#allocation6], 0
    %17 = vsyncpa [#allocation9], 0
    %18 = vsyncpa [#allocation4], 0
    // Predicated region
    $region2: #{forward.1} parent=1 // pred_check
      _
    $region3: #{forward.1} parent=1 // pred_check_branch
      %20 = sbr.rel (0) target = $region5
    $region4: #{forward.1} parent=1 // pred_region
      _
    $region5: #{forward.1} parent=1 // pred_fallthru
      _
    // Predicated region
    $region6: #{forward.1} parent=1 // pred_check
      _
    $region7: #{forward.1} parent=1 // pred_check_branch
      %22 = sbr.rel (0) target = $region9
    $region8: #{forward.1} parent=1 // pred_region
      %24 = vsyncadd [#allocation3], 0
      %s25 = sshll.u32 %s1, 4
      %s26 = int_to_ptr.hbm [resolvable:$true] %s25
      %s27 = sshll.u32 [#allocation2], 4
      %s28 = int_to_ptr.vmem [resolvable:$true] %s27
      %33 = dma.hbm_to_vmem [thread:$0]  %s26, 24576, %s28, [#allocation3], 256, 256, 16
    $region9: #{forward.1} parent=1 // pred_fallthru
      _
    // Predicated region
    $region10: #{forward.1} parent=1 // pred_check
      _
    $region11: #{forward.1} parent=1 // pred_check_branch
      %35 = sbr.rel (0) target = $region13
    $region12: #{forward.1} parent=1 // pred_region
      _
    $region13: #{forward.1} parent=1 // pred_fallthru
      _
    // Predicated region
    $region14: #{forward.1} parent=1 // pred_check
      _
    $region15: #{forward.1} parent=1 // pred_check_branch
      %37 = sbr.rel (0) target = $region17
    $region16: #{forward.1} parent=1 // pred_region
      _
    $region17: #{forward.1} parent=1 // pred_fallthru
      _
    // Predicated region
    $region18: #{forward.1} parent=1 // pred_check
      _
    $region19: #{forward.1} parent=1 // pred_check_branch
      %39 = sbr.rel (0) target = $region21
    $region20: #{forward.1} parent=1 // pred_region
      %41 = vsyncadd [#allocation6], 0
      %s42 = sshll.u32 %s4, 4
      %s43 = int_to_ptr.hbm [resolvable:$true] %s42
      %s44 = sshll.u32 [#allocation5], 4
      %s45 = int_to_ptr.vmem [resolvable:$true] %s44
      %50 = dma.hbm_to_vmem [thread:$0]  %s43, 4096, %s45, [#allocation6], 256, 256, 16
    $region21: #{forward.1} parent=1 // pred_fallthru
      _
    // Predicated region
    $region22: #{forward.1} parent=1 // pred_check
      _
    $region23: #{forward.1} parent=1 // pred_check_branch
      %52 = sbr.rel (0) target = $region25
    $region24: #{forward.1} parent=1 // pred_region
      %54 = vsyncadd [#allocation6], 0
      %s55 = sshll.u32 %s5, 4
      %s56 = int_to_ptr.hbm [resolvable:$true] %s55
      %s57 = sshll.u32 [#allocation7], 4
      %s58 = int_to_ptr.vmem [resolvable:$true] %s57
      %63 = dma.hbm_to_vmem [thread:$0]  %s56, 4096, %s58, [#allocation6], 256, 256, 16
    $region25: #{forward.1} parent=1 // pred_fallthru
      _
    // Predicated region
    $region26: #{forward.1} parent=1 // pred_check
      _
    $region27: #{forward.1} parent=1 // pred_check_branch
      %65 = sbr.rel (0) target = $region29
    $region28: #{forward.1} parent=1 // pred_region
      %67 = vsyncadd [#allocation9], 0
      %s69 = sshll.u32 %s6, 4
      %s70 = int_to_ptr.hbm [resolvable:$true] %s69
      %s71 = sshll.u32 [#allocation8], 4
      %s72 = int_to_ptr.vmem [resolvable:$true] %s71
      %74 = dma.hbm_to_vmem [thread:$0]  %s70, 64, %s72, [#allocation9]
    $region29: #{forward.1} parent=1 // pred_fallthru
      _
    // Predicated region
    $region30: #{forward.1} parent=1 // pred_check
      _
    $region31: #{forward.1} parent=1 // pred_check_branch
      %76 = sbr.rel (0) target = $region33
    $region32: #{forward.1} parent=1 // pred_region
      _
    $region33: #{forward.1} parent=1 // pred_fallthru
      _
    // Predicated region
    $region34: #{forward.1} parent=1 // pred_check
      _
    $region35: #{forward.1} parent=1 // pred_check_branch
      %78 = sbr.rel (0) target = $region37
    $region36: #{forward.1} parent=1 // pred_region
      %80 = vsyncadd [#allocation9], 0
      %s81 = sshll.u32 %s8, 4
      %s82 = int_to_ptr.hbm [resolvable:$true] %s81
      %s83 = sshll.u32 [#allocation10], 4
      %s84 = int_to_ptr.vmem [resolvable:$true] %s83
      %89 = dma.hbm_to_vmem [thread:$0]  %s82, 1024, %s84, [#allocation9], 64, 64, 4
    $region37: #{forward.1} parent=1 // pred_fallthru
      _
    // Predicated region
    $region38: #{forward.1} parent=1 // pred_check
      _
    $region39: #{forward.1} parent=1 // pred_check_branch
      %91 = sbr.rel (0) target = $region41
    $region40: #{forward.1} parent=1 // pred_region
      _
    $region41: #{forward.1} parent=1 // pred_fallthru
      _
    // Predicated region
    $region42: #{forward.1} parent=1 // pred_check
      _
    $region43: #{forward.1} parent=1 // pred_check_branch
      %93 = sbr.rel (0) target = $region45
    $region44: #{forward.1} parent=1 // pred_region
      %95 = dma.done [#allocation3], 24576
    $region45: #{forward.1} parent=1 // pred_fallthru
      _
    // Predicated region
    $region46: #{forward.1} parent=1 // pred_check
      _
    $region47: #{forward.1} parent=1 // pred_check_branch
      %97 = sbr.rel (0) target = $region49
    $region48: #{forward.1} parent=1 // pred_region
      %99 = dma.done [#allocation6], 4096
    $region49: #{forward.1} parent=1 // pred_fallthru
      _
    // Predicated region
    $region50: #{forward.1} parent=1 // pred_check
      _
    $region51: #{forward.1} parent=1 // pred_check_branch
      %101 = sbr.rel (0) target = $region53
    $region52: #{forward.1} parent=1 // pred_region
      %103 = dma.done [#allocation6], 4096
    $region53: #{forward.1} parent=1 // pred_fallthru
      _
    // Predicated region
    $region54: #{forward.1} parent=1 // pred_check
      _
    $region55: #{forward.1} parent=1 // pred_check_branch
      %105 = sbr.rel (0) target = $region57
    $region56: #{forward.1} parent=1 // pred_region
      %107 = dma.done [#allocation9], 64
    $region57: #{forward.1} parent=1 // pred_fallthru
      _
    // Predicated region
    $region58: #{forward.1} parent=1 // pred_check
      _
    $region59: #{forward.1} parent=1 // pred_check_branch
      %109 = sbr.rel (0) target = $region61
    $region60: #{forward.1} parent=1 // pred_region
      %111 = dma.done [#allocation9], 1024
    $region61: #{forward.1} parent=1 // pred_fallthru
      _
    %v113 = vlaneseq
    %v114 = vand.u32 %v113, 127
    %v115 = vadd.s32 %v114, 128
    %v116 = vadd.s32 %v114, 256
    %v117 = vadd.s32 %v114, 384
    %vm118 = vcmp.lt.s32.totalorder %v114, 0
    %v119 = vsub.s32 0, %v114
    %v120 = vsel %vm118, %v119, %v114
    %v121 = vshrl.u32 %v120, 7
    %v122 = vand.u32 %v120, 127
    %v123 = vsub.s32 0, %v122
    %v124 = vsel %vm118, %v123, %v122
    %vm125 = vcmp.lt.s32.totalorder %v115, 0
    %v126 = vsub.s32 0, %v115
    %v127 = vsel %vm125, %v126, %v115
    %v128 = vshrl.u32 %v127, 7
    %v129 = vand.u32 %v127, 127
    %v130 = vsub.s32 0, %v129
    %v131 = vsel %vm125, %v130, %v129
    %vm132 = vcmp.lt.s32.totalorder %v116, 0
    %v133 = vsub.s32 0, %v116
    %v134 = vsel %vm132, %v133, %v116
    %v135 = vshrl.u32 %v134, 7
    %v136 = vand.u32 %v134, 127
    %v137 = vsub.s32 0, %v136
    %v138 = vsel %vm132, %v137, %v136
    %vm139 = vcmp.lt.s32.totalorder %v117, 0
    %v140 = vsub.s32 0, %v117
    %v141 = vsel %vm139, %v140, %v117
    %v142 = vshrl.u32 %v141, 7
    %v143 = vand.u32 %v141, 127
    %v144 = vsub.s32 0, %v143
    %v145 = vsel %vm139, %v144, %v143
    %vm146 = vcmp.ne.s32.totalorder %v124, 0
    %vm147 = vcmp.ne.s32.totalorder %v131, 0
    %vm148 = vcmp.ne.s32.totalorder %v138, 0
    %vm149 = vcmp.ne.s32.totalorder %v145, 0
    %vm150 = vcmp.lt.s32.totalorder %v124, 0
    %vm151 = vcmp.lt.s32.totalorder %v131, 0
    %vm152 = vcmp.lt.s32.totalorder %v138, 0
    %vm153 = vcmp.lt.s32.totalorder %v145, 0
    %vm154 = vmand %vm150, %vm146
    %vm155 = vmand %vm151, %vm147
    %vm156 = vmand %vm152, %vm148
    %vm157 = vmand %vm153, %vm149
    %v158 = vadd.s32 %v124, 128
    %v159 = vadd.s32 %v131, 128
    %v160 = vadd.s32 %v138, 128
    %v161 = vadd.s32 %v145, 128
    %v162 = vsel %vm154, %v158, %v124
    %v163 = vsel %vm155, %v159, %v131
    %v164 = vsel %vm156, %v160, %v138
    %v165 = vsel %vm157, %v161, %v145
    %vm166 = vcmp.lt.s32.totalorder %v162, 64
    %vm167 = vcmp.lt.s32.totalorder %v163, 64
    %vm168 = vcmp.lt.s32.totalorder %v164, 64
    %vm169 = vcmp.lt.s32.totalorder %v165, 64
    %vm170 = vcmp.lt.s32.totalorder %v114, 64
    %v171 = vld [vmem:[%s0] sm:$0xff]
    %v172 = vld [vmem:[%s0 + $0x8] sm:$0xff]
    %v173 = vld [vmem:[%s0 + $0x10] sm:$0xff]
    %v174 = vld [vmem:[%s0 + $0x18] sm:$0xff]
    %v175 = vld [vmem:[%s0 + $0x20] sm:$0xff]
    %v176 = vld [vmem:[%s0 + $0x28] sm:$0xff]
    %v177 = vld [vmem:[#allocation2] sm:$0xff]
    %v178 = vld [vmem:[#allocation2 + $0x8] sm:$0xff]
    %v179 = vld [vmem:[#allocation2 + $0x10] sm:$0xff]
    %v180 = vld [vmem:[#allocation2 + $0x18] sm:$0xff]
    %v181 = vld [vmem:[#allocation2 + $0x20] sm:$0xff]
    %v182 = vld [vmem:[#allocation2 + $0x28] sm:$0xff]
    %v183 = vld [vmem:[#allocation2 + $0x30] sm:$0xff]
    %v184 = vld [vmem:[#allocation2 + $0x38] sm:$0xff]
    %v185 = vld [vmem:[#allocation2 + $0x40] sm:$0xff]
    %v186 = vld [vmem:[#allocation2 + $0x48] sm:$0xff]
    %v187 = vld [vmem:[#allocation2 + $0x50] sm:$0xff]
    %v188 = vld [vmem:[#allocation2 + $0x58] sm:$0xff]
    %v189 = vld [vmem:[#allocation2 + $0x60] sm:$0xff]
    %v190 = vld [vmem:[#allocation2 + $0x68] sm:$0xff]
    %v191 = vld [vmem:[#allocation2 + $0x70] sm:$0xff]
    %v192 = vld [vmem:[#allocation2 + $0x78] sm:$0xff]
    %v193 = vld [vmem:[#allocation2 + $0x80] sm:$0xff]
    %v194 = vld [vmem:[#allocation2 + $0x88] sm:$0xff]
    %v195 = vld [vmem:[#allocation2 + $0x90] sm:$0xff]
    %v196 = vld [vmem:[#allocation2 + $0x98] sm:$0xff]
    %v197 = vld [vmem:[#allocation2 + $0xa0] sm:$0xff]
    %v198 = vld [vmem:[#allocation2 + $0xa8] sm:$0xff]
    %v199 = vld [vmem:[#allocation2 + $0xb0] sm:$0xff]
    %v200 = vld [vmem:[#allocation2 + $0xb8] sm:$0xff]
    %v201 = vld [vmem:[#allocation2 + $0xc0] sm:$0xff]
    %v202 = vld [vmem:[#allocation2 + $0xc8] sm:$0xff]
    %v203 = vld [vmem:[#allocation2 + $0xd0] sm:$0xff]
    %v204 = vld [vmem:[#allocation2 + $0xd8] sm:$0xff]
    %v205 = vld [vmem:[#allocation2 + $0xe0] sm:$0xff]
    %v206 = vld [vmem:[#allocation2 + $0xe8] sm:$0xff]
    %v207 = vld [vmem:[#allocation2 + $0xf0] sm:$0xff]
    %v208 = vld [vmem:[#allocation2 + $0xf8] sm:$0xff]
    %v209 = vld [vmem:[#allocation2 + $0x100] sm:$0xff]
    %v210 = vld [vmem:[#allocation2 + $0x108] sm:$0xff]
    %v211 = vld [vmem:[#allocation2 + $0x110] sm:$0xff]
    %v212 = vld [vmem:[#allocation2 + $0x118] sm:$0xff]
    %v213 = vld [vmem:[#allocation2 + $0x120] sm:$0xff]
    %v214 = vld [vmem:[#allocation2 + $0x128] sm:$0xff]
    %v215 = vld [vmem:[#allocation2 + $0x130] sm:$0xff]
    %v216 = vld [vmem:[#allocation2 + $0x138] sm:$0xff]
    %v217 = vld [vmem:[#allocation2 + $0x140] sm:$0xff]
    %v218 = vld [vmem:[#allocation2 + $0x148] sm:$0xff]
    %v219 = vld [vmem:[#allocation2 + $0x150] sm:$0xff]
    %v220 = vld [vmem:[#allocation2 + $0x158] sm:$0xff]
    %v221 = vld [vmem:[#allocation2 + $0x160] sm:$0xff]
    %v222 = vld [vmem:[#allocation2 + $0x168] sm:$0xff]
    %v223 = vld [vmem:[#allocation2 + $0x170] sm:$0xff]
    %v224 = vld [vmem:[#allocation2 + $0x178] sm:$0xff]
    %v225 = vld [vmem:[#allocation2 + $0x180] sm:$0xff]
    %v226 = vld [vmem:[#allocation2 + $0x188] sm:$0xff]
    %v227 = vld [vmem:[#allocation2 + $0x190] sm:$0xff]
    %v228 = vld [vmem:[#allocation2 + $0x198] sm:$0xff]
    %v229 = vld [vmem:[#allocation2 + $0x1a0] sm:$0xff]
    %v230 = vld [vmem:[#allocation2 + $0x1a8] sm:$0xff]
    %v231 = vld [vmem:[#allocation2 + $0x1b0] sm:$0xff]
    %v232 = vld [vmem:[#allocation2 + $0x1b8] sm:$0xff]
    %v233 = vld [vmem:[#allocation2 + $0x1c0] sm:$0xff]
    %v234 = vld [vmem:[#allocation2 + $0x1c8] sm:$0xff]
    %v235 = vld [vmem:[#allocation2 + $0x1d0] sm:$0xff]
    %v236 = vld [vmem:[#allocation2 + $0x1d8] sm:$0xff]
    %v237 = vld [vmem:[#allocation2 + $0x1e0] sm:$0xff]
    %v238 = vld [vmem:[#allocation2 + $0x1e8] sm:$0xff]
    %v239 = vld [vmem:[#allocation2 + $0x1f0] sm:$0xff]
    %v240 = vld [vmem:[#allocation2 + $0x1f8] sm:$0xff]
    %v241 = vld [vmem:[#allocation2 + $0x200] sm:$0xff]
    %v242 = vld [vmem:[#allocation2 + $0x208] sm:$0xff]
    %v243 = vld [vmem:[#allocation2 + $0x210] sm:$0xff]
    %v244 = vld [vmem:[#allocation2 + $0x218] sm:$0xff]
    %v245 = vld [vmem:[#allocation2 + $0x220] sm:$0xff]
    %v246 = vld [vmem:[#allocation2 + $0x228] sm:$0xff]
    %v247 = vld [vmem:[#allocation2 + $0x230] sm:$0xff]
    %v248 = vld [vmem:[#allocation2 + $0x238] sm:$0xff]
    %v249 = vld [vmem:[#allocation2 + $0x240] sm:$0xff]
    %v250 = vld [vmem:[#allocation2 + $0x248] sm:$0xff]
    %v251 = vld [vmem:[#allocation2 + $0x250] sm:$0xff]
    %v252 = vld [vmem:[#allocation2 + $0x258] sm:$0xff]
    %v253 = vld [vmem:[#allocation2 + $0x260] sm:$0xff]
    %v254 = vld [vmem:[#allocation2 + $0x268] sm:$0xff]
    %v255 = vld [vmem:[#allocation2 + $0x270] sm:$0xff]
    %v256 = vld [vmem:[#allocation2 + $0x278] sm:$0xff]
    %v257 = vld [vmem:[#allocation2 + $0x280] sm:$0xff]
    %v258 = vld [vmem:[#allocation2 + $0x288] sm:$0xff]
    %v259 = vld [vmem:[#allocation2 + $0x290] sm:$0xff]
    %v260 = vld [vmem:[#allocation2 + $0x298] sm:$0xff]
    %v261 = vld [vmem:[#allocation2 + $0x2a0] sm:$0xff]
    %v262 = vld [vmem:[#allocation2 + $0x2a8] sm:$0xff]
    %v263 = vld [vmem:[#allocation2 + $0x2b0] sm:$0xff]
    %v264 = vld [vmem:[#allocation2 + $0x2b8] sm:$0xff]
    %v265 = vld [vmem:[#allocation2 + $0x2c0] sm:$0xff]
    %v266 = vld [vmem:[#allocation2 + $0x2c8] sm:$0xff]
    %v267 = vld [vmem:[#allocation2 + $0x2d0] sm:$0xff]
    %v268 = vld [vmem:[#allocation2 + $0x2d8] sm:$0xff]
    %v269 = vld [vmem:[#allocation2 + $0x2e0] sm:$0xff]
    %v270 = vld [vmem:[#allocation2 + $0x2e8] sm:$0xff]
    %v271 = vld [vmem:[#allocation2 + $0x2f0] sm:$0xff]
    %v272 = vld [vmem:[#allocation2 + $0x2f8] sm:$0xff]
    %v273 = vld [vmem:[#allocation2 + $0x300] sm:$0xff]
    %v274 = vld [vmem:[#allocation2 + $0x308] sm:$0xff]
    %v275 = vld [vmem:[#allocation2 + $0x310] sm:$0xff]
    %v276 = vld [vmem:[#allocation2 + $0x318] sm:$0xff]
    %v277 = vld [vmem:[#allocation2 + $0x320] sm:$0xff]
    %v278 = vld [vmem:[#allocation2 + $0x328] sm:$0xff]
    %v279 = vld [vmem:[#allocation2 + $0x330] sm:$0xff]
    %v280 = vld [vmem:[#allocation2 + $0x338] sm:$0xff]
    %v281 = vld [vmem:[#allocation2 + $0x340] sm:$0xff]
    %v282 = vld [vmem:[#allocation2 + $0x348] sm:$0xff]
    %v283 = vld [vmem:[#allocation2 + $0x350] sm:$0xff]
    %v284 = vld [vmem:[#allocation2 + $0x358] sm:$0xff]
    %v285 = vld [vmem:[#allocation2 + $0x360] sm:$0xff]
    %v286 = vld [vmem:[#allocation2 + $0x368] sm:$0xff]
    %v287 = vld [vmem:[#allocation2 + $0x370] sm:$0xff]
    %v288 = vld [vmem:[#allocation2 + $0x378] sm:$0xff]
    %v289 = vld [vmem:[#allocation2 + $0x380] sm:$0xff]
    %v290 = vld [vmem:[#allocation2 + $0x388] sm:$0xff]
    %v291 = vld [vmem:[#allocation2 + $0x390] sm:$0xff]
    %v292 = vld [vmem:[#allocation2 + $0x398] sm:$0xff]
    %v293 = vld [vmem:[#allocation2 + $0x3a0] sm:$0xff]
    %v294 = vld [vmem:[#allocation2 + $0x3a8] sm:$0xff]
    %v295 = vld [vmem:[#allocation2 + $0x3b0] sm:$0xff]
    %v296 = vld [vmem:[#allocation2 + $0x3b8] sm:$0xff]
    %v297 = vld [vmem:[#allocation2 + $0x3c0] sm:$0xff]
    %v298 = vld [vmem:[#allocation2 + $0x3c8] sm:$0xff]
    %v299 = vld [vmem:[#allocation2 + $0x3d0] sm:$0xff]
    %v300 = vld [vmem:[#allocation2 + $0x3d8] sm:$0xff]
    %v301 = vld [vmem:[#allocation2 + $0x3e0] sm:$0xff]
    %v302 = vld [vmem:[#allocation2 + $0x3e8] sm:$0xff]
    %v303 = vld [vmem:[#allocation2 + $0x3f0] sm:$0xff]
    %v304 = vld [vmem:[#allocation2 + $0x3f8] sm:$0xff]
    %v305 = vld [vmem:[#allocation2 + $0x400] sm:$0xff]
    %v306 = vld [vmem:[#allocation2 + $0x408] sm:$0xff]
    %v307 = vld [vmem:[#allocation2 + $0x410] sm:$0xff]
    %v308 = vld [vmem:[#allocation2 + $0x418] sm:$0xff]
    %v309 = vld [vmem:[#allocation2 + $0x420] sm:$0xff]
    %v310 = vld [vmem:[#allocation2 + $0x428] sm:$0xff]
    %v311 = vld [vmem:[#allocation2 + $0x430] sm:$0xff]
    %v312 = vld [vmem:[#allocation2 + $0x438] sm:$0xff]
    %v313 = vld [vmem:[#allocation2 + $0x440] sm:$0xff]
    %v314 = vld [vmem:[#allocation2 + $0x448] sm:$0xff]
    %v315 = vld [vmem:[#allocation2 + $0x450] sm:$0xff]
    %v316 = vld [vmem:[#allocation2 + $0x458] sm:$0xff]
    %v317 = vld [vmem:[#allocation2 + $0x460] sm:$0xff]
    %v318 = vld [vmem:[#allocation2 + $0x468] sm:$0xff]
    %v319 = vld [vmem:[#allocation2 + $0x470] sm:$0xff]
    %v320 = vld [vmem:[#allocation2 + $0x478] sm:$0xff]
    %v321 = vld [vmem:[#allocation2 + $0x480] sm:$0xff]
    %v322 = vld [vmem:[#allocation2 + $0x488] sm:$0xff]
    %v323 = vld [vmem:[#allocation2 + $0x490] sm:$0xff]
    %v324 = vld [vmem:[#allocation2 + $0x498] sm:$0xff]
    %v325 = vld [vmem:[#allocation2 + $0x4a0] sm:$0xff]
    %v326 = vld [vmem:[#allocation2 + $0x4a8] sm:$0xff]
    %v327 = vld [vmem:[#allocation2 + $0x4b0] sm:$0xff]
    %v328 = vld [vmem:[#allocation2 + $0x4b8] sm:$0xff]
    %v329 = vld [vmem:[#allocation2 + $0x4c0] sm:$0xff]
    %v330 = vld [vmem:[#allocation2 + $0x4c8] sm:$0xff]
    %v331 = vld [vmem:[#allocation2 + $0x4d0] sm:$0xff]
    %v332 = vld [vmem:[#allocation2 + $0x4d8] sm:$0xff]
    %v333 = vld [vmem:[#allocation2 + $0x4e0] sm:$0xff]
    %v334 = vld [vmem:[#allocation2 + $0x4e8] sm:$0xff]
    %v335 = vld [vmem:[#allocation2 + $0x4f0] sm:$0xff]
    %v336 = vld [vmem:[#allocation2 + $0x4f8] sm:$0xff]
    %v337 = vld [vmem:[#allocation2 + $0x500] sm:$0xff]
    %v338 = vld [vmem:[#allocation2 + $0x508] sm:$0xff]
    %v339 = vld [vmem:[#allocation2 + $0x510] sm:$0xff]
    %v340 = vld [vmem:[#allocation2 + $0x518] sm:$0xff]
    %v341 = vld [vmem:[#allocation2 + $0x520] sm:$0xff]
    %v342 = vld [vmem:[#allocation2 + $0x528] sm:$0xff]
    %v343 = vld [vmem:[#allocation2 + $0x530] sm:$0xff]
    %v344 = vld [vmem:[#allocation2 + $0x538] sm:$0xff]
    %v345 = vld [vmem:[#allocation2 + $0x540] sm:$0xff]
    %v346 = vld [vmem:[#allocation2 + $0x548] sm:$0xff]
    %v347 = vld [vmem:[#allocation2 + $0x550] sm:$0xff]
    %v348 = vld [vmem:[#allocation2 + $0x558] sm:$0xff]
    %v349 = vld [vmem:[#allocation2 + $0x560] sm:$0xff]
    %v350 = vld [vmem:[#allocation2 + $0x568] sm:$0xff]
    %v351 = vld [vmem:[#allocation2 + $0x570] sm:$0xff]
    %v352 = vld [vmem:[#allocation2 + $0x578] sm:$0xff]
    %v353 = vld [vmem:[#allocation2 + $0x580] sm:$0xff]
    %v354 = vld [vmem:[#allocation2 + $0x588] sm:$0xff]
    %v355 = vld [vmem:[#allocation2 + $0x590] sm:$0xff]
    %v356 = vld [vmem:[#allocation2 + $0x598] sm:$0xff]
    %v357 = vld [vmem:[#allocation2 + $0x5a0] sm:$0xff]
    %v358 = vld [vmem:[#allocation2 + $0x5a8] sm:$0xff]
    %v359 = vld [vmem:[#allocation2 + $0x5b0] sm:$0xff]
    %v360 = vld [vmem:[#allocation2 + $0x5b8] sm:$0xff]
    %v361 = vld [vmem:[#allocation2 + $0x5c0] sm:$0xff]
    %v362 = vld [vmem:[#allocation2 + $0x5c8] sm:$0xff]
    %v363 = vld [vmem:[#allocation2 + $0x5d0] sm:$0xff]
    %v364 = vld [vmem:[#allocation2 + $0x5d8] sm:$0xff]
    %v365 = vld [vmem:[#allocation2 + $0x5e0] sm:$0xff]
    %v366 = vld [vmem:[#allocation2 + $0x5e8] sm:$0xff]
    %v367 = vld [vmem:[#allocation2 + $0x5f0] sm:$0xff]
    %v368 = vld [vmem:[#allocation2 + $0x5f8] sm:$0xff]
    %v369 = vld [vmem:[%s3] sm:$0xf]
    %v371 = vperm.slane %v369, 0
    %v372 = vperm.slane %v369, 1
    %v373 = vperm.slane %v369, 2
    %v374 = vperm.slane %v369, 3
    %v385 = vunpack.c.l.b16 %v171
    %v386 = vunpack.c.h.b16 %v171
    %v387 = vunpack.c.l.b16 %v172
    %v388 = vunpack.c.h.b16 %v172
    %v389 = vunpack.c.l.b16 %v173
    %v390 = vunpack.c.h.b16 %v173
    %v391 = vunpack.c.l.b16 %v174
    %v392 = vunpack.c.h.b16 %v174
    %v393 = vunpack.c.l.b16 %v175
    %v394 = vunpack.c.h.b16 %v175
    %v395 = vunpack.c.l.b16 %v176
    %v396 = vunpack.c.h.b16 %v176
    %v397 = vpack.c.b16 %v391, %v385
    %v398 = vpack.c.b16 %v392, %v386
    %v399 = vpack.c.b16 %v393, %v387
    %v400 = vpack.c.b16 %v394, %v388
    %v401 = vpack.c.b16 %v395, %v389
    %v402 = vpack.c.b16 %v396, %v390
    %v601 = vunpack.c.l.b16 %v177
    %v602 = vunpack.c.h.b16 %v177
    %v603 = vunpack.c.l.b16 %v178
    %v604 = vunpack.c.h.b16 %v178
    %v605 = vunpack.c.l.b16 %v179
    %v606 = vunpack.c.h.b16 %v179
    %v607 = vunpack.c.l.b16 %v180
    %v608 = vunpack.c.h.b16 %v180
    %v609 = vunpack.c.l.b16 %v181
    %v610 = vunpack.c.h.b16 %v181
    %v611 = vunpack.c.l.b16 %v182
    %v612 = vunpack.c.h.b16 %v182
    %v613 = vunpack.c.l.b16 %v183
    %v614 = vunpack.c.h.b16 %v183
    %v615 = vunpack.c.l.b16 %v184
    %v616 = vunpack.c.h.b16 %v184
    %v617 = vunpack.c.l.b16 %v185
    %v618 = vunpack.c.h.b16 %v185
    %v619 = vunpack.c.l.b16 %v186
    %v620 = vunpack.c.h.b16 %v186
    %v621 = vunpack.c.l.b16 %v187
    %v622 = vunpack.c.h.b16 %v187
    %v623 = vunpack.c.l.b16 %v188
    %v624 = vunpack.c.h.b16 %v188
    %v625 = vunpack.c.l.b16 %v189
    %v626 = vunpack.c.h.b16 %v189
    %v627 = vunpack.c.l.b16 %v190
    %v628 = vunpack.c.h.b16 %v190
    %v629 = vunpack.c.l.b16 %v191
    %v630 = vunpack.c.h.b16 %v191
    %v631 = vunpack.c.l.b16 %v192
    %v632 = vunpack.c.h.b16 %v192
    %v633 = vunpack.c.l.b16 %v193
    %v634 = vunpack.c.h.b16 %v193
    %v635 = vunpack.c.l.b16 %v194
    %v636 = vunpack.c.h.b16 %v194
    %v637 = vunpack.c.l.b16 %v195
    %v638 = vunpack.c.h.b16 %v195
    %v639 = vunpack.c.l.b16 %v196
    %v640 = vunpack.c.h.b16 %v196
    %v641 = vunpack.c.l.b16 %v197
    %v642 = vunpack.c.h.b16 %v197
    %v643 = vunpack.c.l.b16 %v198
    %v644 = vunpack.c.h.b16 %v198
    %v645 = vunpack.c.l.b16 %v199
    %v646 = vunpack.c.h.b16 %v199
    %v647 = vunpack.c.l.b16 %v200
    %v648 = vunpack.c.h.b16 %v200
    %v649 = vunpack.c.l.b16 %v201
    %v650 = vunpack.c.h.b16 %v201
    %v651 = vunpack.c.l.b16 %v202
    %v652 = vunpack.c.h.b16 %v202
    %v653 = vunpack.c.l.b16 %v203
    %v654 = vunpack.c.h.b16 %v203
    %v655 = vunpack.c.l.b16 %v204
    %v656 = vunpack.c.h.b16 %v204
    %v657 = vunpack.c.l.b16 %v205
    %v658 = vunpack.c.h.b16 %v205
    %v659 = vunpack.c.l.b16 %v206
    %v660 = vunpack.c.h.b16 %v206
    %v661 = vunpack.c.l.b16 %v207
    %v662 = vunpack.c.h.b16 %v207
    %v663 = vunpack.c.l.b16 %v208
    %v664 = vunpack.c.h.b16 %v208
    %v665 = vunpack.c.l.b16 %v209
    %v666 = vunpack.c.h.b16 %v209
    %v667 = vunpack.c.l.b16 %v210
    %v668 = vunpack.c.h.b16 %v210
    %v669 = vunpack.c.l.b16 %v211
    %v670 = vunpack.c.h.b16 %v211
    %v671 = vunpack.c.l.b16 %v212
    %v672 = vunpack.c.h.b16 %v212
    %v673 = vunpack.c.l.b16 %v213
    %v674 = vunpack.c.h.b16 %v213
    %v675 = vunpack.c.l.b16 %v214
    %v676 = vunpack.c.h.b16 %v214
    %v677 = vunpack.c.l.b16 %v215
    %v678 = vunpack.c.h.b16 %v215
    %v679 = vunpack.c.l.b16 %v216
    %v680 = vunpack.c.h.b16 %v216
    %v681 = vunpack.c.l.b16 %v217
    %v682 = vunpack.c.h.b16 %v217
    %v683 = vunpack.c.l.b16 %v218
    %v684 = vunpack.c.h.b16 %v218
    %v685 = vunpack.c.l.b16 %v219
    %v686 = vunpack.c.h.b16 %v219
    %v687 = vunpack.c.l.b16 %v220
    %v688 = vunpack.c.h.b16 %v220
    %v689 = vunpack.c.l.b16 %v221
    %v690 = vunpack.c.h.b16 %v221
    %v691 = vunpack.c.l.b16 %v222
    %v692 = vunpack.c.h.b16 %v222
    %v693 = vunpack.c.l.b16 %v223
    %v694 = vunpack.c.h.b16 %v223
    %v695 = vunpack.c.l.b16 %v224
    %v696 = vunpack.c.h.b16 %v224
    %v697 = vunpack.c.l.b16 %v225
    %v698 = vunpack.c.h.b16 %v225
    %v699 = vunpack.c.l.b16 %v226
    %v700 = vunpack.c.h.b16 %v226
    %v701 = vunpack.c.l.b16 %v227
    %v702 = vunpack.c.h.b16 %v227
    %v703 = vunpack.c.l.b16 %v228
    %v704 = vunpack.c.h.b16 %v228
    %v705 = vunpack.c.l.b16 %v229
    %v706 = vunpack.c.h.b16 %v229
    %v707 = vunpack.c.l.b16 %v230
    %v708 = vunpack.c.h.b16 %v230
    %v709 = vunpack.c.l.b16 %v231
    %v710 = vunpack.c.h.b16 %v231
    %v711 = vunpack.c.l.b16 %v232
    %v712 = vunpack.c.h.b16 %v232
    %v713 = vunpack.c.l.b16 %v233
    %v714 = vunpack.c.h.b16 %v233
    %v715 = vunpack.c.l.b16 %v234
    %v716 = vunpack.c.h.b16 %v234
    %v717 = vunpack.c.l.b16 %v235
    %v718 = vunpack.c.h.b16 %v235
    %v719 = vunpack.c.l.b16 %v236
    %v720 = vunpack.c.h.b16 %v236
    %v721 = vunpack.c.l.b16 %v237
    %v722 = vunpack.c.h.b16 %v237
    %v723 = vunpack.c.l.b16 %v238
    %v724 = vunpack.c.h.b16 %v238
    %v725 = vunpack.c.l.b16 %v239
    %v726 = vunpack.c.h.b16 %v239
    %v727 = vunpack.c.l.b16 %v240
    %v728 = vunpack.c.h.b16 %v240
    %v729 = vunpack.c.l.b16 %v241
    %v730 = vunpack.c.h.b16 %v241
    %v731 = vunpack.c.l.b16 %v242
    %v732 = vunpack.c.h.b16 %v242
    %v733 = vunpack.c.l.b16 %v243
    %v734 = vunpack.c.h.b16 %v243
    %v735 = vunpack.c.l.b16 %v244
    %v736 = vunpack.c.h.b16 %v244
    %v737 = vunpack.c.l.b16 %v245
    %v738 = vunpack.c.h.b16 %v245
    %v739 = vunpack.c.l.b16 %v246
    %v740 = vunpack.c.h.b16 %v246
    %v741 = vunpack.c.l.b16 %v247
    %v742 = vunpack.c.h.b16 %v247
    %v743 = vunpack.c.l.b16 %v248
    %v744 = vunpack.c.h.b16 %v248
    %v745 = vunpack.c.l.b16 %v249
    %v746 = vunpack.c.h.b16 %v249
    %v747 = vunpack.c.l.b16 %v250
    %v748 = vunpack.c.h.b16 %v250
    %v749 = vunpack.c.l.b16 %v251
    %v750 = vunpack.c.h.b16 %v251
    %v751 = vunpack.c.l.b16 %v252
    %v752 = vunpack.c.h.b16 %v252
    %v753 = vunpack.c.l.b16 %v253
    %v754 = vunpack.c.h.b16 %v253
    %v755 = vunpack.c.l.b16 %v254
    %v756 = vunpack.c.h.b16 %v254
    %v757 = vunpack.c.l.b16 %v255
    %v758 = vunpack.c.h.b16 %v255
    %v759 = vunpack.c.l.b16 %v256
    %v760 = vunpack.c.h.b16 %v256
    %v761 = vunpack.c.l.b16 %v257
    %v762 = vunpack.c.h.b16 %v257
    %v763 = vunpack.c.l.b16 %v258
    %v764 = vunpack.c.h.b16 %v258
    %v765 = vunpack.c.l.b16 %v259
    %v766 = vunpack.c.h.b16 %v259
    %v767 = vunpack.c.l.b16 %v260
    %v768 = vunpack.c.h.b16 %v260
    %v769 = vunpack.c.l.b16 %v261
    %v770 = vunpack.c.h.b16 %v261
    %v771 = vunpack.c.l.b16 %v262
    %v772 = vunpack.c.h.b16 %v262
    %v773 = vunpack.c.l.b16 %v263
    %v774 = vunpack.c.h.b16 %v263
    %v775 = vunpack.c.l.b16 %v264
    %v776 = vunpack.c.h.b16 %v264
    %v777 = vunpack.c.l.b16 %v265
    %v778 = vunpack.c.h.b16 %v265
    %v779 = vunpack.c.l.b16 %v266
    %v780 = vunpack.c.h.b16 %v266
    %v781 = vunpack.c.l.b16 %v267
    %v782 = vunpack.c.h.b16 %v267
    %v783 = vunpack.c.l.b16 %v268
    %v784 = vunpack.c.h.b16 %v268
    %v785 = vunpack.c.l.b16 %v269
    %v786 = vunpack.c.h.b16 %v269
    %v787 = vunpack.c.l.b16 %v270
    %v788 = vunpack.c.h.b16 %v270
    %v789 = vunpack.c.l.b16 %v271
    %v790 = vunpack.c.h.b16 %v271
    %v791 = vunpack.c.l.b16 %v272
    %v792 = vunpack.c.h.b16 %v272
    %v793 = vunpack.c.l.b16 %v273
    %v794 = vunpack.c.h.b16 %v273
    %v795 = vunpack.c.l.b16 %v274
    %v796 = vunpack.c.h.b16 %v274
    %v797 = vunpack.c.l.b16 %v275
    %v798 = vunpack.c.h.b16 %v275
    %v799 = vunpack.c.l.b16 %v276
    %v800 = vunpack.c.h.b16 %v276
    %v801 = vunpack.c.l.b16 %v277
    %v802 = vunpack.c.h.b16 %v277
    %v803 = vunpack.c.l.b16 %v278
    %v804 = vunpack.c.h.b16 %v278
    %v805 = vunpack.c.l.b16 %v279
    %v806 = vunpack.c.h.b16 %v279
    %v807 = vunpack.c.l.b16 %v280
    %v808 = vunpack.c.h.b16 %v280
    %v809 = vunpack.c.l.b16 %v281
    %v810 = vunpack.c.h.b16 %v281
    %v811 = vunpack.c.l.b16 %v282
    %v812 = vunpack.c.h.b16 %v282
    %v813 = vunpack.c.l.b16 %v283
    %v814 = vunpack.c.h.b16 %v283
    %v815 = vunpack.c.l.b16 %v284
    %v816 = vunpack.c.h.b16 %v284
    %v817 = vunpack.c.l.b16 %v285
    %v818 = vunpack.c.h.b16 %v285
    %v819 = vunpack.c.l.b16 %v286
    %v820 = vunpack.c.h.b16 %v286
    %v821 = vunpack.c.l.b16 %v287
    %v822 = vunpack.c.h.b16 %v287
    %v823 = vunpack.c.l.b16 %v288
    %v824 = vunpack.c.h.b16 %v288
    %v825 = vunpack.c.l.b16 %v289
    %v826 = vunpack.c.h.b16 %v289
    %v827 = vunpack.c.l.b16 %v290
    %v828 = vunpack.c.h.b16 %v290
    %v829 = vunpack.c.l.b16 %v291
    %v830 = vunpack.c.h.b16 %v291
    %v831 = vunpack.c.l.b16 %v292
    %v832 = vunpack.c.h.b16 %v292
    %v833 = vunpack.c.l.b16 %v293
    %v834 = vunpack.c.h.b16 %v293
    %v835 = vunpack.c.l.b16 %v294
    %v836 = vunpack.c.h.b16 %v294
    %v837 = vunpack.c.l.b16 %v295
    %v838 = vunpack.c.h.b16 %v295
    %v839 = vunpack.c.l.b16 %v296
    %v840 = vunpack.c.h.b16 %v296
    %v841 = vunpack.c.l.b16 %v297
    %v842 = vunpack.c.h.b16 %v297
    %v843 = vunpack.c.l.b16 %v298
    %v844 = vunpack.c.h.b16 %v298
    %v845 = vunpack.c.l.b16 %v299
    %v846 = vunpack.c.h.b16 %v299
    %v847 = vunpack.c.l.b16 %v300
    %v848 = vunpack.c.h.b16 %v300
    %v849 = vunpack.c.l.b16 %v301
    %v850 = vunpack.c.h.b16 %v301
    %v851 = vunpack.c.l.b16 %v302
    %v852 = vunpack.c.h.b16 %v302
    %v853 = vunpack.c.l.b16 %v303
    %v854 = vunpack.c.h.b16 %v303
    %v855 = vunpack.c.l.b16 %v304
    %v856 = vunpack.c.h.b16 %v304
    %v857 = vunpack.c.l.b16 %v305
    %v858 = vunpack.c.h.b16 %v305
    %v859 = vunpack.c.l.b16 %v306
    %v860 = vunpack.c.h.b16 %v306
    %v861 = vunpack.c.l.b16 %v307
    %v862 = vunpack.c.h.b16 %v307
    %v863 = vunpack.c.l.b16 %v308
    %v864 = vunpack.c.h.b16 %v308
    %v865 = vunpack.c.l.b16 %v309
    %v866 = vunpack.c.h.b16 %v309
    %v867 = vunpack.c.l.b16 %v310
    %v868 = vunpack.c.h.b16 %v310
    %v869 = vunpack.c.l.b16 %v311
    %v870 = vunpack.c.h.b16 %v311
    %v871 = vunpack.c.l.b16 %v312
    %v872 = vunpack.c.h.b16 %v312
    %v873 = vunpack.c.l.b16 %v313
    %v874 = vunpack.c.h.b16 %v313
    %v875 = vunpack.c.l.b16 %v314
    %v876 = vunpack.c.h.b16 %v314
    %v877 = vunpack.c.l.b16 %v315
    %v878 = vunpack.c.h.b16 %v315
    %v879 = vunpack.c.l.b16 %v316
    %v880 = vunpack.c.h.b16 %v316
    %v881 = vunpack.c.l.b16 %v317
    %v882 = vunpack.c.h.b16 %v317
    %v883 = vunpack.c.l.b16 %v318
    %v884 = vunpack.c.h.b16 %v318
    %v885 = vunpack.c.l.b16 %v319
    %v886 = vunpack.c.h.b16 %v319
    %v887 = vunpack.c.l.b16 %v320
    %v888 = vunpack.c.h.b16 %v320
    %v889 = vunpack.c.l.b16 %v321
    %v890 = vunpack.c.h.b16 %v321
    %v891 = vunpack.c.l.b16 %v322
    %v892 = vunpack.c.h.b16 %v322
    %v893 = vunpack.c.l.b16 %v323
    %v894 = vunpack.c.h.b16 %v323
    %v895 = vunpack.c.l.b16 %v324
    %v896 = vunpack.c.h.b16 %v324
    %v897 = vunpack.c.l.b16 %v325
    %v898 = vunpack.c.h.b16 %v325
    %v899 = vunpack.c.l.b16 %v326
    %v900 = vunpack.c.h.b16 %v326
    %v901 = vunpack.c.l.b16 %v327
    %v902 = vunpack.c.h.b16 %v327
    %v903 = vunpack.c.l.b16 %v328
    %v904 = vunpack.c.h.b16 %v328
    %v905 = vunpack.c.l.b16 %v329
    %v906 = vunpack.c.h.b16 %v329
    %v907 = vunpack.c.l.b16 %v330
    %v908 = vunpack.c.h.b16 %v330
    %v909 = vunpack.c.l.b16 %v331
    %v910 = vunpack.c.h.b16 %v331
    %v911 = vunpack.c.l.b16 %v332
    %v912 = vunpack.c.h.b16 %v332
    %v913 = vunpack.c.l.b16 %v333
    %v914 = vunpack.c.h.b16 %v333
    %v915 = vunpack.c.l.b16 %v334
    %v916 = vunpack.c.h.b16 %v334
    %v917 = vunpack.c.l.b16 %v335
    %v918 = vunpack.c.h.b16 %v335
    %v919 = vunpack.c.l.b16 %v336
    %v920 = vunpack.c.h.b16 %v336
    %v921 = vunpack.c.l.b16 %v337
    %v922 = vunpack.c.h.b16 %v337
    %v923 = vunpack.c.l.b16 %v338
    %v924 = vunpack.c.h.b16 %v338
    %v925 = vunpack.c.l.b16 %v339
    %v926 = vunpack.c.h.b16 %v339
    %v927 = vunpack.c.l.b16 %v340
    %v928 = vunpack.c.h.b16 %v340
    %v929 = vunpack.c.l.b16 %v341
    %v930 = vunpack.c.h.b16 %v341
    %v931 = vunpack.c.l.b16 %v342
    %v932 = vunpack.c.h.b16 %v342
    %v933 = vunpack.c.l.b16 %v343
    %v934 = vunpack.c.h.b16 %v343
    %v935 = vunpack.c.l.b16 %v344
    %v936 = vunpack.c.h.b16 %v344
    %v937 = vunpack.c.l.b16 %v345
    %v938 = vunpack.c.h.b16 %v345
    %v939 = vunpack.c.l.b16 %v346
    %v940 = vunpack.c.h.b16 %v346
    %v941 = vunpack.c.l.b16 %v347
    %v942 = vunpack.c.h.b16 %v347
    %v943 = vunpack.c.l.b16 %v348
    %v944 = vunpack.c.h.b16 %v348
    %v945 = vunpack.c.l.b16 %v349
    %v946 = vunpack.c.h.b16 %v349
    %v947 = vunpack.c.l.b16 %v350
    %v948 = vunpack.c.h.b16 %v350
    %v949 = vunpack.c.l.b16 %v351
    %v950 = vunpack.c.h.b16 %v351
    %v951 = vunpack.c.l.b16 %v352
    %v952 = vunpack.c.h.b16 %v352
    %v953 = vunpack.c.l.b16 %v353
    %v954 = vunpack.c.h.b16 %v353
    %v955 = vunpack.c.l.b16 %v354
    %v956 = vunpack.c.h.b16 %v354
    %v957 = vunpack.c.l.b16 %v355
    %v958 = vunpack.c.h.b16 %v355
    %v959 = vunpack.c.l.b16 %v356
    %v960 = vunpack.c.h.b16 %v356
    %v961 = vunpack.c.l.b16 %v357
    %v962 = vunpack.c.h.b16 %v357
    %v963 = vunpack.c.l.b16 %v358
    %v964 = vunpack.c.h.b16 %v358
    %v965 = vunpack.c.l.b16 %v359
    %v966 = vunpack.c.h.b16 %v359
    %v967 = vunpack.c.l.b16 %v360
    %v968 = vunpack.c.h.b16 %v360
    %v969 = vunpack.c.l.b16 %v361
    %v970 = vunpack.c.h.b16 %v361
    %v971 = vunpack.c.l.b16 %v362
    %v972 = vunpack.c.h.b16 %v362
    %v973 = vunpack.c.l.b16 %v363
    %v974 = vunpack.c.h.b16 %v363
    %v975 = vunpack.c.l.b16 %v364
    %v976 = vunpack.c.h.b16 %v364
    %v977 = vunpack.c.l.b16 %v365
    %v978 = vunpack.c.h.b16 %v365
    %v979 = vunpack.c.l.b16 %v366
    %v980 = vunpack.c.h.b16 %v366
    %v981 = vunpack.c.l.b16 %v367
    %v982 = vunpack.c.h.b16 %v367
    %v983 = vunpack.c.l.b16 %v368
    %v984 = vunpack.c.h.b16 %v368
    %v985 = vpack.c.b16 %v605, %v601
    %v986 = vpack.c.b16 %v606, %v602
    %v987 = vpack.c.b16 %v607, %v603
    %v988 = vpack.c.b16 %v608, %v604
    %v989 = vpack.c.b16 %v613, %v609
    %v990 = vpack.c.b16 %v614, %v610
    %v991 = vpack.c.b16 %v615, %v611
    %v992 = vpack.c.b16 %v616, %v612
    %v993 = vpack.c.b16 %v621, %v617
    %v994 = vpack.c.b16 %v622, %v618
    %v995 = vpack.c.b16 %v623, %v619
    %v996 = vpack.c.b16 %v624, %v620
    %v997 = vpack.c.b16 %v629, %v625
    %v998 = vpack.c.b16 %v630, %v626
    %v999 = vpack.c.b16 %v631, %v627
    %v1000 = vpack.c.b16 %v632, %v628
    %v1001 = vpack.c.b16 %v637, %v633
    %v1002 = vpack.c.b16 %v638, %v634
    %v1003 = vpack.c.b16 %v639, %v635
    %v1004 = vpack.c.b16 %v640, %v636
    %v1005 = vpack.c.b16 %v645, %v641
    %v1006 = vpack.c.b16 %v646, %v642
    %v1007 = vpack.c.b16 %v647, %v643
    %v1008 = vpack.c.b16 %v648, %v644
    %v1009 = vpack.c.b16 %v653, %v649
    %v1010 = vpack.c.b16 %v654, %v650
    %v1011 = vpack.c.b16 %v655, %v651
    %v1012 = vpack.c.b16 %v656, %v652
    %v1013 = vpack.c.b16 %v661, %v657
    %v1014 = vpack.c.b16 %v662, %v658
    %v1015 = vpack.c.b16 %v663, %v659
    %v1016 = vpack.c.b16 %v664, %v660
    %v1017 = vpack.c.b16 %v669, %v665
    %v1018 = vpack.c.b16 %v670, %v666
    %v1019 = vpack.c.b16 %v671, %v667
    %v1020 = vpack.c.b16 %v672, %v668
    %v1021 = vpack.c.b16 %v677, %v673
    %v1022 = vpack.c.b16 %v678, %v674
    %v1023 = vpack.c.b16 %v679, %v675
    %v1024 = vpack.c.b16 %v680, %v676
    %v1025 = vpack.c.b16 %v685, %v681
    %v1026 = vpack.c.b16 %v686, %v682
    %v1027 = vpack.c.b16 %v687, %v683
    %v1028 = vpack.c.b16 %v688, %v684
    %v1029 = vpack.c.b16 %v693, %v689
    %v1030 = vpack.c.b16 %v694, %v690
    %v1031 = vpack.c.b16 %v695, %v691
    %v1032 = vpack.c.b16 %v696, %v692
    %v1033 = vpack.c.b16 %v701, %v697
    %v1034 = vpack.c.b16 %v702, %v698
    %v1035 = vpack.c.b16 %v703, %v699
    %v1036 = vpack.c.b16 %v704, %v700
    %v1037 = vpack.c.b16 %v709, %v705
    %v1038 = vpack.c.b16 %v710, %v706
    %v1039 = vpack.c.b16 %v711, %v707
    %v1040 = vpack.c.b16 %v712, %v708
    %v1041 = vpack.c.b16 %v717, %v713
    %v1042 = vpack.c.b16 %v718, %v714
    %v1043 = vpack.c.b16 %v719, %v715
    %v1044 = vpack.c.b16 %v720, %v716
    %v1045 = vpack.c.b16 %v725, %v721
    %v1046 = vpack.c.b16 %v726, %v722
    %v1047 = vpack.c.b16 %v727, %v723
    %v1048 = vpack.c.b16 %v728, %v724
    %v1049 = vpack.c.b16 %v733, %v729
    %v1050 = vpack.c.b16 %v734, %v730
    %v1051 = vpack.c.b16 %v735, %v731
    %v1052 = vpack.c.b16 %v736, %v732
    %v1053 = vpack.c.b16 %v741, %v737
    %v1054 = vpack.c.b16 %v742, %v738
    %v1055 = vpack.c.b16 %v743, %v739
    %v1056 = vpack.c.b16 %v744, %v740
    %v1057 = vpack.c.b16 %v749, %v745
    %v1058 = vpack.c.b16 %v750, %v746
    %v1059 = vpack.c.b16 %v751, %v747
    %v1060 = vpack.c.b16 %v752, %v748
    %v1061 = vpack.c.b16 %v757, %v753
    %v1062 = vpack.c.b16 %v758, %v754
    %v1063 = vpack.c.b16 %v759, %v755
    %v1064 = vpack.c.b16 %v760, %v756
    %v1065 = vpack.c.b16 %v765, %v761
    %v1066 = vpack.c.b16 %v766, %v762
    %v1067 = vpack.c.b16 %v767, %v763
    %v1068 = vpack.c.b16 %v768, %v764
    %v1069 = vpack.c.b16 %v773, %v769
    %v1070 = vpack.c.b16 %v774, %v770
    %v1071 = vpack.c.b16 %v775, %v771
    %v1072 = vpack.c.b16 %v776, %v772
    %v1073 = vpack.c.b16 %v781, %v777
    %v1074 = vpack.c.b16 %v782, %v778
    %v1075 = vpack.c.b16 %v783, %v779
    %v1076 = vpack.c.b16 %v784, %v780
    %v1077 = vpack.c.b16 %v789, %v785
    %v1078 = vpack.c.b16 %v790, %v786
    %v1079 = vpack.c.b16 %v791, %v787
    %v1080 = vpack.c.b16 %v792, %v788
    %v1081 = vpack.c.b16 %v797, %v793
    %v1082 = vpack.c.b16 %v798, %v794
    %v1083 = vpack.c.b16 %v799, %v795
    %v1084 = vpack.c.b16 %v800, %v796
    %v1085 = vpack.c.b16 %v805, %v801
    %v1086 = vpack.c.b16 %v806, %v802
    %v1087 = vpack.c.b16 %v807, %v803
    %v1088 = vpack.c.b16 %v808, %v804
    %v1089 = vpack.c.b16 %v813, %v809
    %v1090 = vpack.c.b16 %v814, %v810
    %v1091 = vpack.c.b16 %v815, %v811
    %v1092 = vpack.c.b16 %v816, %v812
    %v1093 = vpack.c.b16 %v821, %v817
    %v1094 = vpack.c.b16 %v822, %v818
    %v1095 = vpack.c.b16 %v823, %v819
    %v1096 = vpack.c.b16 %v824, %v820
    %v1097 = vpack.c.b16 %v829, %v825
    %v1098 = vpack.c.b16 %v830, %v826
    %v1099 = vpack.c.b16 %v831, %v827
    %v1100 = vpack.c.b16 %v832, %v828
    %v1101 = vpack.c.b16 %v837, %v833
    %v1102 = vpack.c.b16 %v838, %v834
    %v1103 = vpack.c.b16 %v839, %v835
    %v1104 = vpack.c.b16 %v840, %v836
    %v1105 = vpack.c.b16 %v845, %v841
    %v1106 = vpack.c.b16 %v846, %v842
    %v1107 = vpack.c.b16 %v847, %v843
    %v1108 = vpack.c.b16 %v848, %v844
    %v1109 = vpack.c.b16 %v853, %v849
    %v1110 = vpack.c.b16 %v854, %v850
    %v1111 = vpack.c.b16 %v855, %v851
    %v1112 = vpack.c.b16 %v856, %v852
    %v1113 = vpack.c.b16 %v861, %v857
    %v1114 = vpack.c.b16 %v862, %v858
    %v1115 = vpack.c.b16 %v863, %v859
    %v1116 = vpack.c.b16 %v864, %v860
    %v1117 = vpack.c.b16 %v869, %v865
    %v1118 = vpack.c.b16 %v870, %v866
    %v1119 = vpack.c.b16 %v871, %v867
    %v1120 = vpack.c.b16 %v872, %v868
    %v1121 = vpack.c.b16 %v877, %v873
    %v1122 = vpack.c.b16 %v878, %v874
    %v1123 = vpack.c.b16 %v879, %v875
    %v1124 = vpack.c.b16 %v880, %v876
    %v1125 = vpack.c.b16 %v885, %v881
    %v1126 = vpack.c.b16 %v886, %v882
    %v1127 = vpack.c.b16 %v887, %v883
    %v1128 = vpack.c.b16 %v888, %v884
    %v1129 = vpack.c.b16 %v893, %v889
    %v1130 = vpack.c.b16 %v894, %v890
    %v1131 = vpack.c.b16 %v895, %v891
    %v1132 = vpack.c.b16 %v896, %v892
    %v1133 = vpack.c.b16 %v901, %v897
    %v1134 = vpack.c.b16 %v902, %v898
    %v1135 = vpack.c.b16 %v903, %v899
    %v1136 = vpack.c.b16 %v904, %v900
    %v1137 = vpack.c.b16 %v909, %v905
    %v1138 = vpack.c.b16 %v910, %v906
    %v1139 = vpack.c.b16 %v911, %v907
    %v1140 = vpack.c.b16 %v912, %v908
    %v1141 = vpack.c.b16 %v917, %v913
    %v1142 = vpack.c.b16 %v918, %v914
    %v1143 = vpack.c.b16 %v919, %v915
    %v1144 = vpack.c.b16 %v920, %v916
    %v1145 = vpack.c.b16 %v925, %v921
    %v1146 = vpack.c.b16 %v926, %v922
    %v1147 = vpack.c.b16 %v927, %v923
    %v1148 = vpack.c.b16 %v928, %v924
    %v1149 = vpack.c.b16 %v933, %v929
    %v1150 = vpack.c.b16 %v934, %v930
    %v1151 = vpack.c.b16 %v935, %v931
    %v1152 = vpack.c.b16 %v936, %v932
    %v1153 = vpack.c.b16 %v941, %v937
    %v1154 = vpack.c.b16 %v942, %v938
    %v1155 = vpack.c.b16 %v943, %v939
    %v1156 = vpack.c.b16 %v944, %v940
    %v1157 = vpack.c.b16 %v949, %v945
    %v1158 = vpack.c.b16 %v950, %v946
    %v1159 = vpack.c.b16 %v951, %v947
    %v1160 = vpack.c.b16 %v952, %v948
    %v1161 = vpack.c.b16 %v957, %v953
    %v1162 = vpack.c.b16 %v958, %v954
    %v1163 = vpack.c.b16 %v959, %v955
    %v1164 = vpack.c.b16 %v960, %v956
    %v1165 = vpack.c.b16 %v965, %v961
    %v1166 = vpack.c.b16 %v966, %v962
    %v1167 = vpack.c.b16 %v967, %v963
    %v1168 = vpack.c.b16 %v968, %v964
    %v1169 = vpack.c.b16 %v973, %v969
    %v1170 = vpack.c.b16 %v974, %v970
    %v1171 = vpack.c.b16 %v975, %v971
    %v1172 = vpack.c.b16 %v976, %v972
    %v1173 = vpack.c.b16 %v981, %v977
    %v1174 = vpack.c.b16 %v982, %v978
    %v1175 = vpack.c.b16 %v983, %v979
    %v1176 = vpack.c.b16 %v984, %v980
    %1369 = vmatpush.bf16.msra.mxu0 %v1013
    %1370 = vmatpush.bf16.msra.mxu0 %v1009
    %1371 = vmatpush.bf16.msra.mxu0 %v1005
    %1372 = vmatpush.bf16.msra.mxu0 %v1001
    %1373 = vmatpush.bf16.msra.mxu0 %v997
    %1374 = vmatpush.bf16.msra.mxu0 %v993
    %1375 = vmatpush.bf16.msra.mxu0 %v989
    %1376 = vmatpush.bf16.msra.mxu0 %v985
    %1377 = vmatmul.bf16.gmra.mxu0 %v397
    %v1378 = vpop.f32.mrf.mxu0
    %v1379 = vadd.f32 %v371, %v1378
    %v1380 = vpop.f32.mrf.mxu0
    %v1381 = vadd.f32 %v371, %v1380
    %1382 = vdwg.mxu0
    %1383 = vmatpush.bf16.msra.mxu0 %v1045
    %1384 = vmatpush.bf16.msra.mxu0 %v1041
    %1385 = vmatpush.bf16.msra.mxu0 %v1037
    %1386 = vmatpush.bf16.msra.mxu0 %v1033
    %1387 = vmatpush.bf16.msra.mxu0 %v1029
    %1388 = vmatpush.bf16.msra.mxu0 %v1025
    %1389 = vmatpush.bf16.msra.mxu0 %v1021
    %1390 = vmatpush.bf16.msra.mxu0 %v1017
    %1391 = vmatmul.bf16.gmra.mxu0 %v398
    %v1392 = vpop.f32.mrf.mxu0
    %v1393 = vadd.f32 %v1379, %v1392
    %v1394 = vpop.f32.mrf.mxu0
    %v1395 = vadd.f32 %v1381, %v1394
    %1396 = vdwg.mxu0
    %1397 = vmatpush.bf16.msra.mxu0 %v1077
    %1398 = vmatpush.bf16.msra.mxu0 %v1073
    %1399 = vmatpush.bf16.msra.mxu0 %v1069
    %1400 = vmatpush.bf16.msra.mxu0 %v1065
    %1401 = vmatpush.bf16.msra.mxu0 %v1061
    %1402 = vmatpush.bf16.msra.mxu0 %v1057
    %1403 = vmatpush.bf16.msra.mxu0 %v1053
    %1404 = vmatpush.bf16.msra.mxu0 %v1049
    %1405 = vmatmul.bf16.gmra.mxu0 %v399
    %v1406 = vpop.f32.mrf.mxu0
    %v1407 = vadd.f32 %v1393, %v1406
    %v1408 = vpop.f32.mrf.mxu0
    %v1409 = vadd.f32 %v1395, %v1408
    %1410 = vdwg.mxu0
    %1411 = vmatpush.bf16.msra.mxu0 %v1109
    %1412 = vmatpush.bf16.msra.mxu0 %v1105
    %1413 = vmatpush.bf16.msra.mxu0 %v1101
    %1414 = vmatpush.bf16.msra.mxu0 %v1097
    %1415 = vmatpush.bf16.msra.mxu0 %v1093
    %1416 = vmatpush.bf16.msra.mxu0 %v1089
    %1417 = vmatpush.bf16.msra.mxu0 %v1085
    %1418 = vmatpush.bf16.msra.mxu0 %v1081
    %1419 = vmatmul.bf16.gmra.mxu0 %v400
    %v1420 = vpop.f32.mrf.mxu0
    %v1421 = vadd.f32 %v1407, %v1420
    %v1422 = vpop.f32.mrf.mxu0
    %v1423 = vadd.f32 %v1409, %v1422
    %1424 = vdwg.mxu0
    %1425 = vmatpush.bf16.msra.mxu0 %v1141
    %1426 = vmatpush.bf16.msra.mxu0 %v1137
    %1427 = vmatpush.bf16.msra.mxu0 %v1133
    %1428 = vmatpush.bf16.msra.mxu0 %v1129
    %1429 = vmatpush.bf16.msra.mxu0 %v1125
    %1430 = vmatpush.bf16.msra.mxu0 %v1121
    %1431 = vmatpush.bf16.msra.mxu0 %v1117
    %1432 = vmatpush.bf16.msra.mxu0 %v1113
    %1433 = vmatmul.bf16.gmra.mxu0 %v401
    %v1434 = vpop.f32.mrf.mxu0
    %v1435 = vadd.f32 %v1421, %v1434
    %v1436 = vpop.f32.mrf.mxu0
    %v1437 = vadd.f32 %v1423, %v1436
    %1438 = vdwg.mxu0
    %1439 = vmatpush.bf16.msra.mxu0 %v1173
    %1440 = vmatpush.bf16.msra.mxu0 %v1169
    %1441 = vmatpush.bf16.msra.mxu0 %v1165
    %1442 = vmatpush.bf16.msra.mxu0 %v1161
    %1443 = vmatpush.bf16.msra.mxu0 %v1157
    %1444 = vmatpush.bf16.msra.mxu0 %v1153
    %1445 = vmatpush.bf16.msra.mxu0 %v1149
    %1446 = vmatpush.bf16.msra.mxu0 %v1145
    %1447 = vmatmul.bf16.gmra.mxu0 %v402
    %v1448 = vpop.f32.mrf.mxu0
    %v1449 = vadd.f32 %v1435, %v1448
    %v1450 = vpop.f32.mrf.mxu0
    %v1451 = vadd.f32 %v1437, %v1450
    %1452 = vdwg.mxu0
    %1453 = vmatpush.bf16.msra.mxu0 %v1014
    %1454 = vmatpush.bf16.msra.mxu0 %v1010
    %1455 = vmatpush.bf16.msra.mxu0 %v1006
    %1456 = vmatpush.bf16.msra.mxu0 %v1002
    %1457 = vmatpush.bf16.msra.mxu0 %v998
    %1458 = vmatpush.bf16.msra.mxu0 %v994
    %1459 = vmatpush.bf16.msra.mxu0 %v990
    %1460 = vmatpush.bf16.msra.mxu0 %v986
    %1461 = vmatmul.bf16.gmra.mxu0 %v397
    %v1462 = vpop.f32.mrf.mxu0
    %v1463 = vadd.f32 %v372, %v1462
    %v1464 = vpop.f32.mrf.mxu0
    %v1465 = vadd.f32 %v372, %v1464
    %1466 = vdwg.mxu0
    %1467 = vmatpush.bf16.msra.mxu0 %v1046
    %1468 = vmatpush.bf16.msra.mxu0 %v1042
    %1469 = vmatpush.bf16.msra.mxu0 %v1038
    %1470 = vmatpush.bf16.msra.mxu0 %v1034
    %1471 = vmatpush.bf16.msra.mxu0 %v1030
    %1472 = vmatpush.bf16.msra.mxu0 %v1026
    %1473 = vmatpush.bf16.msra.mxu0 %v1022
    %1474 = vmatpush.bf16.msra.mxu0 %v1018
    %1475 = vmatmul.bf16.gmra.mxu0 %v398
    %v1476 = vpop.f32.mrf.mxu0
    %v1477 = vadd.f32 %v1463, %v1476
    %v1478 = vpop.f32.mrf.mxu0
    %v1479 = vadd.f32 %v1465, %v1478
    %1480 = vdwg.mxu0
    %1481 = vmatpush.bf16.msra.mxu0 %v1078
    %1482 = vmatpush.bf16.msra.mxu0 %v1074
    %1483 = vmatpush.bf16.msra.mxu0 %v1070
    %1484 = vmatpush.bf16.msra.mxu0 %v1066
    %1485 = vmatpush.bf16.msra.mxu0 %v1062
    %1486 = vmatpush.bf16.msra.mxu0 %v1058
    %1487 = vmatpush.bf16.msra.mxu0 %v1054
    %1488 = vmatpush.bf16.msra.mxu0 %v1050
    %1489 = vmatmul.bf16.gmra.mxu0 %v399
    %v1490 = vpop.f32.mrf.mxu0
    %v1491 = vadd.f32 %v1477, %v1490
    %v1492 = vpop.f32.mrf.mxu0
    %v1493 = vadd.f32 %v1479, %v1492
    %1494 = vdwg.mxu0
    %1495 = vmatpush.bf16.msra.mxu0 %v1110
    %1496 = vmatpush.bf16.msra.mxu0 %v1106
    %1497 = vmatpush.bf16.msra.mxu0 %v1102
    %1498 = vmatpush.bf16.msra.mxu0 %v1098
    %1499 = vmatpush.bf16.msra.mxu0 %v1094
    %1500 = vmatpush.bf16.msra.mxu0 %v1090
    %1501 = vmatpush.bf16.msra.mxu0 %v1086
    %1502 = vmatpush.bf16.msra.mxu0 %v1082
    %1503 = vmatmul.bf16.gmra.mxu0 %v400
    %v1504 = vpop.f32.mrf.mxu0
    %v1505 = vadd.f32 %v1491, %v1504
    %v1506 = vpop.f32.mrf.mxu0
    %v1507 = vadd.f32 %v1493, %v1506
    %1508 = vdwg.mxu0
    %1509 = vmatpush.bf16.msra.mxu0 %v1142
    %1510 = vmatpush.bf16.msra.mxu0 %v1138
    %1511 = vmatpush.bf16.msra.mxu0 %v1134
    %1512 = vmatpush.bf16.msra.mxu0 %v1130
    %1513 = vmatpush.bf16.msra.mxu0 %v1126
    %1514 = vmatpush.bf16.msra.mxu0 %v1122
    %1515 = vmatpush.bf16.msra.mxu0 %v1118
    %1516 = vmatpush.bf16.msra.mxu0 %v1114
    %1517 = vmatmul.bf16.gmra.mxu0 %v401
    %v1518 = vpop.f32.mrf.mxu0
    %v1519 = vadd.f32 %v1505, %v1518
    %v1520 = vpop.f32.mrf.mxu0
    %v1521 = vadd.f32 %v1507, %v1520
    %1522 = vdwg.mxu0
    %1523 = vmatpush.bf16.msra.mxu0 %v1174
    %1524 = vmatpush.bf16.msra.mxu0 %v1170
    %1525 = vmatpush.bf16.msra.mxu0 %v1166
    %1526 = vmatpush.bf16.msra.mxu0 %v1162
    %1527 = vmatpush.bf16.msra.mxu0 %v1158
    %1528 = vmatpush.bf16.msra.mxu0 %v1154
    %1529 = vmatpush.bf16.msra.mxu0 %v1150
    %1530 = vmatpush.bf16.msra.mxu0 %v1146
    %1531 = vmatmul.bf16.gmra.mxu0 %v402
    %v1532 = vpop.f32.mrf.mxu0
    %v1533 = vadd.f32 %v1519, %v1532
    %v1534 = vpop.f32.mrf.mxu0
    %v1535 = vadd.f32 %v1521, %v1534
    %1536 = vdwg.mxu0
    %1537 = vmatpush.bf16.msra.mxu0 %v1015
    %1538 = vmatpush.bf16.msra.mxu0 %v1011
    %1539 = vmatpush.bf16.msra.mxu0 %v1007
    %1540 = vmatpush.bf16.msra.mxu0 %v1003
    %1541 = vmatpush.bf16.msra.mxu0 %v999
    %1542 = vmatpush.bf16.msra.mxu0 %v995
    %1543 = vmatpush.bf16.msra.mxu0 %v991
    %1544 = vmatpush.bf16.msra.mxu0 %v987
    %1545 = vmatmul.bf16.gmra.mxu0 %v397
    %v1546 = vpop.f32.mrf.mxu0
    %v1547 = vadd.f32 %v373, %v1546
    %v1548 = vpop.f32.mrf.mxu0
    %v1549 = vadd.f32 %v373, %v1548
    %1550 = vdwg.mxu0
    %1551 = vmatpush.bf16.msra.mxu0 %v1047
    %1552 = vmatpush.bf16.msra.mxu0 %v1043
    %1553 = vmatpush.bf16.msra.mxu0 %v1039
    %1554 = vmatpush.bf16.msra.mxu0 %v1035
    %1555 = vmatpush.bf16.msra.mxu0 %v1031
    %1556 = vmatpush.bf16.msra.mxu0 %v1027
    %1557 = vmatpush.bf16.msra.mxu0 %v1023
    %1558 = vmatpush.bf16.msra.mxu0 %v1019
    %1559 = vmatmul.bf16.gmra.mxu0 %v398
    %v1560 = vpop.f32.mrf.mxu0
    %v1561 = vadd.f32 %v1547, %v1560
    %v1562 = vpop.f32.mrf.mxu0
    %v1563 = vadd.f32 %v1549, %v1562
    %1564 = vdwg.mxu0
    %1565 = vmatpush.bf16.msra.mxu0 %v1079
    %1566 = vmatpush.bf16.msra.mxu0 %v1075
    %1567 = vmatpush.bf16.msra.mxu0 %v1071
    %1568 = vmatpush.bf16.msra.mxu0 %v1067
    %1569 = vmatpush.bf16.msra.mxu0 %v1063
    %1570 = vmatpush.bf16.msra.mxu0 %v1059
    %1571 = vmatpush.bf16.msra.mxu0 %v1055
    %1572 = vmatpush.bf16.msra.mxu0 %v1051
    %1573 = vmatmul.bf16.gmra.mxu0 %v399
    %v1574 = vpop.f32.mrf.mxu0
    %v1575 = vadd.f32 %v1561, %v1574
    %v1576 = vpop.f32.mrf.mxu0
    %v1577 = vadd.f32 %v1563, %v1576
    %1578 = vdwg.mxu0
    %1579 = vmatpush.bf16.msra.mxu0 %v1111
    %1580 = vmatpush.bf16.msra.mxu0 %v1107
    %1581 = vmatpush.bf16.msra.mxu0 %v1103
    %1582 = vmatpush.bf16.msra.mxu0 %v1099
    %1583 = vmatpush.bf16.msra.mxu0 %v1095
    %1584 = vmatpush.bf16.msra.mxu0 %v1091
    %1585 = vmatpush.bf16.msra.mxu0 %v1087
    %1586 = vmatpush.bf16.msra.mxu0 %v1083
    %1587 = vmatmul.bf16.gmra.mxu0 %v400
    %v1588 = vpop.f32.mrf.mxu0
    %v1589 = vadd.f32 %v1575, %v1588
    %v1590 = vpop.f32.mrf.mxu0
    %v1591 = vadd.f32 %v1577, %v1590
    %1592 = vdwg.mxu0
    %1593 = vmatpush.bf16.msra.mxu0 %v1143
    %1594 = vmatpush.bf16.msra.mxu0 %v1139
    %1595 = vmatpush.bf16.msra.mxu0 %v1135
    %1596 = vmatpush.bf16.msra.mxu0 %v1131
    %1597 = vmatpush.bf16.msra.mxu0 %v1127
    %1598 = vmatpush.bf16.msra.mxu0 %v1123
    %1599 = vmatpush.bf16.msra.mxu0 %v1119
    %1600 = vmatpush.bf16.msra.mxu0 %v1115
    %1601 = vmatmul.bf16.gmra.mxu0 %v401
    %v1602 = vpop.f32.mrf.mxu0
    %v1603 = vadd.f32 %v1589, %v1602
    %v1604 = vpop.f32.mrf.mxu0
    %v1605 = vadd.f32 %v1591, %v1604
    %1606 = vdwg.mxu0
    %1607 = vmatpush.bf16.msra.mxu0 %v1175
    %1608 = vmatpush.bf16.msra.mxu0 %v1171
    %1609 = vmatpush.bf16.msra.mxu0 %v1167
    %1610 = vmatpush.bf16.msra.mxu0 %v1163
    %1611 = vmatpush.bf16.msra.mxu0 %v1159
    %1612 = vmatpush.bf16.msra.mxu0 %v1155
    %1613 = vmatpush.bf16.msra.mxu0 %v1151
    %1614 = vmatpush.bf16.msra.mxu0 %v1147
    %1615 = vmatmul.bf16.gmra.mxu0 %v402
    %v1616 = vpop.f32.mrf.mxu0
    %v1617 = vadd.f32 %v1603, %v1616
    %v1618 = vpop.f32.mrf.mxu0
    %v1619 = vadd.f32 %v1605, %v1618
    %1620 = vdwg.mxu0
    %1621 = vmatpush.bf16.msra.mxu0 %v1016
    %1622 = vmatpush.bf16.msra.mxu0 %v1012
    %1623 = vmatpush.bf16.msra.mxu0 %v1008
    %1624 = vmatpush.bf16.msra.mxu0 %v1004
    %1625 = vmatpush.bf16.msra.mxu0 %v1000
    %1626 = vmatpush.bf16.msra.mxu0 %v996
    %1627 = vmatpush.bf16.msra.mxu0 %v992
    %1628 = vmatpush.bf16.msra.mxu0 %v988
    %1629 = vmatmul.bf16.gmra.mxu0 %v397
    %v1630 = vpop.f32.mrf.mxu0
    %v1631 = vadd.f32 %v374, %v1630
    %v1632 = vpop.f32.mrf.mxu0
    %v1633 = vadd.f32 %v374, %v1632
    %1634 = vdwg.mxu0
    %1635 = vmatpush.bf16.msra.mxu0 %v1048
    %1636 = vmatpush.bf16.msra.mxu0 %v1044
    %1637 = vmatpush.bf16.msra.mxu0 %v1040
    %1638 = vmatpush.bf16.msra.mxu0 %v1036
    %1639 = vmatpush.bf16.msra.mxu0 %v1032
    %1640 = vmatpush.bf16.msra.mxu0 %v1028
    %1641 = vmatpush.bf16.msra.mxu0 %v1024
    %1642 = vmatpush.bf16.msra.mxu0 %v1020
    %1643 = vmatmul.bf16.gmra.mxu0 %v398
    %v1644 = vpop.f32.mrf.mxu0
    %v1645 = vadd.f32 %v1631, %v1644
    %v1646 = vpop.f32.mrf.mxu0
    %v1647 = vadd.f32 %v1633, %v1646
    %1648 = vdwg.mxu0
    %1649 = vmatpush.bf16.msra.mxu0 %v1080
    %1650 = vmatpush.bf16.msra.mxu0 %v1076
    %1651 = vmatpush.bf16.msra.mxu0 %v1072
    %1652 = vmatpush.bf16.msra.mxu0 %v1068
    %1653 = vmatpush.bf16.msra.mxu0 %v1064
    %1654 = vmatpush.bf16.msra.mxu0 %v1060
    %1655 = vmatpush.bf16.msra.mxu0 %v1056
    %1656 = vmatpush.bf16.msra.mxu0 %v1052
    %1657 = vmatmul.bf16.gmra.mxu0 %v399
    %v1658 = vpop.f32.mrf.mxu0
    %v1659 = vadd.f32 %v1645, %v1658
    %v1660 = vpop.f32.mrf.mxu0
    %v1661 = vadd.f32 %v1647, %v1660
    %1662 = vdwg.mxu0
    %1663 = vmatpush.bf16.msra.mxu0 %v1112
    %1664 = vmatpush.bf16.msra.mxu0 %v1108
    %1665 = vmatpush.bf16.msra.mxu0 %v1104
    %1666 = vmatpush.bf16.msra.mxu0 %v1100
    %1667 = vmatpush.bf16.msra.mxu0 %v1096
    %1668 = vmatpush.bf16.msra.mxu0 %v1092
    %1669 = vmatpush.bf16.msra.mxu0 %v1088
    %1670 = vmatpush.bf16.msra.mxu0 %v1084
    %1671 = vmatmul.bf16.gmra.mxu0 %v400
    %v1672 = vpop.f32.mrf.mxu0
    %v1673 = vadd.f32 %v1659, %v1672
    %v1674 = vpop.f32.mrf.mxu0
    %v1675 = vadd.f32 %v1661, %v1674
    %1676 = vdwg.mxu0
    %1677 = vmatpush.bf16.msra.mxu0 %v1144
    %1678 = vmatpush.bf16.msra.mxu0 %v1140
    %1679 = vmatpush.bf16.msra.mxu0 %v1136
    %1680 = vmatpush.bf16.msra.mxu0 %v1132
    %1681 = vmatpush.bf16.msra.mxu0 %v1128
    %1682 = vmatpush.bf16.msra.mxu0 %v1124
    %1683 = vmatpush.bf16.msra.mxu0 %v1120
    %1684 = vmatpush.bf16.msra.mxu0 %v1116
    %1685 = vmatmul.bf16.gmra.mxu0 %v401
    %v1686 = vpop.f32.mrf.mxu0
    %v1687 = vadd.f32 %v1673, %v1686
    %v1688 = vpop.f32.mrf.mxu0
    %v1689 = vadd.f32 %v1675, %v1688
    %1690 = vdwg.mxu0
    %1691 = vmatpush.bf16.msra.mxu0 %v1176
    %1692 = vmatpush.bf16.msra.mxu0 %v1172
    %1693 = vmatpush.bf16.msra.mxu0 %v1168
    %1694 = vmatpush.bf16.msra.mxu0 %v1164
    %1695 = vmatpush.bf16.msra.mxu0 %v1160
    %1696 = vmatpush.bf16.msra.mxu0 %v1156
    %1697 = vmatpush.bf16.msra.mxu0 %v1152
    %1698 = vmatpush.bf16.msra.mxu0 %v1148
    %1699 = vmatmul.bf16.gmra.mxu0 %v402
    %v1700 = vpop.f32.mrf.mxu0
    %v1701 = vadd.f32 %v1687, %v1700
    %v1702 = vpop.f32.mrf.mxu0
    %v1703 = vadd.f32 %v1689, %v1702
    %1704 = vdwg.mxu0
    %v1705 = vsel %vm166, 1, 0
    %v1706 = vsel %vm167, 1, 0
    %v1707 = vsel %vm168, 1, 0
    %v1708 = vsel %vm169, 1, 0
    %vm1709 = vcmp.eq.s32.totalorder %v1705, 1
    %vm1710 = vcmp.eq.s32.totalorder %v1706, 1
    %vm1711 = vcmp.eq.s32.totalorder %v1707, 1
    %vm1712 = vcmp.eq.s32.totalorder %v1708, 1
    %v1717 = vrot.slane %v1451, 6
    %v1718 = vrot.slane %v1535, 6
    %v1719 = vrot.slane %v1619, 6
    %v1720 = vrot.slane %v1703, 6
    %v1725 = vsel %vm1709, %v1449, %v1717
    %v1726 = vsel %vm1710, %v1533, %v1718
    %v1727 = vsel %vm1711, %v1617, %v1719
    %v1728 = vsel %vm1712, %v1701, %v1720
    %v1729 = vrot.slane %v1451, 2
    %v1730 = vrot.slane %v1535, 2
    %v1731 = vrot.slane %v1619, 2
    %v1732 = vrot.slane %v1703, 2
    %v1737 = vsel %vm1709, %v1449, %v1729
    %v1738 = vsel %vm1710, %v1533, %v1730
    %v1739 = vsel %vm1711, %v1617, %v1731
    %v1740 = vsel %vm1712, %v1701, %v1732
    %v1745 = vrot.slane %v1449, 6
    %v1746 = vrot.slane %v1533, 6
    %v1747 = vrot.slane %v1617, 6
    %v1748 = vrot.slane %v1701, 6
    %v1753 = vsel %vm1709, %v1451, %v1745
    %v1754 = vsel %vm1710, %v1535, %v1746
    %v1755 = vsel %vm1711, %v1619, %v1747
    %v1756 = vsel %vm1712, %v1703, %v1748
    %v1757 = vrot.slane %v1449, 2
    %v1758 = vrot.slane %v1533, 2
    %v1759 = vrot.slane %v1617, 2
    %v1760 = vrot.slane %v1701, 2
    %v1765 = vsel %vm1709, %v1451, %v1757
    %v1766 = vsel %vm1710, %v1535, %v1758
    %v1767 = vsel %vm1711, %v1619, %v1759
    %v1768 = vsel %vm1712, %v1703, %v1760
    %v1769 = vld [vmem:[%s2] sm:$0xff]
    %v1770 = vld [vmem:[%s2 + $0x8] sm:$0xff]
    %v1771 = vld [vmem:[%s2 + $0x10] sm:$0xff]
    %v1772 = vld [vmem:[%s2 + $0x18] sm:$0xff]
    %v1773 = vld [vmem:[%s2 + $0x20] sm:$0xff]
    %v1774 = vld [vmem:[%s2 + $0x28] sm:$0xff]
    %v1775 = vld [vmem:[%s2 + $0x30] sm:$0xff]
    %v1776 = vld [vmem:[%s2 + $0x38] sm:$0xff]
    %v1777 = vld [vmem:[%s2 + $0x40] sm:$0xff]
    %v1778 = vld [vmem:[%s2 + $0x48] sm:$0xff]
    %v1779 = vld [vmem:[%s2 + $0x50] sm:$0xff]
    %v1780 = vld [vmem:[%s2 + $0x58] sm:$0xff]
    %v1781 = vld [vmem:[%s2 + $0x60] sm:$0xff]
    %v1782 = vld [vmem:[%s2 + $0x68] sm:$0xff]
    %v1783 = vld [vmem:[%s2 + $0x70] sm:$0xff]
    %v1784 = vld [vmem:[%s2 + $0x78] sm:$0xff]
    %v1785 = vld [vmem:[%s2 + $0x80] sm:$0xff]
    %v1786 = vld [vmem:[%s2 + $0x88] sm:$0xff]
    %v1787 = vld [vmem:[%s2 + $0x90] sm:$0xff]
    %v1788 = vld [vmem:[%s2 + $0x98] sm:$0xff]
    %v1789 = vld [vmem:[%s2 + $0xa0] sm:$0xff]
    %v1790 = vld [vmem:[%s2 + $0xa8] sm:$0xff]
    %v1791 = vld [vmem:[%s2 + $0xb0] sm:$0xff]
    %v1792 = vld [vmem:[%s2 + $0xb8] sm:$0xff]
    %v1793 = vld [vmem:[%s2 + $0xc0] sm:$0xff]
    %v1794 = vld [vmem:[%s2 + $0xc8] sm:$0xff]
    %v1795 = vld [vmem:[%s2 + $0xd0] sm:$0xff]
    %v1796 = vld [vmem:[%s2 + $0xd8] sm:$0xff]
    %v1797 = vld [vmem:[%s2 + $0xe0] sm:$0xff]
    %v1798 = vld [vmem:[%s2 + $0xe8] sm:$0xff]
    %v1799 = vld [vmem:[%s2 + $0xf0] sm:$0xff]
    %v1800 = vld [vmem:[%s2 + $0xf8] sm:$0xff]
    %v1833 = vunpack.c.l.b16 %v1769
    %v1834 = vunpack.c.h.b16 %v1769
    %v1835 = vunpack.c.l.b16 %v1770
    %v1836 = vunpack.c.h.b16 %v1770
    %v1837 = vunpack.c.l.b16 %v1771
    %v1838 = vunpack.c.h.b16 %v1771
    %v1839 = vunpack.c.l.b16 %v1772
    %v1840 = vunpack.c.h.b16 %v1772
    %v1841 = vunpack.c.l.b16 %v1773
    %v1842 = vunpack.c.h.b16 %v1773
    %v1843 = vunpack.c.l.b16 %v1774
    %v1844 = vunpack.c.h.b16 %v1774
    %v1845 = vunpack.c.l.b16 %v1775
    %v1846 = vunpack.c.h.b16 %v1775
    %v1847 = vunpack.c.l.b16 %v1776
    %v1848 = vunpack.c.h.b16 %v1776
    %v1849 = vunpack.c.l.b16 %v1777
    %v1850 = vunpack.c.h.b16 %v1777
    %v1851 = vunpack.c.l.b16 %v1778
    %v1852 = vunpack.c.h.b16 %v1778
    %v1853 = vunpack.c.l.b16 %v1779
    %v1854 = vunpack.c.h.b16 %v1779
    %v1855 = vunpack.c.l.b16 %v1780
    %v1856 = vunpack.c.h.b16 %v1780
    %v1857 = vunpack.c.l.b16 %v1781
    %v1858 = vunpack.c.h.b16 %v1781
    %v1859 = vunpack.c.l.b16 %v1782
    %v1860 = vunpack.c.h.b16 %v1782
    %v1861 = vunpack.c.l.b16 %v1783
    %v1862 = vunpack.c.h.b16 %v1783
    %v1863 = vunpack.c.l.b16 %v1784
    %v1864 = vunpack.c.h.b16 %v1784
    %v1865 = vunpack.c.l.b16 %v1785
    %v1866 = vunpack.c.h.b16 %v1785
    %v1867 = vunpack.c.l.b16 %v1786
    %v1868 = vunpack.c.h.b16 %v1786
    %v1869 = vunpack.c.l.b16 %v1787
    %v1870 = vunpack.c.h.b16 %v1787
    %v1871 = vunpack.c.l.b16 %v1788
    %v1872 = vunpack.c.h.b16 %v1788
    %v1873 = vunpack.c.l.b16 %v1789
    %v1874 = vunpack.c.h.b16 %v1789
    %v1875 = vunpack.c.l.b16 %v1790
    %v1876 = vunpack.c.h.b16 %v1790
    %v1877 = vunpack.c.l.b16 %v1791
    %v1878 = vunpack.c.h.b16 %v1791
    %v1879 = vunpack.c.l.b16 %v1792
    %v1880 = vunpack.c.h.b16 %v1792
    %v1881 = vunpack.c.l.b16 %v1793
    %v1882 = vunpack.c.h.b16 %v1793
    %v1883 = vunpack.c.l.b16 %v1794
    %v1884 = vunpack.c.h.b16 %v1794
    %v1885 = vunpack.c.l.b16 %v1795
    %v1886 = vunpack.c.h.b16 %v1795
    %v1887 = vunpack.c.l.b16 %v1796
    %v1888 = vunpack.c.h.b16 %v1796
    %v1889 = vunpack.c.l.b16 %v1797
    %v1890 = vunpack.c.h.b16 %v1797
    %v1891 = vunpack.c.l.b16 %v1798
    %v1892 = vunpack.c.h.b16 %v1798
    %v1893 = vunpack.c.l.b16 %v1799
    %v1894 = vunpack.c.h.b16 %v1799
    %v1895 = vunpack.c.l.b16 %v1800
    %v1896 = vunpack.c.h.b16 %v1800
    %v1897 = vpack.c.b16 %v1837, %v1833
    %v1898 = vpack.c.b16 %v1838, %v1834
    %v1899 = vpack.c.b16 %v1839, %v1835
    %v1900 = vpack.c.b16 %v1840, %v1836
    %v1901 = vpack.c.b16 %v1845, %v1841
    %v1902 = vpack.c.b16 %v1846, %v1842
    %v1903 = vpack.c.b16 %v1847, %v1843
    %v1904 = vpack.c.b16 %v1848, %v1844
    %v1905 = vpack.c.b16 %v1853, %v1849
    %v1906 = vpack.c.b16 %v1854, %v1850
    %v1907 = vpack.c.b16 %v1855, %v1851
    %v1908 = vpack.c.b16 %v1856, %v1852
    %v1909 = vpack.c.b16 %v1861, %v1857
    %v1910 = vpack.c.b16 %v1862, %v1858
    %v1911 = vpack.c.b16 %v1863, %v1859
    %v1912 = vpack.c.b16 %v1864, %v1860
    %v1913 = vpack.c.b16 %v1869, %v1865
    %v1914 = vpack.c.b16 %v1870, %v1866
    %v1915 = vpack.c.b16 %v1871, %v1867
    %v1916 = vpack.c.b16 %v1872, %v1868
    %v1917 = vpack.c.b16 %v1877, %v1873
    %v1918 = vpack.c.b16 %v1878, %v1874
    %v1919 = vpack.c.b16 %v1879, %v1875
    %v1920 = vpack.c.b16 %v1880, %v1876
    %v1921 = vpack.c.b16 %v1885, %v1881
    %v1922 = vpack.c.b16 %v1886, %v1882
    %v1923 = vpack.c.b16 %v1887, %v1883
    %v1924 = vpack.c.b16 %v1888, %v1884
    %v1925 = vpack.c.b16 %v1893, %v1889
    %v1926 = vpack.c.b16 %v1894, %v1890
    %v1927 = vpack.c.b16 %v1895, %v1891
    %v1928 = vpack.c.b16 %v1896, %v1892
    %1961 = vmatpush.bf16.msra.mxu0 %v1925
    %1962 = vmatpush.bf16.msra.mxu0 %v1921
    %1963 = vmatpush.bf16.msra.mxu0 %v1917
    %1964 = vmatpush.bf16.msra.mxu0 %v1913
    %1965 = vmatpush.bf16.msra.mxu0 %v1909
    %1966 = vmatpush.bf16.msra.mxu0 %v1905
    %1967 = vmatpush.bf16.msra.mxu0 %v1901
    %1968 = vmatpush.bf16.msra.mxu0 %v1897
    %1969 = vmatmul.bf16.gmra.mxu0 0
    %v1970 = vpop.f32.mrf.mxu0
    %v1971 = vadd.f32 0.0, %v1970
    %v1972 = vpop.f32.mrf.mxu0
    %1973 = vdwg.mxu0
    %1974 = vmatpush.bf16.msra.mxu0 %v1926
    %1975 = vmatpush.bf16.msra.mxu0 %v1922
    %1976 = vmatpush.bf16.msra.mxu0 %v1918
    %1977 = vmatpush.bf16.msra.mxu0 %v1914
    %1978 = vmatpush.bf16.msra.mxu0 %v1910
    %1979 = vmatpush.bf16.msra.mxu0 %v1906
    %1980 = vmatpush.bf16.msra.mxu0 %v1902
    %1981 = vmatpush.bf16.msra.mxu0 %v1898
    %1982 = vmatmul.bf16.gmra.mxu0 0
    %v1983 = vpop.f32.mrf.mxu0
    %v1984 = vadd.f32 0.0, %v1983
    %v1985 = vpop.f32.mrf.mxu0
    %1986 = vdwg.mxu0
    %1987 = vmatpush.bf16.msra.mxu0 %v1927
    %1988 = vmatpush.bf16.msra.mxu0 %v1923
    %1989 = vmatpush.bf16.msra.mxu0 %v1919
    %1990 = vmatpush.bf16.msra.mxu0 %v1915
    %1991 = vmatpush.bf16.msra.mxu0 %v1911
    %1992 = vmatpush.bf16.msra.mxu0 %v1907
    %1993 = vmatpush.bf16.msra.mxu0 %v1903
    %1994 = vmatpush.bf16.msra.mxu0 %v1899
    %1995 = vmatmul.bf16.gmra.mxu0 0
    %v1996 = vpop.f32.mrf.mxu0
    %v1997 = vadd.f32 0.0, %v1996
    %v1998 = vpop.f32.mrf.mxu0
    %1999 = vdwg.mxu0
    %2000 = vmatpush.bf16.msra.mxu0 %v1928
    %2001 = vmatpush.bf16.msra.mxu0 %v1924
    %2002 = vmatpush.bf16.msra.mxu0 %v1920
    %2003 = vmatpush.bf16.msra.mxu0 %v1916
    %2004 = vmatpush.bf16.msra.mxu0 %v1912
    %2005 = vmatpush.bf16.msra.mxu0 %v1908
    %2006 = vmatpush.bf16.msra.mxu0 %v1904
    %2007 = vmatpush.bf16.msra.mxu0 %v1900
    %2008 = vmatmul.bf16.gmra.mxu0 0
    %v2009 = vpop.f32.mrf.mxu0
    %v2010 = vadd.f32 0.0, %v2009
    %v2011 = vpop.f32.mrf.mxu0
    %2012 = vdwg.mxu0
    %v2013 = vadd.f32 %v1725, %v1971
    %v2014 = vadd.f32 %v1726, %v1984
    %v2015 = vadd.f32 %v1727, %v1997
    %v2016 = vadd.f32 %v1728, %v2010
    %v2017 = vxor.u32 %v2013, 2147483648
    %v2018 = vmul.f32 %v2017, 1.442695
    %v2019 = vpow.pop %v2018
    %v2020 = vadd.f32 %v2019, 1.0
    %v2021 = vrcp.pop %v2020
    %v2022 = vmul.f32 %v2020, %v2021
    %v2023 = vsub.f32 1.0, %v2022
    %v2024 = vmul.f32 %v2021, %v2023
    %v2025 = vadd.f32 %v2021, %v2024
    %vm2026 = vweird.f32 %v2020
    %vm2027 = vweird.f32 %v2021
    %vm2028 = vmor %vm2026, %vm2027
    %v2029 = vsel %vm2028, %v2021, %v2025
    %v2030 = vand.u32 2147483647, %v2020
    %vm2031 = vcmp.eq.f32.partialorder %v2030, 8.507059e+37
    %v2032 = vand.u32 %v2020, 2147483648
    %v2033 = vor.u32 1.1754944e-38, %v2032
    %v2034 = vsel %vm2031, %v2033, %v2029
    %v2035 = vmul.f32 1.0, %v2034
    %v2036 = vxor.u32 %v2014, 2147483648
    %v2037 = vmul.f32 %v2036, 1.442695
    %v2038 = vpow.pop %v2037
    %v2039 = vadd.f32 %v2038, 1.0
    %v2040 = vrcp.pop %v2039
    %v2041 = vmul.f32 %v2039, %v2040
    %v2042 = vsub.f32 1.0, %v2041
    %v2043 = vmul.f32 %v2040, %v2042
    %v2044 = vadd.f32 %v2040, %v2043
    %vm2045 = vweird.f32 %v2039
    %vm2046 = vweird.f32 %v2040
    %vm2047 = vmor %vm2045, %vm2046
    %v2048 = vsel %vm2047, %v2040, %v2044
    %v2049 = vand.u32 2147483647, %v2039
    %vm2050 = vcmp.eq.f32.partialorder %v2049, 8.507059e+37
    %v2051 = vand.u32 %v2039, 2147483648
    %v2052 = vor.u32 1.1754944e-38, %v2051
    %v2053 = vsel %vm2050, %v2052, %v2048
    %v2054 = vmul.f32 1.0, %v2053
    %v2055 = vtanh.pop %v2015
    %v2056 = vxor.u32 %v2016, 2147483648
    %v2057 = vmul.f32 %v2056, 1.442695
    %v2058 = vpow.pop %v2057
    %v2059 = vadd.f32 %v2058, 1.0
    %v2060 = vrcp.pop %v2059
    %v2061 = vmul.f32 %v2059, %v2060
    %v2062 = vsub.f32 1.0, %v2061
    %v2063 = vmul.f32 %v2060, %v2062
    %v2064 = vadd.f32 %v2060, %v2063
    %vm2065 = vweird.f32 %v2059
    %vm2066 = vweird.f32 %v2060
    %vm2067 = vmor %vm2065, %vm2066
    %v2068 = vsel %vm2067, %v2060, %v2064
    %v2069 = vand.u32 2147483647, %v2059
    %vm2070 = vcmp.eq.f32.partialorder %v2069, 8.507059e+37
    %v2071 = vand.u32 %v2059, 2147483648
    %v2072 = vor.u32 1.1754944e-38, %v2071
    %v2073 = vsel %vm2070, %v2072, %v2068
    %v2074 = vmul.f32 1.0, %v2073
    %v2075 = vmul.f32 %v2054, 0.0
    %v2076 = vmul.f32 %v2035, %v2055
    %v2077 = vadd.f32 %v2075, %v2076
    %v2078 = vtanh.pop %v2077
    %v2079 = vmul.f32 %v2074, %v2078
    %v2080 = vpack.c.bf16 %v2079, %v2079
    %2081 = vmatpush.bf16.msra.mxu0 %v1925
    %2082 = vmatpush.bf16.msra.mxu0 %v1921
    %2083 = vmatpush.bf16.msra.mxu0 %v1917
    %2084 = vmatpush.bf16.msra.mxu0 %v1913
    %2085 = vmatpush.bf16.msra.mxu0 %v1909
    %2086 = vmatpush.bf16.msra.mxu0 %v1905
    %2087 = vmatpush.bf16.msra.mxu0 %v1901
    %2088 = vmatpush.bf16.msra.mxu0 %v1897
    %2089 = vmatmul.bf16.gmra.mxu0 %v2080
    %v2090 = vpop.f32.mrf.mxu0
    %v2091 = vadd.f32 0.0, %v2090
    %v2092 = vpop.f32.mrf.mxu0
    %2093 = vdwg.mxu0
    %2094 = vmatpush.bf16.msra.mxu0 %v1926
    %2095 = vmatpush.bf16.msra.mxu0 %v1922
    %2096 = vmatpush.bf16.msra.mxu0 %v1918
    %2097 = vmatpush.bf16.msra.mxu0 %v1914
    %2098 = vmatpush.bf16.msra.mxu0 %v1910
    %2099 = vmatpush.bf16.msra.mxu0 %v1906
    %2100 = vmatpush.bf16.msra.mxu0 %v1902
    %2101 = vmatpush.bf16.msra.mxu0 %v1898
    %2102 = vmatmul.bf16.gmra.mxu0 %v2080
    %v2103 = vpop.f32.mrf.mxu0
    %v2104 = vadd.f32 0.0, %v2103
    %v2105 = vpop.f32.mrf.mxu0
    %2106 = vdwg.mxu0
    %2107 = vmatpush.bf16.msra.mxu0 %v1927
    %2108 = vmatpush.bf16.msra.mxu0 %v1923
    %2109 = vmatpush.bf16.msra.mxu0 %v1919
    %2110 = vmatpush.bf16.msra.mxu0 %v1915
    %2111 = vmatpush.bf16.msra.mxu0 %v1911
    %2112 = vmatpush.bf16.msra.mxu0 %v1907
    %2113 = vmatpush.bf16.msra.mxu0 %v1903
    %2114 = vmatpush.bf16.msra.mxu0 %v1899
    %2115 = vmatmul.bf16.gmra.mxu0 %v2080
    %v2116 = vpop.f32.mrf.mxu0
    %v2117 = vadd.f32 0.0, %v2116
    %v2118 = vpop.f32.mrf.mxu0
    %2119 = vdwg.mxu0
    %2120 = vmatpush.bf16.msra.mxu0 %v1928
    %2121 = vmatpush.bf16.msra.mxu0 %v1924
    %2122 = vmatpush.bf16.msra.mxu0 %v1920
    %2123 = vmatpush.bf16.msra.mxu0 %v1916
    %2124 = vmatpush.bf16.msra.mxu0 %v1912
    %2125 = vmatpush.bf16.msra.mxu0 %v1908
    %2126 = vmatpush.bf16.msra.mxu0 %v1904
    %2127 = vmatpush.bf16.msra.mxu0 %v1900
    %2128 = vmatmul.bf16.gmra.mxu0 %v2080
    %v2129 = vpop.f32.mrf.mxu0
    %v2130 = vadd.f32 0.0, %v2129
    %v2131 = vpop.f32.mrf.mxu0
    %2132 = vdwg.mxu0
    %v2137 = vrot.slane %v2091, 6
    %v2138 = vrot.slane %v2104, 6
    %v2139 = vrot.slane %v2117, 6
    %v2140 = vrot.slane %v2130, 6
    %v2145 = vadd.f32 %v1737, %v2137
    %v2146 = vadd.f32 %v1738, %v2138
    %v2147 = vadd.f32 %v1739, %v2139
    %v2148 = vadd.f32 %v1740, %v2140
    %v2149 = vxor.u32 %v2145, 2147483648
    %v2150 = vmul.f32 %v2149, 1.442695
    %v2151 = vpow.pop %v2150
    %v2152 = vadd.f32 %v2151, 1.0
    %v2153 = vrcp.pop %v2152
    %v2154 = vmul.f32 %v2152, %v2153
    %v2155 = vsub.f32 1.0, %v2154
    %v2156 = vmul.f32 %v2153, %v2155
    %v2157 = vadd.f32 %v2153, %v2156
    %vm2158 = vweird.f32 %v2152
    %vm2159 = vweird.f32 %v2153
    %vm2160 = vmor %vm2158, %vm2159
    %v2161 = vsel %vm2160, %v2153, %v2157
    %v2162 = vand.u32 2147483647, %v2152
    %vm2163 = vcmp.eq.f32.partialorder %v2162, 8.507059e+37
    %v2164 = vand.u32 %v2152, 2147483648
    %v2165 = vor.u32 1.1754944e-38, %v2164
    %v2166 = vsel %vm2163, %v2165, %v2161
    %v2167 = vmul.f32 1.0, %v2166
    %v2168 = vxor.u32 %v2146, 2147483648
    %v2169 = vmul.f32 %v2168, 1.442695
    %v2170 = vpow.pop %v2169
    %v2171 = vadd.f32 %v2170, 1.0
    %v2172 = vrcp.pop %v2171
    %v2173 = vmul.f32 %v2171, %v2172
    %v2174 = vsub.f32 1.0, %v2173
    %v2175 = vmul.f32 %v2172, %v2174
    %v2176 = vadd.f32 %v2172, %v2175
    %vm2177 = vweird.f32 %v2171
    %vm2178 = vweird.f32 %v2172
    %vm2179 = vmor %vm2177, %vm2178
    %v2180 = vsel %vm2179, %v2172, %v2176
    %v2181 = vand.u32 2147483647, %v2171
    %vm2182 = vcmp.eq.f32.partialorder %v2181, 8.507059e+37
    %v2183 = vand.u32 %v2171, 2147483648
    %v2184 = vor.u32 1.1754944e-38, %v2183
    %v2185 = vsel %vm2182, %v2184, %v2180
    %v2186 = vmul.f32 1.0, %v2185
    %v2187 = vtanh.pop %v2147
    %v2188 = vxor.u32 %v2148, 2147483648
    %v2189 = vmul.f32 %v2188, 1.442695
    %v2190 = vpow.pop %v2189
    %v2191 = vadd.f32 %v2190, 1.0
    %v2192 = vrcp.pop %v2191
    %v2193 = vmul.f32 %v2191, %v2192
    %v2194 = vsub.f32 1.0, %v2193
    %v2195 = vmul.f32 %v2192, %v2194
    %v2196 = vadd.f32 %v2192, %v2195
    %vm2197 = vweird.f32 %v2191
    %vm2198 = vweird.f32 %v2192
    %vm2199 = vmor %vm2197, %vm2198
    %v2200 = vsel %vm2199, %v2192, %v2196
    %v2201 = vand.u32 2147483647, %v2191
    %vm2202 = vcmp.eq.f32.partialorder %v2201, 8.507059e+37
    %v2203 = vand.u32 %v2191, 2147483648
    %v2204 = vor.u32 1.1754944e-38, %v2203
    %v2205 = vsel %vm2202, %v2204, %v2200
    %v2206 = vmul.f32 1.0, %v2205
    %v2208 = vrot.slane %v2077, 6
    %v2210 = vmul.f32 %v2186, %v2208
    %v2211 = vmul.f32 %v2167, %v2187
    %v2212 = vadd.f32 %v2210, %v2211
    %v2213 = vtanh.pop %v2212
    %v2214 = vmul.f32 %v2206, %v2213
    %v2215 = vpack.c.bf16 %v2214, %v2214
    %v2217 = vrot.slane %v2215, 1
    %2219 = vmatpush.bf16.msra.mxu0 %v1925
    %2220 = vmatpush.bf16.msra.mxu0 %v1921
    %2221 = vmatpush.bf16.msra.mxu0 %v1917
    %2222 = vmatpush.bf16.msra.mxu0 %v1913
    %2223 = vmatpush.bf16.msra.mxu0 %v1909
    %2224 = vmatpush.bf16.msra.mxu0 %v1905
    %2225 = vmatpush.bf16.msra.mxu0 %v1901
    %2226 = vmatpush.bf16.msra.mxu0 %v1897
    %2227 = vmatmul.bf16.gmra.mxu0 %v2217
    %v2228 = vpop.f32.mrf.mxu0
    %v2229 = vadd.f32 0.0, %v2228
    %v2230 = vpop.f32.mrf.mxu0
    %2231 = vdwg.mxu0
    %2232 = vmatpush.bf16.msra.mxu0 %v1926
    %2233 = vmatpush.bf16.msra.mxu0 %v1922
    %2234 = vmatpush.bf16.msra.mxu0 %v1918
    %2235 = vmatpush.bf16.msra.mxu0 %v1914
    %2236 = vmatpush.bf16.msra.mxu0 %v1910
    %2237 = vmatpush.bf16.msra.mxu0 %v1906
    %2238 = vmatpush.bf16.msra.mxu0 %v1902
    %2239 = vmatpush.bf16.msra.mxu0 %v1898
    %2240 = vmatmul.bf16.gmra.mxu0 %v2217
    %v2241 = vpop.f32.mrf.mxu0
    %v2242 = vadd.f32 0.0, %v2241
    %v2243 = vpop.f32.mrf.mxu0
    %2244 = vdwg.mxu0
    %2245 = vmatpush.bf16.msra.mxu0 %v1927
    %2246 = vmatpush.bf16.msra.mxu0 %v1923
    %2247 = vmatpush.bf16.msra.mxu0 %v1919
    %2248 = vmatpush.bf16.msra.mxu0 %v1915
    %2249 = vmatpush.bf16.msra.mxu0 %v1911
    %2250 = vmatpush.bf16.msra.mxu0 %v1907
    %2251 = vmatpush.bf16.msra.mxu0 %v1903
    %2252 = vmatpush.bf16.msra.mxu0 %v1899
    %2253 = vmatmul.bf16.gmra.mxu0 %v2217
    %v2254 = vpop.f32.mrf.mxu0
    %v2255 = vadd.f32 0.0, %v2254
    %v2256 = vpop.f32.mrf.mxu0
    %2257 = vdwg.mxu0
    %2258 = vmatpush.bf16.msra.mxu0 %v1928
    %2259 = vmatpush.bf16.msra.mxu0 %v1924
    %2260 = vmatpush.bf16.msra.mxu0 %v1920
    %2261 = vmatpush.bf16.msra.mxu0 %v1916
    %2262 = vmatpush.bf16.msra.mxu0 %v1912
    %2263 = vmatpush.bf16.msra.mxu0 %v1908
    %2264 = vmatpush.bf16.msra.mxu0 %v1904
    %2265 = vmatpush.bf16.msra.mxu0 %v1900
    %2266 = vmatmul.bf16.gmra.mxu0 %v2217
    %v2267 = vpop.f32.mrf.mxu0
    %v2268 = vadd.f32 0.0, %v2267
    %v2269 = vpop.f32.mrf.mxu0
    %2270 = vdwg.mxu0
    %v2275 = vrot.slane %v2229, 4
    %v2276 = vrot.slane %v2242, 4
    %v2277 = vrot.slane %v2255, 4
    %v2278 = vrot.slane %v2268, 4
    %v2283 = vadd.f32 %v1725, %v2275
    %v2284 = vadd.f32 %v1726, %v2276
    %v2285 = vadd.f32 %v1727, %v2277
    %v2286 = vadd.f32 %v1728, %v2278
    %v2287 = vxor.u32 %v2283, 2147483648
    %v2288 = vmul.f32 %v2287, 1.442695
    %v2289 = vpow.pop %v2288
    %v2290 = vadd.f32 %v2289, 1.0
    %v2291 = vrcp.pop %v2290
    %v2292 = vmul.f32 %v2290, %v2291
    %v2293 = vsub.f32 1.0, %v2292
    %v2294 = vmul.f32 %v2291, %v2293
    %v2295 = vadd.f32 %v2291, %v2294
    %vm2296 = vweird.f32 %v2290
    %vm2297 = vweird.f32 %v2291
    %vm2298 = vmor %vm2296, %vm2297
    %v2299 = vsel %vm2298, %v2291, %v2295
    %v2300 = vand.u32 2147483647, %v2290
    %vm2301 = vcmp.eq.f32.partialorder %v2300, 8.507059e+37
    %v2302 = vand.u32 %v2290, 2147483648
    %v2303 = vor.u32 1.1754944e-38, %v2302
    %v2304 = vsel %vm2301, %v2303, %v2299
    %v2305 = vmul.f32 1.0, %v2304
    %v2306 = vxor.u32 %v2284, 2147483648
    %v2307 = vmul.f32 %v2306, 1.442695
    %v2308 = vpow.pop %v2307
    %v2309 = vadd.f32 %v2308, 1.0
    %v2310 = vrcp.pop %v2309
    %v2311 = vmul.f32 %v2309, %v2310
    %v2312 = vsub.f32 1.0, %v2311
    %v2313 = vmul.f32 %v2310, %v2312
    %v2314 = vadd.f32 %v2310, %v2313
    %vm2315 = vweird.f32 %v2309
    %vm2316 = vweird.f32 %v2310
    %vm2317 = vmor %vm2315, %vm2316
    %v2318 = vsel %vm2317, %v2310, %v2314
    %v2319 = vand.u32 2147483647, %v2309
    %vm2320 = vcmp.eq.f32.partialorder %v2319, 8.507059e+37
    %v2321 = vand.u32 %v2309, 2147483648
    %v2322 = vor.u32 1.1754944e-38, %v2321
    %v2323 = vsel %vm2320, %v2322, %v2318
    %v2324 = vmul.f32 1.0, %v2323
    %v2325 = vtanh.pop %v2285
    %v2326 = vxor.u32 %v2286, 2147483648
    %v2327 = vmul.f32 %v2326, 1.442695
    %v2328 = vpow.pop %v2327
    %v2329 = vadd.f32 %v2328, 1.0
    %v2330 = vrcp.pop %v2329
    %v2331 = vmul.f32 %v2329, %v2330
    %v2332 = vsub.f32 1.0, %v2331
    %v2333 = vmul.f32 %v2330, %v2332
    %v2334 = vadd.f32 %v2330, %v2333
    %vm2335 = vweird.f32 %v2329
    %vm2336 = vweird.f32 %v2330
    %vm2337 = vmor %vm2335, %vm2336
    %v2338 = vsel %vm2337, %v2330, %v2334
    %v2339 = vand.u32 2147483647, %v2329
    %vm2340 = vcmp.eq.f32.partialorder %v2339, 8.507059e+37
    %v2341 = vand.u32 %v2329, 2147483648
    %v2342 = vor.u32 1.1754944e-38, %v2341
    %v2343 = vsel %vm2340, %v2342, %v2338
    %v2344 = vmul.f32 1.0, %v2343
    %v2346 = vrot.slane %v2212, 6
    %v2348 = vmul.f32 %v2324, %v2346
    %v2349 = vmul.f32 %v2305, %v2325
    %v2350 = vadd.f32 %v2348, %v2349
    %v2351 = vtanh.pop %v2350
    %v2352 = vmul.f32 %v2344, %v2351
    %v2353 = vpack.c.bf16 %v2352, %v2352
    %v2355 = vrot.slane %v2353, 2
    %2357 = vmatpush.bf16.msra.mxu0 %v1925
    %2358 = vmatpush.bf16.msra.mxu0 %v1921
    %2359 = vmatpush.bf16.msra.mxu0 %v1917
    %2360 = vmatpush.bf16.msra.mxu0 %v1913
    %2361 = vmatpush.bf16.msra.mxu0 %v1909
    %2362 = vmatpush.bf16.msra.mxu0 %v1905
    %2363 = vmatpush.bf16.msra.mxu0 %v1901
    %2364 = vmatpush.bf16.msra.mxu0 %v1897
    %2365 = vmatmul.bf16.gmra.mxu0 %v2355
    %v2366 = vpop.f32.mrf.mxu0
    %v2367 = vadd.f32 0.0, %v2366
    %v2368 = vpop.f32.mrf.mxu0
    %2369 = vdwg.mxu0
    %2370 = vmatpush.bf16.msra.mxu0 %v1926
    %2371 = vmatpush.bf16.msra.mxu0 %v1922
    %2372 = vmatpush.bf16.msra.mxu0 %v1918
    %2373 = vmatpush.bf16.msra.mxu0 %v1914
    %2374 = vmatpush.bf16.msra.mxu0 %v1910
    %2375 = vmatpush.bf16.msra.mxu0 %v1906
    %2376 = vmatpush.bf16.msra.mxu0 %v1902
    %2377 = vmatpush.bf16.msra.mxu0 %v1898
    %2378 = vmatmul.bf16.gmra.mxu0 %v2355
    %v2379 = vpop.f32.mrf.mxu0
    %v2380 = vadd.f32 0.0, %v2379
    %v2381 = vpop.f32.mrf.mxu0
    %2382 = vdwg.mxu0
    %2383 = vmatpush.bf16.msra.mxu0 %v1927
    %2384 = vmatpush.bf16.msra.mxu0 %v1923
    %2385 = vmatpush.bf16.msra.mxu0 %v1919
    %2386 = vmatpush.bf16.msra.mxu0 %v1915
    %2387 = vmatpush.bf16.msra.mxu0 %v1911
    %2388 = vmatpush.bf16.msra.mxu0 %v1907
    %2389 = vmatpush.bf16.msra.mxu0 %v1903
    %2390 = vmatpush.bf16.msra.mxu0 %v1899
    %2391 = vmatmul.bf16.gmra.mxu0 %v2355
    %v2392 = vpop.f32.mrf.mxu0
    %v2393 = vadd.f32 0.0, %v2392
    %v2394 = vpop.f32.mrf.mxu0
    %2395 = vdwg.mxu0
    %2396 = vmatpush.bf16.msra.mxu0 %v1928
    %2397 = vmatpush.bf16.msra.mxu0 %v1924
    %2398 = vmatpush.bf16.msra.mxu0 %v1920
    %2399 = vmatpush.bf16.msra.mxu0 %v1916
    %2400 = vmatpush.bf16.msra.mxu0 %v1912
    %2401 = vmatpush.bf16.msra.mxu0 %v1908
    %2402 = vmatpush.bf16.msra.mxu0 %v1904
    %2403 = vmatpush.bf16.msra.mxu0 %v1900
    %2404 = vmatmul.bf16.gmra.mxu0 %v2355
    %v2405 = vpop.f32.mrf.mxu0
    %v2406 = vadd.f32 0.0, %v2405
    %v2407 = vpop.f32.mrf.mxu0
    %2408 = vdwg.mxu0
    %v2413 = vrot.slane %v2367, 2
    %v2414 = vrot.slane %v2380, 2
    %v2415 = vrot.slane %v2393, 2
    %v2416 = vrot.slane %v2406, 2
    %v2421 = vadd.f32 %v1737, %v2413
    %v2422 = vadd.f32 %v1738, %v2414
    %v2423 = vadd.f32 %v1739, %v2415
    %v2424 = vadd.f32 %v1740, %v2416
    %v2425 = vxor.u32 %v2421, 2147483648
    %v2426 = vmul.f32 %v2425, 1.442695
    %v2427 = vpow.pop %v2426
    %v2428 = vadd.f32 %v2427, 1.0
    %v2429 = vrcp.pop %v2428
    %v2430 = vmul.f32 %v2428, %v2429
    %v2431 = vsub.f32 1.0, %v2430
    %v2432 = vmul.f32 %v2429, %v2431
    %v2433 = vadd.f32 %v2429, %v2432
    %vm2434 = vweird.f32 %v2428
    %vm2435 = vweird.f32 %v2429
    %vm2436 = vmor %vm2434, %vm2435
    %v2437 = vsel %vm2436, %v2429, %v2433
    %v2438 = vand.u32 2147483647, %v2428
    %vm2439 = vcmp.eq.f32.partialorder %v2438, 8.507059e+37
    %v2440 = vand.u32 %v2428, 2147483648
    %v2441 = vor.u32 1.1754944e-38, %v2440
    %v2442 = vsel %vm2439, %v2441, %v2437
    %v2443 = vmul.f32 1.0, %v2442
    %v2444 = vxor.u32 %v2422, 2147483648
    %v2445 = vmul.f32 %v2444, 1.442695
    %v2446 = vpow.pop %v2445
    %v2447 = vadd.f32 %v2446, 1.0
    %v2448 = vrcp.pop %v2447
    %v2449 = vmul.f32 %v2447, %v2448
    %v2450 = vsub.f32 1.0, %v2449
    %v2451 = vmul.f32 %v2448, %v2450
    %v2452 = vadd.f32 %v2448, %v2451
    %vm2453 = vweird.f32 %v2447
    %vm2454 = vweird.f32 %v2448
    %vm2455 = vmor %vm2453, %vm2454
    %v2456 = vsel %vm2455, %v2448, %v2452
    %v2457 = vand.u32 2147483647, %v2447
    %vm2458 = vcmp.eq.f32.partialorder %v2457, 8.507059e+37
    %v2459 = vand.u32 %v2447, 2147483648
    %v2460 = vor.u32 1.1754944e-38, %v2459
    %v2461 = vsel %vm2458, %v2460, %v2456
    %v2462 = vmul.f32 1.0, %v2461
    %v2463 = vtanh.pop %v2423
    %v2464 = vxor.u32 %v2424, 2147483648
    %v2465 = vmul.f32 %v2464, 1.442695
    %v2466 = vpow.pop %v2465
    %v2467 = vadd.f32 %v2466, 1.0
    %v2468 = vrcp.pop %v2467
    %v2469 = vmul.f32 %v2467, %v2468
    %v2470 = vsub.f32 1.0, %v2469
    %v2471 = vmul.f32 %v2468, %v2470
    %v2472 = vadd.f32 %v2468, %v2471
    %vm2473 = vweird.f32 %v2467
    %vm2474 = vweird.f32 %v2468
    %vm2475 = vmor %vm2473, %vm2474
    %v2476 = vsel %vm2475, %v2468, %v2472
    %v2477 = vand.u32 2147483647, %v2467
    %vm2478 = vcmp.eq.f32.partialorder %v2477, 8.507059e+37
    %v2479 = vand.u32 %v2467, 2147483648
    %v2480 = vor.u32 1.1754944e-38, %v2479
    %v2481 = vsel %vm2478, %v2480, %v2476
    %v2482 = vmul.f32 1.0, %v2481
    %v2484 = vrot.slane %v2350, 6
    %v2486 = vmul.f32 %v2462, %v2484
    %v2487 = vmul.f32 %v2443, %v2463
    %v2488 = vadd.f32 %v2486, %v2487
    %v2489 = vtanh.pop %v2488
    %v2490 = vmul.f32 %v2482, %v2489
    %v2491 = vpack.c.bf16 %v2490, %v2490
    %v2493 = vrot.slane %v2491, 3
    %2495 = vmatpush.bf16.msra.mxu0 %v1925
    %2496 = vmatpush.bf16.msra.mxu0 %v1921
    %2497 = vmatpush.bf16.msra.mxu0 %v1917
    %2498 = vmatpush.bf16.msra.mxu0 %v1913
    %2499 = vmatpush.bf16.msra.mxu0 %v1909
    %2500 = vmatpush.bf16.msra.mxu0 %v1905
    %2501 = vmatpush.bf16.msra.mxu0 %v1901
    %2502 = vmatpush.bf16.msra.mxu0 %v1897
    %2503 = vmatmul.bf16.gmra.mxu0 %v2493
    %v2504 = vpop.f32.mrf.mxu0
    %v2505 = vadd.f32 0.0, %v2504
    %v2506 = vpop.f32.mrf.mxu0
    %2507 = vdwg.mxu0
    %2508 = vmatpush.bf16.msra.mxu0 %v1926
    %2509 = vmatpush.bf16.msra.mxu0 %v1922
    %2510 = vmatpush.bf16.msra.mxu0 %v1918
    %2511 = vmatpush.bf16.msra.mxu0 %v1914
    %2512 = vmatpush.bf16.msra.mxu0 %v1910
    %2513 = vmatpush.bf16.msra.mxu0 %v1906
    %2514 = vmatpush.bf16.msra.mxu0 %v1902
    %2515 = vmatpush.bf16.msra.mxu0 %v1898
    %2516 = vmatmul.bf16.gmra.mxu0 %v2493
    %v2517 = vpop.f32.mrf.mxu0
    %v2518 = vadd.f32 0.0, %v2517
    %v2519 = vpop.f32.mrf.mxu0
    %2520 = vdwg.mxu0
    %2521 = vmatpush.bf16.msra.mxu0 %v1927
    %2522 = vmatpush.bf16.msra.mxu0 %v1923
    %2523 = vmatpush.bf16.msra.mxu0 %v1919
    %2524 = vmatpush.bf16.msra.mxu0 %v1915
    %2525 = vmatpush.bf16.msra.mxu0 %v1911
    %2526 = vmatpush.bf16.msra.mxu0 %v1907
    %2527 = vmatpush.bf16.msra.mxu0 %v1903
    %2528 = vmatpush.bf16.msra.mxu0 %v1899
    %2529 = vmatmul.bf16.gmra.mxu0 %v2493
    %v2530 = vpop.f32.mrf.mxu0
    %v2531 = vadd.f32 0.0, %v2530
    %v2532 = vpop.f32.mrf.mxu0
    %2533 = vdwg.mxu0
    %2534 = vmatpush.bf16.msra.mxu0 %v1928
    %2535 = vmatpush.bf16.msra.mxu0 %v1924
    %2536 = vmatpush.bf16.msra.mxu0 %v1920
    %2537 = vmatpush.bf16.msra.mxu0 %v1916
    %2538 = vmatpush.bf16.msra.mxu0 %v1912
    %2539 = vmatpush.bf16.msra.mxu0 %v1908
    %2540 = vmatpush.bf16.msra.mxu0 %v1904
    %2541 = vmatpush.bf16.msra.mxu0 %v1900
    %2542 = vmatmul.bf16.gmra.mxu0 %v2493
    %v2543 = vpop.f32.mrf.mxu0
    %v2544 = vadd.f32 0.0, %v2543
    %v2545 = vpop.f32.mrf.mxu0
    %2546 = vdwg.mxu0
    %v2547 = vadd.f32 %v1753, %v2505
    %v2548 = vadd.f32 %v1754, %v2518
    %v2549 = vadd.f32 %v1755, %v2531
    %v2550 = vadd.f32 %v1756, %v2544
    %v2551 = vxor.u32 %v2547, 2147483648
    %v2552 = vmul.f32 %v2551, 1.442695
    %v2553 = vpow.pop %v2552
    %v2554 = vadd.f32 %v2553, 1.0
    %v2555 = vrcp.pop %v2554
    %v2556 = vmul.f32 %v2554, %v2555
    %v2557 = vsub.f32 1.0, %v2556
    %v2558 = vmul.f32 %v2555, %v2557
    %v2559 = vadd.f32 %v2555, %v2558
    %vm2560 = vweird.f32 %v2554
    %vm2561 = vweird.f32 %v2555
    %vm2562 = vmor %vm2560, %vm2561
    %v2563 = vsel %vm2562, %v2555, %v2559
    %v2564 = vand.u32 2147483647, %v2554
    %vm2565 = vcmp.eq.f32.partialorder %v2564, 8.507059e+37
    %v2566 = vand.u32 %v2554, 2147483648
    %v2567 = vor.u32 1.1754944e-38, %v2566
    %v2568 = vsel %vm2565, %v2567, %v2563
    %v2569 = vmul.f32 1.0, %v2568
    %v2570 = vxor.u32 %v2548, 2147483648
    %v2571 = vmul.f32 %v2570, 1.442695
    %v2572 = vpow.pop %v2571
    %v2573 = vadd.f32 %v2572, 1.0
    %v2574 = vrcp.pop %v2573
    %v2575 = vmul.f32 %v2573, %v2574
    %v2576 = vsub.f32 1.0, %v2575
    %v2577 = vmul.f32 %v2574, %v2576
    %v2578 = vadd.f32 %v2574, %v2577
    %vm2579 = vweird.f32 %v2573
    %vm2580 = vweird.f32 %v2574
    %vm2581 = vmor %vm2579, %vm2580
    %v2582 = vsel %vm2581, %v2574, %v2578
    %v2583 = vand.u32 2147483647, %v2573
    %vm2584 = vcmp.eq.f32.partialorder %v2583, 8.507059e+37
    %v2585 = vand.u32 %v2573, 2147483648
    %v2586 = vor.u32 1.1754944e-38, %v2585
    %v2587 = vsel %vm2584, %v2586, %v2582
    %v2588 = vmul.f32 1.0, %v2587
    %v2589 = vtanh.pop %v2549
    %v2590 = vxor.u32 %v2550, 2147483648
    %v2591 = vmul.f32 %v2590, 1.442695
    %v2592 = vpow.pop %v2591
    %v2593 = vadd.f32 %v2592, 1.0
    %v2594 = vrcp.pop %v2593
    %v2595 = vmul.f32 %v2593, %v2594
    %v2596 = vsub.f32 1.0, %v2595
    %v2597 = vmul.f32 %v2594, %v2596
    %v2598 = vadd.f32 %v2594, %v2597
    %vm2599 = vweird.f32 %v2593
    %vm2600 = vweird.f32 %v2594
    %vm2601 = vmor %vm2599, %vm2600
    %v2602 = vsel %vm2601, %v2594, %v2598
    %v2603 = vand.u32 2147483647, %v2593
    %vm2604 = vcmp.eq.f32.partialorder %v2603, 8.507059e+37
    %v2605 = vand.u32 %v2593, 2147483648
    %v2606 = vor.u32 1.1754944e-38, %v2605
    %v2607 = vsel %vm2604, %v2606, %v2602
    %v2608 = vmul.f32 1.0, %v2607
    %v2610 = vrot.slane %v2488, 6
    %v2612 = vmul.f32 %v2588, %v2610
    %v2613 = vmul.f32 %v2569, %v2589
    %v2614 = vadd.f32 %v2612, %v2613
    %v2615 = vtanh.pop %v2614
    %v2616 = vmul.f32 %v2608, %v2615
    %v2617 = vpack.c.bf16 %v2616, %v2616
    %2618 = vmatpush.bf16.msra.mxu0 %v1925
    %2619 = vmatpush.bf16.msra.mxu0 %v1921
    %2620 = vmatpush.bf16.msra.mxu0 %v1917
    %2621 = vmatpush.bf16.msra.mxu0 %v1913
    %2622 = vmatpush.bf16.msra.mxu0 %v1909
    %2623 = vmatpush.bf16.msra.mxu0 %v1905
    %2624 = vmatpush.bf16.msra.mxu0 %v1901
    %2625 = vmatpush.bf16.msra.mxu0 %v1897
    %2626 = vmatmul.bf16.gmra.mxu0 %v2617
    %v2627 = vpop.f32.mrf.mxu0
    %v2628 = vadd.f32 0.0, %v2627
    %v2629 = vpop.f32.mrf.mxu0
    %2630 = vdwg.mxu0
    %2631 = vmatpush.bf16.msra.mxu0 %v1926
    %2632 = vmatpush.bf16.msra.mxu0 %v1922
    %2633 = vmatpush.bf16.msra.mxu0 %v1918
    %2634 = vmatpush.bf16.msra.mxu0 %v1914
    %2635 = vmatpush.bf16.msra.mxu0 %v1910
    %2636 = vmatpush.bf16.msra.mxu0 %v1906
    %2637 = vmatpush.bf16.msra.mxu0 %v1902
    %2638 = vmatpush.bf16.msra.mxu0 %v1898
    %2639 = vmatmul.bf16.gmra.mxu0 %v2617
    %v2640 = vpop.f32.mrf.mxu0
    %v2641 = vadd.f32 0.0, %v2640
    %v2642 = vpop.f32.mrf.mxu0
    %2643 = vdwg.mxu0
    %2644 = vmatpush.bf16.msra.mxu0 %v1927
    %2645 = vmatpush.bf16.msra.mxu0 %v1923
    %2646 = vmatpush.bf16.msra.mxu0 %v1919
    %2647 = vmatpush.bf16.msra.mxu0 %v1915
    %2648 = vmatpush.bf16.msra.mxu0 %v1911
    %2649 = vmatpush.bf16.msra.mxu0 %v1907
    %2650 = vmatpush.bf16.msra.mxu0 %v1903
    %2651 = vmatpush.bf16.msra.mxu0 %v1899
    %2652 = vmatmul.bf16.gmra.mxu0 %v2617
    %v2653 = vpop.f32.mrf.mxu0
    %v2654 = vadd.f32 0.0, %v2653
    %v2655 = vpop.f32.mrf.mxu0
    %2656 = vdwg.mxu0
    %2657 = vmatpush.bf16.msra.mxu0 %v1928
    %2658 = vmatpush.bf16.msra.mxu0 %v1924
    %2659 = vmatpush.bf16.msra.mxu0 %v1920
    %2660 = vmatpush.bf16.msra.mxu0 %v1916
    %2661 = vmatpush.bf16.msra.mxu0 %v1912
    %2662 = vmatpush.bf16.msra.mxu0 %v1908
    %2663 = vmatpush.bf16.msra.mxu0 %v1904
    %2664 = vmatpush.bf16.msra.mxu0 %v1900
    %2665 = vmatmul.bf16.gmra.mxu0 %v2617
    %v2666 = vpop.f32.mrf.mxu0
    %v2667 = vadd.f32 0.0, %v2666
    %v2668 = vpop.f32.mrf.mxu0
    %2669 = vdwg.mxu0
    %v2674 = vrot.slane %v2628, 6
    %v2675 = vrot.slane %v2641, 6
    %v2676 = vrot.slane %v2654, 6
    %v2677 = vrot.slane %v2667, 6
    %v2682 = vadd.f32 %v1765, %v2674
    %v2683 = vadd.f32 %v1766, %v2675
    %v2684 = vadd.f32 %v1767, %v2676
    %v2685 = vadd.f32 %v1768, %v2677
    %v2686 = vxor.u32 %v2682, 2147483648
    %v2687 = vmul.f32 %v2686, 1.442695
    %v2688 = vpow.pop %v2687
    %v2689 = vadd.f32 %v2688, 1.0
    %v2690 = vrcp.pop %v2689
    %v2691 = vmul.f32 %v2689, %v2690
    %v2692 = vsub.f32 1.0, %v2691
    %v2693 = vmul.f32 %v2690, %v2692
    %v2694 = vadd.f32 %v2690, %v2693
    %vm2695 = vweird.f32 %v2689
    %vm2696 = vweird.f32 %v2690
    %vm2697 = vmor %vm2695, %vm2696
    %v2698 = vsel %vm2697, %v2690, %v2694
    %v2699 = vand.u32 2147483647, %v2689
    %vm2700 = vcmp.eq.f32.partialorder %v2699, 8.507059e+37
    %v2701 = vand.u32 %v2689, 2147483648
    %v2702 = vor.u32 1.1754944e-38, %v2701
    %v2703 = vsel %vm2700, %v2702, %v2698
    %v2704 = vmul.f32 1.0, %v2703
    %v2705 = vxor.u32 %v2683, 2147483648
    %v2706 = vmul.f32 %v2705, 1.442695
    %v2707 = vpow.pop %v2706
    %v2708 = vadd.f32 %v2707, 1.0
    %v2709 = vrcp.pop %v2708
    %v2710 = vmul.f32 %v2708, %v2709
    %v2711 = vsub.f32 1.0, %v2710
    %v2712 = vmul.f32 %v2709, %v2711
    %v2713 = vadd.f32 %v2709, %v2712
    %vm2714 = vweird.f32 %v2708
    %vm2715 = vweird.f32 %v2709
    %vm2716 = vmor %vm2714, %vm2715
    %v2717 = vsel %vm2716, %v2709, %v2713
    %v2718 = vand.u32 2147483647, %v2708
    %vm2719 = vcmp.eq.f32.partialorder %v2718, 8.507059e+37
    %v2720 = vand.u32 %v2708, 2147483648
    %v2721 = vor.u32 1.1754944e-38, %v2720
    %v2722 = vsel %vm2719, %v2721, %v2717
    %v2723 = vmul.f32 1.0, %v2722
    %v2724 = vtanh.pop %v2684
    %v2725 = vxor.u32 %v2685, 2147483648
    %v2726 = vmul.f32 %v2725, 1.442695
    %v2727 = vpow.pop %v2726
    %v2728 = vadd.f32 %v2727, 1.0
    %v2729 = vrcp.pop %v2728
    %v2730 = vmul.f32 %v2728, %v2729
    %v2731 = vsub.f32 1.0, %v2730
    %v2732 = vmul.f32 %v2729, %v2731
    %v2733 = vadd.f32 %v2729, %v2732
    %vm2734 = vweird.f32 %v2728
    %vm2735 = vweird.f32 %v2729
    %vm2736 = vmor %vm2734, %vm2735
    %v2737 = vsel %vm2736, %v2729, %v2733
    %v2738 = vand.u32 2147483647, %v2728
    %vm2739 = vcmp.eq.f32.partialorder %v2738, 8.507059e+37
    %v2740 = vand.u32 %v2728, 2147483648
    %v2741 = vor.u32 1.1754944e-38, %v2740
    %v2742 = vsel %vm2739, %v2741, %v2737
    %v2743 = vmul.f32 1.0, %v2742
    %v2745 = vrot.slane %v2614, 6
    %v2747 = vmul.f32 %v2723, %v2745
    %v2748 = vmul.f32 %v2704, %v2724
    %v2749 = vadd.f32 %v2747, %v2748
    %v2750 = vtanh.pop %v2749
    %v2751 = vmul.f32 %v2743, %v2750
    %v2752 = vpack.c.bf16 %v2751, %v2751
    %v2754 = vrot.slane %v2752, 1
    %2756 = vmatpush.bf16.msra.mxu0 %v1925
    %2757 = vmatpush.bf16.msra.mxu0 %v1921
    %2758 = vmatpush.bf16.msra.mxu0 %v1917
    %2759 = vmatpush.bf16.msra.mxu0 %v1913
    %2760 = vmatpush.bf16.msra.mxu0 %v1909
    %2761 = vmatpush.bf16.msra.mxu0 %v1905
    %2762 = vmatpush.bf16.msra.mxu0 %v1901
    %2763 = vmatpush.bf16.msra.mxu0 %v1897
    %2764 = vmatmul.bf16.gmra.mxu0 %v2754
    %v2765 = vpop.f32.mrf.mxu0
    %v2766 = vadd.f32 0.0, %v2765
    %v2767 = vpop.f32.mrf.mxu0
    %2768 = vdwg.mxu0
    %2769 = vmatpush.bf16.msra.mxu0 %v1926
    %2770 = vmatpush.bf16.msra.mxu0 %v1922
    %2771 = vmatpush.bf16.msra.mxu0 %v1918
    %2772 = vmatpush.bf16.msra.mxu0 %v1914
    %2773 = vmatpush.bf16.msra.mxu0 %v1910
    %2774 = vmatpush.bf16.msra.mxu0 %v1906
    %2775 = vmatpush.bf16.msra.mxu0 %v1902
    %2776 = vmatpush.bf16.msra.mxu0 %v1898
    %2777 = vmatmul.bf16.gmra.mxu0 %v2754
    %v2778 = vpop.f32.mrf.mxu0
    %v2779 = vadd.f32 0.0, %v2778
    %v2780 = vpop.f32.mrf.mxu0
    %2781 = vdwg.mxu0
    %2782 = vmatpush.bf16.msra.mxu0 %v1927
    %2783 = vmatpush.bf16.msra.mxu0 %v1923
    %2784 = vmatpush.bf16.msra.mxu0 %v1919
    %2785 = vmatpush.bf16.msra.mxu0 %v1915
    %2786 = vmatpush.bf16.msra.mxu0 %v1911
    %2787 = vmatpush.bf16.msra.mxu0 %v1907
    %2788 = vmatpush.bf16.msra.mxu0 %v1903
    %2789 = vmatpush.bf16.msra.mxu0 %v1899
    %2790 = vmatmul.bf16.gmra.mxu0 %v2754
    %v2791 = vpop.f32.mrf.mxu0
    %v2792 = vadd.f32 0.0, %v2791
    %v2793 = vpop.f32.mrf.mxu0
    %2794 = vdwg.mxu0
    %2795 = vmatpush.bf16.msra.mxu0 %v1928
    %2796 = vmatpush.bf16.msra.mxu0 %v1924
    %2797 = vmatpush.bf16.msra.mxu0 %v1920
    %2798 = vmatpush.bf16.msra.mxu0 %v1916
    %2799 = vmatpush.bf16.msra.mxu0 %v1912
    %2800 = vmatpush.bf16.msra.mxu0 %v1908
    %2801 = vmatpush.bf16.msra.mxu0 %v1904
    %2802 = vmatpush.bf16.msra.mxu0 %v1900
    %2803 = vmatmul.bf16.gmra.mxu0 %v2754
    %v2804 = vpop.f32.mrf.mxu0
    %v2805 = vadd.f32 0.0, %v2804
    %v2806 = vpop.f32.mrf.mxu0
    %2807 = vdwg.mxu0
    %v2812 = vrot.slane %v2766, 4
    %v2813 = vrot.slane %v2779, 4
    %v2814 = vrot.slane %v2792, 4
    %v2815 = vrot.slane %v2805, 4
    %v2820 = vadd.f32 %v1753, %v2812
    %v2821 = vadd.f32 %v1754, %v2813
    %v2822 = vadd.f32 %v1755, %v2814
    %v2823 = vadd.f32 %v1756, %v2815
    %v2824 = vxor.u32 %v2820, 2147483648
    %v2825 = vmul.f32 %v2824, 1.442695
    %v2826 = vpow.pop %v2825
    %v2827 = vadd.f32 %v2826, 1.0
    %v2828 = vrcp.pop %v2827
    %v2829 = vmul.f32 %v2827, %v2828
    %v2830 = vsub.f32 1.0, %v2829
    %v2831 = vmul.f32 %v2828, %v2830
    %v2832 = vadd.f32 %v2828, %v2831
    %vm2833 = vweird.f32 %v2827
    %vm2834 = vweird.f32 %v2828
    %vm2835 = vmor %vm2833, %vm2834
    %v2836 = vsel %vm2835, %v2828, %v2832
    %v2837 = vand.u32 2147483647, %v2827
    %vm2838 = vcmp.eq.f32.partialorder %v2837, 8.507059e+37
    %v2839 = vand.u32 %v2827, 2147483648
    %v2840 = vor.u32 1.1754944e-38, %v2839
    %v2841 = vsel %vm2838, %v2840, %v2836
    %v2842 = vmul.f32 1.0, %v2841
    %v2843 = vxor.u32 %v2821, 2147483648
    %v2844 = vmul.f32 %v2843, 1.442695
    %v2845 = vpow.pop %v2844
    %v2846 = vadd.f32 %v2845, 1.0
    %v2847 = vrcp.pop %v2846
    %v2848 = vmul.f32 %v2846, %v2847
    %v2849 = vsub.f32 1.0, %v2848
    %v2850 = vmul.f32 %v2847, %v2849
    %v2851 = vadd.f32 %v2847, %v2850
    %vm2852 = vweird.f32 %v2846
    %vm2853 = vweird.f32 %v2847
    %vm2854 = vmor %vm2852, %vm2853
    %v2855 = vsel %vm2854, %v2847, %v2851
    %v2856 = vand.u32 2147483647, %v2846
    %vm2857 = vcmp.eq.f32.partialorder %v2856, 8.507059e+37
    %v2858 = vand.u32 %v2846, 2147483648
    %v2859 = vor.u32 1.1754944e-38, %v2858
    %v2860 = vsel %vm2857, %v2859, %v2855
    %v2861 = vmul.f32 1.0, %v2860
    %v2862 = vtanh.pop %v2822
    %v2863 = vxor.u32 %v2823, 2147483648
    %v2864 = vmul.f32 %v2863, 1.442695
    %v2865 = vpow.pop %v2864
    %v2866 = vadd.f32 %v2865, 1.0
    %v2867 = vrcp.pop %v2866
    %v2868 = vmul.f32 %v2866, %v2867
    %v2869 = vsub.f32 1.0, %v2868
    %v2870 = vmul.f32 %v2867, %v2869
    %v2871 = vadd.f32 %v2867, %v2870
    %vm2872 = vweird.f32 %v2866
    %vm2873 = vweird.f32 %v2867
    %vm2874 = vmor %vm2872, %vm2873
    %v2875 = vsel %vm2874, %v2867, %v2871
    %v2876 = vand.u32 2147483647, %v2866
    %vm2877 = vcmp.eq.f32.partialorder %v2876, 8.507059e+37
    %v2878 = vand.u32 %v2866, 2147483648
    %v2879 = vor.u32 1.1754944e-38, %v2878
    %v2880 = vsel %vm2877, %v2879, %v2875
    %v2881 = vmul.f32 1.0, %v2880
    %v2883 = vrot.slane %v2749, 6
    %v2885 = vmul.f32 %v2861, %v2883
    %v2886 = vmul.f32 %v2842, %v2862
    %v2887 = vadd.f32 %v2885, %v2886
    %v2888 = vtanh.pop %v2887
    %v2889 = vmul.f32 %v2881, %v2888
    %v2890 = vpack.c.bf16 %v2889, %v2889
    %v2892 = vrot.slane %v2890, 2
    %2894 = vmatpush.bf16.msra.mxu0 %v1925
    %2895 = vmatpush.bf16.msra.mxu0 %v1921
    %2896 = vmatpush.bf16.msra.mxu0 %v1917
    %2897 = vmatpush.bf16.msra.mxu0 %v1913
    %2898 = vmatpush.bf16.msra.mxu0 %v1909
    %2899 = vmatpush.bf16.msra.mxu0 %v1905
    %2900 = vmatpush.bf16.msra.mxu0 %v1901
    %2901 = vmatpush.bf16.msra.mxu0 %v1897
    %2902 = vmatmul.bf16.gmra.mxu0 %v2892
    %v2903 = vpop.f32.mrf.mxu0
    %v2904 = vadd.f32 0.0, %v2903
    %v2905 = vpop.f32.mrf.mxu0
    %2906 = vdwg.mxu0
    %2907 = vmatpush.bf16.msra.mxu0 %v1926
    %2908 = vmatpush.bf16.msra.mxu0 %v1922
    %2909 = vmatpush.bf16.msra.mxu0 %v1918
    %2910 = vmatpush.bf16.msra.mxu0 %v1914
    %2911 = vmatpush.bf16.msra.mxu0 %v1910
    %2912 = vmatpush.bf16.msra.mxu0 %v1906
    %2913 = vmatpush.bf16.msra.mxu0 %v1902
    %2914 = vmatpush.bf16.msra.mxu0 %v1898
    %2915 = vmatmul.bf16.gmra.mxu0 %v2892
    %v2916 = vpop.f32.mrf.mxu0
    %v2917 = vadd.f32 0.0, %v2916
    %v2918 = vpop.f32.mrf.mxu0
    %2919 = vdwg.mxu0
    %2920 = vmatpush.bf16.msra.mxu0 %v1927
    %2921 = vmatpush.bf16.msra.mxu0 %v1923
    %2922 = vmatpush.bf16.msra.mxu0 %v1919
    %2923 = vmatpush.bf16.msra.mxu0 %v1915
    %2924 = vmatpush.bf16.msra.mxu0 %v1911
    %2925 = vmatpush.bf16.msra.mxu0 %v1907
    %2926 = vmatpush.bf16.msra.mxu0 %v1903
    %2927 = vmatpush.bf16.msra.mxu0 %v1899
    %2928 = vmatmul.bf16.gmra.mxu0 %v2892
    %v2929 = vpop.f32.mrf.mxu0
    %v2930 = vadd.f32 0.0, %v2929
    %v2931 = vpop.f32.mrf.mxu0
    %2932 = vdwg.mxu0
    %2933 = vmatpush.bf16.msra.mxu0 %v1928
    %2934 = vmatpush.bf16.msra.mxu0 %v1924
    %2935 = vmatpush.bf16.msra.mxu0 %v1920
    %2936 = vmatpush.bf16.msra.mxu0 %v1916
    %2937 = vmatpush.bf16.msra.mxu0 %v1912
    %2938 = vmatpush.bf16.msra.mxu0 %v1908
    %2939 = vmatpush.bf16.msra.mxu0 %v1904
    %2940 = vmatpush.bf16.msra.mxu0 %v1900
    %2941 = vmatmul.bf16.gmra.mxu0 %v2892
    %v2942 = vpop.f32.mrf.mxu0
    %v2943 = vadd.f32 0.0, %v2942
    %v2944 = vpop.f32.mrf.mxu0
    %2945 = vdwg.mxu0
    %v2950 = vrot.slane %v2904, 2
    %v2951 = vrot.slane %v2917, 2
    %v2952 = vrot.slane %v2930, 2
    %v2953 = vrot.slane %v2943, 2
    %v2958 = vadd.f32 %v1765, %v2950
    %v2959 = vadd.f32 %v1766, %v2951
    %v2960 = vadd.f32 %v1767, %v2952
    %v2961 = vadd.f32 %v1768, %v2953
    %v2962 = vxor.u32 %v2958, 2147483648
    %v2963 = vmul.f32 %v2962, 1.442695
    %v2964 = vpow.pop %v2963
    %v2965 = vadd.f32 %v2964, 1.0
    %v2966 = vrcp.pop %v2965
    %v2967 = vmul.f32 %v2965, %v2966
    %v2968 = vsub.f32 1.0, %v2967
    %v2969 = vmul.f32 %v2966, %v2968
    %v2970 = vadd.f32 %v2966, %v2969
    %vm2971 = vweird.f32 %v2965
    %vm2972 = vweird.f32 %v2966
    %vm2973 = vmor %vm2971, %vm2972
    %v2974 = vsel %vm2973, %v2966, %v2970
    %v2975 = vand.u32 2147483647, %v2965
    %vm2976 = vcmp.eq.f32.partialorder %v2975, 8.507059e+37
    %v2977 = vand.u32 %v2965, 2147483648
    %v2978 = vor.u32 1.1754944e-38, %v2977
    %v2979 = vsel %vm2976, %v2978, %v2974
    %v2980 = vmul.f32 1.0, %v2979
    %v2981 = vxor.u32 %v2959, 2147483648
    %v2982 = vmul.f32 %v2981, 1.442695
    %v2983 = vpow.pop %v2982
    %v2984 = vadd.f32 %v2983, 1.0
    %v2985 = vrcp.pop %v2984
    %v2986 = vmul.f32 %v2984, %v2985
    %v2987 = vsub.f32 1.0, %v2986
    %v2988 = vmul.f32 %v2985, %v2987
    %v2989 = vadd.f32 %v2985, %v2988
    %vm2990 = vweird.f32 %v2984
    %vm2991 = vweird.f32 %v2985
    %vm2992 = vmor %vm2990, %vm2991
    %v2993 = vsel %vm2992, %v2985, %v2989
    %v2994 = vand.u32 2147483647, %v2984
    %vm2995 = vcmp.eq.f32.partialorder %v2994, 8.507059e+37
    %v2996 = vand.u32 %v2984, 2147483648
    %v2997 = vor.u32 1.1754944e-38, %v2996
    %v2998 = vsel %vm2995, %v2997, %v2993
    %v2999 = vmul.f32 1.0, %v2998
    %v3000 = vtanh.pop %v2960
    %v3001 = vxor.u32 %v2961, 2147483648
    %v3002 = vmul.f32 %v3001, 1.442695
    %v3003 = vpow.pop %v3002
    %v3004 = vadd.f32 %v3003, 1.0
    %v3005 = vrcp.pop %v3004
    %v3006 = vmul.f32 %v3004, %v3005
    %v3007 = vsub.f32 1.0, %v3006
    %v3008 = vmul.f32 %v3005, %v3007
    %v3009 = vadd.f32 %v3005, %v3008
    %vm3010 = vweird.f32 %v3004
    %vm3011 = vweird.f32 %v3005
    %vm3012 = vmor %vm3010, %vm3011
    %v3013 = vsel %vm3012, %v3005, %v3009
    %v3014 = vand.u32 2147483647, %v3004
    %vm3015 = vcmp.eq.f32.partialorder %v3014, 8.507059e+37
    %v3016 = vand.u32 %v3004, 2147483648
    %v3017 = vor.u32 1.1754944e-38, %v3016
    %v3018 = vsel %vm3015, %v3017, %v3013
    %v3019 = vmul.f32 1.0, %v3018
    %v3021 = vrot.slane %v2887, 6
    %v3023 = vmul.f32 %v2999, %v3021
    %v3024 = vmul.f32 %v2980, %v3000
    %v3025 = vadd.f32 %v3023, %v3024
    %v3026 = vtanh.pop %v3025
    %v3027 = vmul.f32 %v3019, %v3026
    %v3028 = vsel %vm170, 1, 0
    %vm3029 = vcmp.eq.s32.totalorder %v3028, 1
    %v3031 = vrot.slane %v3027, 6
    %v3033 = vsel %vm3029, %v2079, %v3031
    %v3035 = vrot.slane %v2889, 2
    %v3037 = vsel %vm3029, %v2214, %v3035
    %v3039 = vrot.slane %v2751, 6
    %v3041 = vsel %vm3029, %v2352, %v3039
    %v3043 = vrot.slane %v2616, 2
    %v3045 = vsel %vm3029, %v2490, %v3043
    %v3047 = vrot.slane %v2490, 6
    %v3049 = vsel %vm3029, %v2616, %v3047
    %v3051 = vrot.slane %v2352, 2
    %v3053 = vsel %vm3029, %v2751, %v3051
    %v3055 = vrot.slane %v2214, 6
    %v3057 = vsel %vm3029, %v2889, %v3055
    %v3059 = vrot.slane %v2079, 2
    %v3061 = vsel %vm3029, %v3027, %v3059
    %vm3062 = vcmask 1041408
    %v3063 = vsel %vm3062, %v3033, %v3037
    %vm3064 = vcmask 1043456
    %v3065 = vsel %vm3064, %v3063, %v3041
    %vm3066 = vcmask 1045504
    %v3067 = vsel %vm3066, %v3065, %v3045
    %v3068 = vsel %vm3062, %v3049, %v3053
    %v3069 = vsel %vm3064, %v3068, %v3057
    %v3070 = vsel %vm3066, %v3069, %v3061
    %v3071 = vpack.c.bf16 %v3070, %v3067
    %v3072 = vld [vmem:[#allocation5] sm:$0xff]
    %v3073 = vld [vmem:[#allocation5 + $0x8] sm:$0xff]
    %v3074 = vld [vmem:[#allocation5 + $0x10] sm:$0xff]
    %v3075 = vld [vmem:[#allocation5 + $0x18] sm:$0xff]
    %v3076 = vld [vmem:[#allocation5 + $0x20] sm:$0xff]
    %v3077 = vld [vmem:[#allocation5 + $0x28] sm:$0xff]
    %v3078 = vld [vmem:[#allocation5 + $0x30] sm:$0xff]
    %v3079 = vld [vmem:[#allocation5 + $0x38] sm:$0xff]
    %v3080 = vld [vmem:[#allocation5 + $0x40] sm:$0xff]
    %v3081 = vld [vmem:[#allocation5 + $0x48] sm:$0xff]
    %v3082 = vld [vmem:[#allocation5 + $0x50] sm:$0xff]
    %v3083 = vld [vmem:[#allocation5 + $0x58] sm:$0xff]
    %v3084 = vld [vmem:[#allocation5 + $0x60] sm:$0xff]
    %v3085 = vld [vmem:[#allocation5 + $0x68] sm:$0xff]
    %v3086 = vld [vmem:[#allocation5 + $0x70] sm:$0xff]
    %v3087 = vld [vmem:[#allocation5 + $0x78] sm:$0xff]
    %v3088 = vld [vmem:[#allocation5 + $0x80] sm:$0xff]
    %v3089 = vld [vmem:[#allocation5 + $0x88] sm:$0xff]
    %v3090 = vld [vmem:[#allocation5 + $0x90] sm:$0xff]
    %v3091 = vld [vmem:[#allocation5 + $0x98] sm:$0xff]
    %v3092 = vld [vmem:[#allocation5 + $0xa0] sm:$0xff]
    %v3093 = vld [vmem:[#allocation5 + $0xa8] sm:$0xff]
    %v3094 = vld [vmem:[#allocation5 + $0xb0] sm:$0xff]
    %v3095 = vld [vmem:[#allocation5 + $0xb8] sm:$0xff]
    %v3096 = vld [vmem:[#allocation5 + $0xc0] sm:$0xff]
    %v3097 = vld [vmem:[#allocation5 + $0xc8] sm:$0xff]
    %v3098 = vld [vmem:[#allocation5 + $0xd0] sm:$0xff]
    %v3099 = vld [vmem:[#allocation5 + $0xd8] sm:$0xff]
    %v3100 = vld [vmem:[#allocation5 + $0xe0] sm:$0xff]
    %v3101 = vld [vmem:[#allocation5 + $0xe8] sm:$0xff]
    %v3102 = vld [vmem:[#allocation5 + $0xf0] sm:$0xff]
    %v3103 = vld [vmem:[#allocation5 + $0xf8] sm:$0xff]
    %v3104 = vld [vmem:[#allocation8] sm:$0xf]
    %v3106 = vperm.slane %v3104, 0
    %v3107 = vperm.slane %v3104, 1
    %v3108 = vperm.slane %v3104, 2
    %v3109 = vperm.slane %v3104, 3
    %v3146 = vunpack.c.l.b16 %v3072
    %v3147 = vunpack.c.h.b16 %v3072
    %v3148 = vunpack.c.l.b16 %v3073
    %v3149 = vunpack.c.h.b16 %v3073
    %v3150 = vunpack.c.l.b16 %v3074
    %v3151 = vunpack.c.h.b16 %v3074
    %v3152 = vunpack.c.l.b16 %v3075
    %v3153 = vunpack.c.h.b16 %v3075
    %v3154 = vunpack.c.l.b16 %v3076
    %v3155 = vunpack.c.h.b16 %v3076
    %v3156 = vunpack.c.l.b16 %v3077
    %v3157 = vunpack.c.h.b16 %v3077
    %v3158 = vunpack.c.l.b16 %v3078
    %v3159 = vunpack.c.h.b16 %v3078
    %v3160 = vunpack.c.l.b16 %v3079
    %v3161 = vunpack.c.h.b16 %v3079
    %v3162 = vunpack.c.l.b16 %v3080
    %v3163 = vunpack.c.h.b16 %v3080
    %v3164 = vunpack.c.l.b16 %v3081
    %v3165 = vunpack.c.h.b16 %v3081
    %v3166 = vunpack.c.l.b16 %v3082
    %v3167 = vunpack.c.h.b16 %v3082
    %v3168 = vunpack.c.l.b16 %v3083
    %v3169 = vunpack.c.h.b16 %v3083
    %v3170 = vunpack.c.l.b16 %v3084
    %v3171 = vunpack.c.h.b16 %v3084
    %v3172 = vunpack.c.l.b16 %v3085
    %v3173 = vunpack.c.h.b16 %v3085
    %v3174 = vunpack.c.l.b16 %v3086
    %v3175 = vunpack.c.h.b16 %v3086
    %v3176 = vunpack.c.l.b16 %v3087
    %v3177 = vunpack.c.h.b16 %v3087
    %v3178 = vunpack.c.l.b16 %v3088
    %v3179 = vunpack.c.h.b16 %v3088
    %v3180 = vunpack.c.l.b16 %v3089
    %v3181 = vunpack.c.h.b16 %v3089
    %v3182 = vunpack.c.l.b16 %v3090
    %v3183 = vunpack.c.h.b16 %v3090
    %v3184 = vunpack.c.l.b16 %v3091
    %v3185 = vunpack.c.h.b16 %v3091
    %v3186 = vunpack.c.l.b16 %v3092
    %v3187 = vunpack.c.h.b16 %v3092
    %v3188 = vunpack.c.l.b16 %v3093
    %v3189 = vunpack.c.h.b16 %v3093
    %v3190 = vunpack.c.l.b16 %v3094
    %v3191 = vunpack.c.h.b16 %v3094
    %v3192 = vunpack.c.l.b16 %v3095
    %v3193 = vunpack.c.h.b16 %v3095
    %v3194 = vunpack.c.l.b16 %v3096
    %v3195 = vunpack.c.h.b16 %v3096
    %v3196 = vunpack.c.l.b16 %v3097
    %v3197 = vunpack.c.h.b16 %v3097
    %v3198 = vunpack.c.l.b16 %v3098
    %v3199 = vunpack.c.h.b16 %v3098
    %v3200 = vunpack.c.l.b16 %v3099
    %v3201 = vunpack.c.h.b16 %v3099
    %v3202 = vunpack.c.l.b16 %v3100
    %v3203 = vunpack.c.h.b16 %v3100
    %v3204 = vunpack.c.l.b16 %v3101
    %v3205 = vunpack.c.h.b16 %v3101
    %v3206 = vunpack.c.l.b16 %v3102
    %v3207 = vunpack.c.h.b16 %v3102
    %v3208 = vunpack.c.l.b16 %v3103
    %v3209 = vunpack.c.h.b16 %v3103
    %v3210 = vpack.c.b16 %v3150, %v3146
    %v3211 = vpack.c.b16 %v3151, %v3147
    %v3212 = vpack.c.b16 %v3152, %v3148
    %v3213 = vpack.c.b16 %v3153, %v3149
    %v3214 = vpack.c.b16 %v3158, %v3154
    %v3215 = vpack.c.b16 %v3159, %v3155
    %v3216 = vpack.c.b16 %v3160, %v3156
    %v3217 = vpack.c.b16 %v3161, %v3157
    %v3218 = vpack.c.b16 %v3166, %v3162
    %v3219 = vpack.c.b16 %v3167, %v3163
    %v3220 = vpack.c.b16 %v3168, %v3164
    %v3221 = vpack.c.b16 %v3169, %v3165
    %v3222 = vpack.c.b16 %v3174, %v3170
    %v3223 = vpack.c.b16 %v3175, %v3171
    %v3224 = vpack.c.b16 %v3176, %v3172
    %v3225 = vpack.c.b16 %v3177, %v3173
    %v3226 = vpack.c.b16 %v3182, %v3178
    %v3227 = vpack.c.b16 %v3183, %v3179
    %v3228 = vpack.c.b16 %v3184, %v3180
    %v3229 = vpack.c.b16 %v3185, %v3181
    %v3230 = vpack.c.b16 %v3190, %v3186
    %v3231 = vpack.c.b16 %v3191, %v3187
    %v3232 = vpack.c.b16 %v3192, %v3188
    %v3233 = vpack.c.b16 %v3193, %v3189
    %v3234 = vpack.c.b16 %v3198, %v3194
    %v3235 = vpack.c.b16 %v3199, %v3195
    %v3236 = vpack.c.b16 %v3200, %v3196
    %v3237 = vpack.c.b16 %v3201, %v3197
    %v3238 = vpack.c.b16 %v3206, %v3202
    %v3239 = vpack.c.b16 %v3207, %v3203
    %v3240 = vpack.c.b16 %v3208, %v3204
    %v3241 = vpack.c.b16 %v3209, %v3205
    %3274 = vmatpush.bf16.msra.mxu0 %v3238
    %3275 = vmatpush.bf16.msra.mxu0 %v3234
    %3276 = vmatpush.bf16.msra.mxu0 %v3230
    %3277 = vmatpush.bf16.msra.mxu0 %v3226
    %3278 = vmatpush.bf16.msra.mxu0 %v3222
    %3279 = vmatpush.bf16.msra.mxu0 %v3218
    %3280 = vmatpush.bf16.msra.mxu0 %v3214
    %3281 = vmatpush.bf16.msra.mxu0 %v3210
    %3282 = vmatmul.bf16.gmra.mxu0 %v3071
    %v3283 = vpop.f32.mrf.mxu0
    %v3284 = vadd.f32 %v3106, %v3283
    %v3285 = vpop.f32.mrf.mxu0
    %v3286 = vadd.f32 %v3106, %v3285
    %3287 = vdwg.mxu0
    %3288 = vmatpush.bf16.msra.mxu0 %v3239
    %3289 = vmatpush.bf16.msra.mxu0 %v3235
    %3290 = vmatpush.bf16.msra.mxu0 %v3231
    %3291 = vmatpush.bf16.msra.mxu0 %v3227
    %3292 = vmatpush.bf16.msra.mxu0 %v3223
    %3293 = vmatpush.bf16.msra.mxu0 %v3219
    %3294 = vmatpush.bf16.msra.mxu0 %v3215
    %3295 = vmatpush.bf16.msra.mxu0 %v3211
    %3296 = vmatmul.bf16.gmra.mxu0 %v3071
    %v3297 = vpop.f32.mrf.mxu0
    %v3298 = vadd.f32 %v3107, %v3297
    %v3299 = vpop.f32.mrf.mxu0
    %v3300 = vadd.f32 %v3107, %v3299
    %3301 = vdwg.mxu0
    %3302 = vmatpush.bf16.msra.mxu0 %v3240
    %3303 = vmatpush.bf16.msra.mxu0 %v3236
    %3304 = vmatpush.bf16.msra.mxu0 %v3232
    %3305 = vmatpush.bf16.msra.mxu0 %v3228
    %3306 = vmatpush.bf16.msra.mxu0 %v3224
    %3307 = vmatpush.bf16.msra.mxu0 %v3220
    %3308 = vmatpush.bf16.msra.mxu0 %v3216
    %3309 = vmatpush.bf16.msra.mxu0 %v3212
    %3310 = vmatmul.bf16.gmra.mxu0 %v3071
    %v3311 = vpop.f32.mrf.mxu0
    %v3312 = vadd.f32 %v3108, %v3311
    %v3313 = vpop.f32.mrf.mxu0
    %v3314 = vadd.f32 %v3108, %v3313
    %3315 = vdwg.mxu0
    %3316 = vmatpush.bf16.msra.mxu0 %v3241
    %3317 = vmatpush.bf16.msra.mxu0 %v3237
    %3318 = vmatpush.bf16.msra.mxu0 %v3233
    %3319 = vmatpush.bf16.msra.mxu0 %v3229
    %3320 = vmatpush.bf16.msra.mxu0 %v3225
    %3321 = vmatpush.bf16.msra.mxu0 %v3221
    %3322 = vmatpush.bf16.msra.mxu0 %v3217
    %3323 = vmatpush.bf16.msra.mxu0 %v3213
    %3324 = vmatmul.bf16.gmra.mxu0 %v3071
    %v3325 = vpop.f32.mrf.mxu0
    %v3326 = vadd.f32 %v3109, %v3325
    %v3327 = vpop.f32.mrf.mxu0
    %v3328 = vadd.f32 %v3109, %v3327
    %3329 = vdwg.mxu0
    %v3334 = vrot.slane %v3286, 6
    %v3335 = vrot.slane %v3300, 6
    %v3336 = vrot.slane %v3314, 6
    %v3337 = vrot.slane %v3328, 6
    %v3342 = vsel %vm1709, %v3284, %v3334
    %v3343 = vsel %vm1710, %v3298, %v3335
    %v3344 = vsel %vm1711, %v3312, %v3336
    %v3345 = vsel %vm1712, %v3326, %v3337
    %v3346 = vrot.slane %v3286, 2
    %v3347 = vrot.slane %v3300, 2
    %v3348 = vrot.slane %v3314, 2
    %v3349 = vrot.slane %v3328, 2
    %v3354 = vsel %vm1709, %v3284, %v3346
    %v3355 = vsel %vm1710, %v3298, %v3347
    %v3356 = vsel %vm1711, %v3312, %v3348
    %v3357 = vsel %vm1712, %v3326, %v3349
    %v3362 = vrot.slane %v3284, 6
    %v3363 = vrot.slane %v3298, 6
    %v3364 = vrot.slane %v3312, 6
    %v3365 = vrot.slane %v3326, 6
    %v3370 = vsel %vm1709, %v3286, %v3362
    %v3371 = vsel %vm1710, %v3300, %v3363
    %v3372 = vsel %vm1711, %v3314, %v3364
    %v3373 = vsel %vm1712, %v3328, %v3365
    %v3374 = vrot.slane %v3284, 2
    %v3375 = vrot.slane %v3298, 2
    %v3376 = vrot.slane %v3312, 2
    %v3377 = vrot.slane %v3326, 2
    %v3382 = vsel %vm1709, %v3286, %v3374
    %v3383 = vsel %vm1710, %v3300, %v3375
    %v3384 = vsel %vm1711, %v3314, %v3376
    %v3385 = vsel %vm1712, %v3328, %v3377
    %v3386 = vld [vmem:[#allocation7] sm:$0xff]
    %v3387 = vld [vmem:[#allocation7 + $0x8] sm:$0xff]
    %v3388 = vld [vmem:[#allocation7 + $0x10] sm:$0xff]
    %v3389 = vld [vmem:[#allocation7 + $0x18] sm:$0xff]
    %v3390 = vld [vmem:[#allocation7 + $0x20] sm:$0xff]
    %v3391 = vld [vmem:[#allocation7 + $0x28] sm:$0xff]
    %v3392 = vld [vmem:[#allocation7 + $0x30] sm:$0xff]
    %v3393 = vld [vmem:[#allocation7 + $0x38] sm:$0xff]
    %v3394 = vld [vmem:[#allocation7 + $0x40] sm:$0xff]
    %v3395 = vld [vmem:[#allocation7 + $0x48] sm:$0xff]
    %v3396 = vld [vmem:[#allocation7 + $0x50] sm:$0xff]
    %v3397 = vld [vmem:[#allocation7 + $0x58] sm:$0xff]
    %v3398 = vld [vmem:[#allocation7 + $0x60] sm:$0xff]
    %v3399 = vld [vmem:[#allocation7 + $0x68] sm:$0xff]
    %v3400 = vld [vmem:[#allocation7 + $0x70] sm:$0xff]
    %v3401 = vld [vmem:[#allocation7 + $0x78] sm:$0xff]
    %v3402 = vld [vmem:[#allocation7 + $0x80] sm:$0xff]
    %v3403 = vld [vmem:[#allocation7 + $0x88] sm:$0xff]
    %v3404 = vld [vmem:[#allocation7 + $0x90] sm:$0xff]
    %v3405 = vld [vmem:[#allocation7 + $0x98] sm:$0xff]
    %v3406 = vld [vmem:[#allocation7 + $0xa0] sm:$0xff]
    %v3407 = vld [vmem:[#allocation7 + $0xa8] sm:$0xff]
    %v3408 = vld [vmem:[#allocation7 + $0xb0] sm:$0xff]
    %v3409 = vld [vmem:[#allocation7 + $0xb8] sm:$0xff]
    %v3410 = vld [vmem:[#allocation7 + $0xc0] sm:$0xff]
    %v3411 = vld [vmem:[#allocation7 + $0xc8] sm:$0xff]
    %v3412 = vld [vmem:[#allocation7 + $0xd0] sm:$0xff]
    %v3413 = vld [vmem:[#allocation7 + $0xd8] sm:$0xff]
    %v3414 = vld [vmem:[#allocation7 + $0xe0] sm:$0xff]
    %v3415 = vld [vmem:[#allocation7 + $0xe8] sm:$0xff]
    %v3416 = vld [vmem:[#allocation7 + $0xf0] sm:$0xff]
    %v3417 = vld [vmem:[#allocation7 + $0xf8] sm:$0xff]
    %v3450 = vunpack.c.l.b16 %v3386
    %v3451 = vunpack.c.h.b16 %v3386
    %v3452 = vunpack.c.l.b16 %v3387
    %v3453 = vunpack.c.h.b16 %v3387
    %v3454 = vunpack.c.l.b16 %v3388
    %v3455 = vunpack.c.h.b16 %v3388
    %v3456 = vunpack.c.l.b16 %v3389
    %v3457 = vunpack.c.h.b16 %v3389
    %v3458 = vunpack.c.l.b16 %v3390
    %v3459 = vunpack.c.h.b16 %v3390
    %v3460 = vunpack.c.l.b16 %v3391
    %v3461 = vunpack.c.h.b16 %v3391
    %v3462 = vunpack.c.l.b16 %v3392
    %v3463 = vunpack.c.h.b16 %v3392
    %v3464 = vunpack.c.l.b16 %v3393
    %v3465 = vunpack.c.h.b16 %v3393
    %v3466 = vunpack.c.l.b16 %v3394
    %v3467 = vunpack.c.h.b16 %v3394
    %v3468 = vunpack.c.l.b16 %v3395
    %v3469 = vunpack.c.h.b16 %v3395
    %v3470 = vunpack.c.l.b16 %v3396
    %v3471 = vunpack.c.h.b16 %v3396
    %v3472 = vunpack.c.l.b16 %v3397
    %v3473 = vunpack.c.h.b16 %v3397
    %v3474 = vunpack.c.l.b16 %v3398
    %v3475 = vunpack.c.h.b16 %v3398
    %v3476 = vunpack.c.l.b16 %v3399
    %v3477 = vunpack.c.h.b16 %v3399
    %v3478 = vunpack.c.l.b16 %v3400
    %v3479 = vunpack.c.h.b16 %v3400
    %v3480 = vunpack.c.l.b16 %v3401
    %v3481 = vunpack.c.h.b16 %v3401
    %v3482 = vunpack.c.l.b16 %v3402
    %v3483 = vunpack.c.h.b16 %v3402
    %v3484 = vunpack.c.l.b16 %v3403
    %v3485 = vunpack.c.h.b16 %v3403
    %v3486 = vunpack.c.l.b16 %v3404
    %v3487 = vunpack.c.h.b16 %v3404
    %v3488 = vunpack.c.l.b16 %v3405
    %v3489 = vunpack.c.h.b16 %v3405
    %v3490 = vunpack.c.l.b16 %v3406
    %v3491 = vunpack.c.h.b16 %v3406
    %v3492 = vunpack.c.l.b16 %v3407
    %v3493 = vunpack.c.h.b16 %v3407
    %v3494 = vunpack.c.l.b16 %v3408
    %v3495 = vunpack.c.h.b16 %v3408
    %v3496 = vunpack.c.l.b16 %v3409
    %v3497 = vunpack.c.h.b16 %v3409
    %v3498 = vunpack.c.l.b16 %v3410
    %v3499 = vunpack.c.h.b16 %v3410
    %v3500 = vunpack.c.l.b16 %v3411
    %v3501 = vunpack.c.h.b16 %v3411
    %v3502 = vunpack.c.l.b16 %v3412
    %v3503 = vunpack.c.h.b16 %v3412
    %v3504 = vunpack.c.l.b16 %v3413
    %v3505 = vunpack.c.h.b16 %v3413
    %v3506 = vunpack.c.l.b16 %v3414
    %v3507 = vunpack.c.h.b16 %v3414
    %v3508 = vunpack.c.l.b16 %v3415
    %v3509 = vunpack.c.h.b16 %v3415
    %v3510 = vunpack.c.l.b16 %v3416
    %v3511 = vunpack.c.h.b16 %v3416
    %v3512 = vunpack.c.l.b16 %v3417
    %v3513 = vunpack.c.h.b16 %v3417
    %v3514 = vpack.c.b16 %v3454, %v3450
    %v3515 = vpack.c.b16 %v3455, %v3451
    %v3516 = vpack.c.b16 %v3456, %v3452
    %v3517 = vpack.c.b16 %v3457, %v3453
    %v3518 = vpack.c.b16 %v3462, %v3458
    %v3519 = vpack.c.b16 %v3463, %v3459
    %v3520 = vpack.c.b16 %v3464, %v3460
    %v3521 = vpack.c.b16 %v3465, %v3461
    %v3522 = vpack.c.b16 %v3470, %v3466
    %v3523 = vpack.c.b16 %v3471, %v3467
    %v3524 = vpack.c.b16 %v3472, %v3468
    %v3525 = vpack.c.b16 %v3473, %v3469
    %v3526 = vpack.c.b16 %v3478, %v3474
    %v3527 = vpack.c.b16 %v3479, %v3475
    %v3528 = vpack.c.b16 %v3480, %v3476
    %v3529 = vpack.c.b16 %v3481, %v3477
    %v3530 = vpack.c.b16 %v3486, %v3482
    %v3531 = vpack.c.b16 %v3487, %v3483
    %v3532 = vpack.c.b16 %v3488, %v3484
    %v3533 = vpack.c.b16 %v3489, %v3485
    %v3534 = vpack.c.b16 %v3494, %v3490
    %v3535 = vpack.c.b16 %v3495, %v3491
    %v3536 = vpack.c.b16 %v3496, %v3492
    %v3537 = vpack.c.b16 %v3497, %v3493
    %v3538 = vpack.c.b16 %v3502, %v3498
    %v3539 = vpack.c.b16 %v3503, %v3499
    %v3540 = vpack.c.b16 %v3504, %v3500
    %v3541 = vpack.c.b16 %v3505, %v3501
    %v3542 = vpack.c.b16 %v3510, %v3506
    %v3543 = vpack.c.b16 %v3511, %v3507
    %v3544 = vpack.c.b16 %v3512, %v3508
    %v3545 = vpack.c.b16 %v3513, %v3509
    %3578 = vmatpush.bf16.msra.mxu0 %v3542
    %3579 = vmatpush.bf16.msra.mxu0 %v3538
    %3580 = vmatpush.bf16.msra.mxu0 %v3534
    %3581 = vmatpush.bf16.msra.mxu0 %v3530
    %3582 = vmatpush.bf16.msra.mxu0 %v3526
    %3583 = vmatpush.bf16.msra.mxu0 %v3522
    %3584 = vmatpush.bf16.msra.mxu0 %v3518
    %3585 = vmatpush.bf16.msra.mxu0 %v3514
    %3586 = vmatmul.bf16.gmra.mxu0 0
    %v3587 = vpop.f32.mrf.mxu0
    %v3588 = vadd.f32 0.0, %v3587
    %v3589 = vpop.f32.mrf.mxu0
    %3590 = vdwg.mxu0
    %3591 = vmatpush.bf16.msra.mxu0 %v3543
    %3592 = vmatpush.bf16.msra.mxu0 %v3539
    %3593 = vmatpush.bf16.msra.mxu0 %v3535
    %3594 = vmatpush.bf16.msra.mxu0 %v3531
    %3595 = vmatpush.bf16.msra.mxu0 %v3527
    %3596 = vmatpush.bf16.msra.mxu0 %v3523
    %3597 = vmatpush.bf16.msra.mxu0 %v3519
    %3598 = vmatpush.bf16.msra.mxu0 %v3515
    %3599 = vmatmul.bf16.gmra.mxu0 0
    %v3600 = vpop.f32.mrf.mxu0
    %v3601 = vadd.f32 0.0, %v3600
    %v3602 = vpop.f32.mrf.mxu0
    %3603 = vdwg.mxu0
    %3604 = vmatpush.bf16.msra.mxu0 %v3544
    %3605 = vmatpush.bf16.msra.mxu0 %v3540
    %3606 = vmatpush.bf16.msra.mxu0 %v3536
    %3607 = vmatpush.bf16.msra.mxu0 %v3532
    %3608 = vmatpush.bf16.msra.mxu0 %v3528
    %3609 = vmatpush.bf16.msra.mxu0 %v3524
    %3610 = vmatpush.bf16.msra.mxu0 %v3520
    %3611 = vmatpush.bf16.msra.mxu0 %v3516
    %3612 = vmatmul.bf16.gmra.mxu0 0
    %v3613 = vpop.f32.mrf.mxu0
    %v3614 = vadd.f32 0.0, %v3613
    %v3615 = vpop.f32.mrf.mxu0
    %3616 = vdwg.mxu0
    %3617 = vmatpush.bf16.msra.mxu0 %v3545
    %3618 = vmatpush.bf16.msra.mxu0 %v3541
    %3619 = vmatpush.bf16.msra.mxu0 %v3537
    %3620 = vmatpush.bf16.msra.mxu0 %v3533
    %3621 = vmatpush.bf16.msra.mxu0 %v3529
    %3622 = vmatpush.bf16.msra.mxu0 %v3525
    %3623 = vmatpush.bf16.msra.mxu0 %v3521
    %3624 = vmatpush.bf16.msra.mxu0 %v3517
    %3625 = vmatmul.bf16.gmra.mxu0 0
    %v3626 = vpop.f32.mrf.mxu0
    %v3627 = vadd.f32 0.0, %v3626
    %v3628 = vpop.f32.mrf.mxu0
    %3629 = vdwg.mxu0
    %v3630 = vadd.f32 %v3342, %v3588
    %v3631 = vadd.f32 %v3343, %v3601
    %v3632 = vadd.f32 %v3344, %v3614
    %v3633 = vadd.f32 %v3345, %v3627
    %v3634 = vxor.u32 %v3630, 2147483648
    %v3635 = vmul.f32 %v3634, 1.442695
    %v3636 = vpow.pop %v3635
    %v3637 = vadd.f32 %v3636, 1.0
    %v3638 = vrcp.pop %v3637
    %v3639 = vmul.f32 %v3637, %v3638
    %v3640 = vsub.f32 1.0, %v3639
    %v3641 = vmul.f32 %v3638, %v3640
    %v3642 = vadd.f32 %v3638, %v3641
    %vm3643 = vweird.f32 %v3637
    %vm3644 = vweird.f32 %v3638
    %vm3645 = vmor %vm3643, %vm3644
    %v3646 = vsel %vm3645, %v3638, %v3642
    %v3647 = vand.u32 2147483647, %v3637
    %vm3648 = vcmp.eq.f32.partialorder %v3647, 8.507059e+37
    %v3649 = vand.u32 %v3637, 2147483648
    %v3650 = vor.u32 1.1754944e-38, %v3649
    %v3651 = vsel %vm3648, %v3650, %v3646
    %v3652 = vmul.f32 1.0, %v3651
    %v3653 = vxor.u32 %v3631, 2147483648
    %v3654 = vmul.f32 %v3653, 1.442695
    %v3655 = vpow.pop %v3654
    %v3656 = vadd.f32 %v3655, 1.0
    %v3657 = vrcp.pop %v3656
    %v3658 = vmul.f32 %v3656, %v3657
    %v3659 = vsub.f32 1.0, %v3658
    %v3660 = vmul.f32 %v3657, %v3659
    %v3661 = vadd.f32 %v3657, %v3660
    %vm3662 = vweird.f32 %v3656
    %vm3663 = vweird.f32 %v3657
    %vm3664 = vmor %vm3662, %vm3663
    %v3665 = vsel %vm3664, %v3657, %v3661
    %v3666 = vand.u32 2147483647, %v3656
    %vm3667 = vcmp.eq.f32.partialorder %v3666, 8.507059e+37
    %v3668 = vand.u32 %v3656, 2147483648
    %v3669 = vor.u32 1.1754944e-38, %v3668
    %v3670 = vsel %vm3667, %v3669, %v3665
    %v3671 = vmul.f32 1.0, %v3670
    %v3672 = vtanh.pop %v3632
    %v3673 = vxor.u32 %v3633, 2147483648
    %v3674 = vmul.f32 %v3673, 1.442695
    %v3675 = vpow.pop %v3674
    %v3676 = vadd.f32 %v3675, 1.0
    %v3677 = vrcp.pop %v3676
    %v3678 = vmul.f32 %v3676, %v3677
    %v3679 = vsub.f32 1.0, %v3678
    %v3680 = vmul.f32 %v3677, %v3679
    %v3681 = vadd.f32 %v3677, %v3680
    %vm3682 = vweird.f32 %v3676
    %vm3683 = vweird.f32 %v3677
    %vm3684 = vmor %vm3682, %vm3683
    %v3685 = vsel %vm3684, %v3677, %v3681
    %v3686 = vand.u32 2147483647, %v3676
    %vm3687 = vcmp.eq.f32.partialorder %v3686, 8.507059e+37
    %v3688 = vand.u32 %v3676, 2147483648
    %v3689 = vor.u32 1.1754944e-38, %v3688
    %v3690 = vsel %vm3687, %v3689, %v3685
    %v3691 = vmul.f32 1.0, %v3690
    %v3692 = vmul.f32 %v3671, 0.0
    %v3693 = vmul.f32 %v3652, %v3672
    %v3694 = vadd.f32 %v3692, %v3693
    %v3695 = vtanh.pop %v3694
    %v3696 = vmul.f32 %v3691, %v3695
    %v3697 = vmax.f32 %v3696, 0.0
    %v3698 = vpack.c.bf16 %v3696, %v3696
    %3699 = vmatpush.bf16.msra.mxu0 %v3542
    %3700 = vmatpush.bf16.msra.mxu0 %v3538
    %3701 = vmatpush.bf16.msra.mxu0 %v3534
    %3702 = vmatpush.bf16.msra.mxu0 %v3530
    %3703 = vmatpush.bf16.msra.mxu0 %v3526
    %3704 = vmatpush.bf16.msra.mxu0 %v3522
    %3705 = vmatpush.bf16.msra.mxu0 %v3518
    %3706 = vmatpush.bf16.msra.mxu0 %v3514
    %3707 = vmatmul.bf16.gmra.mxu0 %v3698
    %v3708 = vpop.f32.mrf.mxu0
    %v3709 = vadd.f32 0.0, %v3708
    %v3710 = vpop.f32.mrf.mxu0
    %3711 = vdwg.mxu0
    %3712 = vmatpush.bf16.msra.mxu0 %v3543
    %3713 = vmatpush.bf16.msra.mxu0 %v3539
    %3714 = vmatpush.bf16.msra.mxu0 %v3535
    %3715 = vmatpush.bf16.msra.mxu0 %v3531
    %3716 = vmatpush.bf16.msra.mxu0 %v3527
    %3717 = vmatpush.bf16.msra.mxu0 %v3523
    %3718 = vmatpush.bf16.msra.mxu0 %v3519
    %3719 = vmatpush.bf16.msra.mxu0 %v3515
    %3720 = vmatmul.bf16.gmra.mxu0 %v3698
    %v3721 = vpop.f32.mrf.mxu0
    %v3722 = vadd.f32 0.0, %v3721
    %v3723 = vpop.f32.mrf.mxu0
    %3724 = vdwg.mxu0
    %3725 = vmatpush.bf16.msra.mxu0 %v3544
    %3726 = vmatpush.bf16.msra.mxu0 %v3540
    %3727 = vmatpush.bf16.msra.mxu0 %v3536
    %3728 = vmatpush.bf16.msra.mxu0 %v3532
    %3729 = vmatpush.bf16.msra.mxu0 %v3528
    %3730 = vmatpush.bf16.msra.mxu0 %v3524
    %3731 = vmatpush.bf16.msra.mxu0 %v3520
    %3732 = vmatpush.bf16.msra.mxu0 %v3516
    %3733 = vmatmul.bf16.gmra.mxu0 %v3698
    %v3734 = vpop.f32.mrf.mxu0
    %v3735 = vadd.f32 0.0, %v3734
    %v3736 = vpop.f32.mrf.mxu0
    %3737 = vdwg.mxu0
    %3738 = vmatpush.bf16.msra.mxu0 %v3545
    %3739 = vmatpush.bf16.msra.mxu0 %v3541
    %3740 = vmatpush.bf16.msra.mxu0 %v3537
    %3741 = vmatpush.bf16.msra.mxu0 %v3533
    %3742 = vmatpush.bf16.msra.mxu0 %v3529
    %3743 = vmatpush.bf16.msra.mxu0 %v3525
    %3744 = vmatpush.bf16.msra.mxu0 %v3521
    %3745 = vmatpush.bf16.msra.mxu0 %v3517
    %3746 = vmatmul.bf16.gmra.mxu0 %v3698
    %v3747 = vpop.f32.mrf.mxu0
    %v3748 = vadd.f32 0.0, %v3747
    %v3749 = vpop.f32.mrf.mxu0
    %3750 = vdwg.mxu0
    %v3755 = vrot.slane %v3709, 6
    %v3756 = vrot.slane %v3722, 6
    %v3757 = vrot.slane %v3735, 6
    %v3758 = vrot.slane %v3748, 6
    %v3763 = vadd.f32 %v3354, %v3755
    %v3764 = vadd.f32 %v3355, %v3756
    %v3765 = vadd.f32 %v3356, %v3757
    %v3766 = vadd.f32 %v3357, %v3758
    %v3767 = vxor.u32 %v3763, 2147483648
    %v3768 = vmul.f32 %v3767, 1.442695
    %v3769 = vpow.pop %v3768
    %v3770 = vadd.f32 %v3769, 1.0
    %v3771 = vrcp.pop %v3770
    %v3772 = vmul.f32 %v3770, %v3771
    %v3773 = vsub.f32 1.0, %v3772
    %v3774 = vmul.f32 %v3771, %v3773
    %v3775 = vadd.f32 %v3771, %v3774
    %vm3776 = vweird.f32 %v3770
    %vm3777 = vweird.f32 %v3771
    %vm3778 = vmor %vm3776, %vm3777
    %v3779 = vsel %vm3778, %v3771, %v3775
    %v3780 = vand.u32 2147483647, %v3770
    %vm3781 = vcmp.eq.f32.partialorder %v3780, 8.507059e+37
    %v3782 = vand.u32 %v3770, 2147483648
    %v3783 = vor.u32 1.1754944e-38, %v3782
    %v3784 = vsel %vm3781, %v3783, %v3779
    %v3785 = vmul.f32 1.0, %v3784
    %v3786 = vxor.u32 %v3764, 2147483648
    %v3787 = vmul.f32 %v3786, 1.442695
    %v3788 = vpow.pop %v3787
    %v3789 = vadd.f32 %v3788, 1.0
    %v3790 = vrcp.pop %v3789
    %v3791 = vmul.f32 %v3789, %v3790
    %v3792 = vsub.f32 1.0, %v3791
    %v3793 = vmul.f32 %v3790, %v3792
    %v3794 = vadd.f32 %v3790, %v3793
    %vm3795 = vweird.f32 %v3789
    %vm3796 = vweird.f32 %v3790
    %vm3797 = vmor %vm3795, %vm3796
    %v3798 = vsel %vm3797, %v3790, %v3794
    %v3799 = vand.u32 2147483647, %v3789
    %vm3800 = vcmp.eq.f32.partialorder %v3799, 8.507059e+37
    %v3801 = vand.u32 %v3789, 2147483648
    %v3802 = vor.u32 1.1754944e-38, %v3801
    %v3803 = vsel %vm3800, %v3802, %v3798
    %v3804 = vmul.f32 1.0, %v3803
    %v3805 = vtanh.pop %v3765
    %v3806 = vxor.u32 %v3766, 2147483648
    %v3807 = vmul.f32 %v3806, 1.442695
    %v3808 = vpow.pop %v3807
    %v3809 = vadd.f32 %v3808, 1.0
    %v3810 = vrcp.pop %v3809
    %v3811 = vmul.f32 %v3809, %v3810
    %v3812 = vsub.f32 1.0, %v3811
    %v3813 = vmul.f32 %v3810, %v3812
    %v3814 = vadd.f32 %v3810, %v3813
    %vm3815 = vweird.f32 %v3809
    %vm3816 = vweird.f32 %v3810
    %vm3817 = vmor %vm3815, %vm3816
    %v3818 = vsel %vm3817, %v3810, %v3814
    %v3819 = vand.u32 2147483647, %v3809
    %vm3820 = vcmp.eq.f32.partialorder %v3819, 8.507059e+37
    %v3821 = vand.u32 %v3809, 2147483648
    %v3822 = vor.u32 1.1754944e-38, %v3821
    %v3823 = vsel %vm3820, %v3822, %v3818
    %v3824 = vmul.f32 1.0, %v3823
    %v3826 = vrot.slane %v3694, 6
    %v3828 = vmul.f32 %v3804, %v3826
    %v3829 = vmul.f32 %v3785, %v3805
    %v3830 = vadd.f32 %v3828, %v3829
    %v3831 = vtanh.pop %v3830
    %v3832 = vmul.f32 %v3824, %v3831
    %v3834 = vrot.slane %v3832, 2
    %v3836 = vmax.f32 %v3697, %v3834
    %v3837 = vpack.c.bf16 %v3832, %v3832
    %v3839 = vrot.slane %v3837, 1
    %3841 = vmatpush.bf16.msra.mxu0 %v3542
    %3842 = vmatpush.bf16.msra.mxu0 %v3538
    %3843 = vmatpush.bf16.msra.mxu0 %v3534
    %3844 = vmatpush.bf16.msra.mxu0 %v3530
    %3845 = vmatpush.bf16.msra.mxu0 %v3526
    %3846 = vmatpush.bf16.msra.mxu0 %v3522
    %3847 = vmatpush.bf16.msra.mxu0 %v3518
    %3848 = vmatpush.bf16.msra.mxu0 %v3514
    %3849 = vmatmul.bf16.gmra.mxu0 %v3839
    %v3850 = vpop.f32.mrf.mxu0
    %v3851 = vadd.f32 0.0, %v3850
    %v3852 = vpop.f32.mrf.mxu0
    %3853 = vdwg.mxu0
    %3854 = vmatpush.bf16.msra.mxu0 %v3543
    %3855 = vmatpush.bf16.msra.mxu0 %v3539
    %3856 = vmatpush.bf16.msra.mxu0 %v3535
    %3857 = vmatpush.bf16.msra.mxu0 %v3531
    %3858 = vmatpush.bf16.msra.mxu0 %v3527
    %3859 = vmatpush.bf16.msra.mxu0 %v3523
    %3860 = vmatpush.bf16.msra.mxu0 %v3519
    %3861 = vmatpush.bf16.msra.mxu0 %v3515
    %3862 = vmatmul.bf16.gmra.mxu0 %v3839
    %v3863 = vpop.f32.mrf.mxu0
    %v3864 = vadd.f32 0.0, %v3863
    %v3865 = vpop.f32.mrf.mxu0
    %3866 = vdwg.mxu0
    %3867 = vmatpush.bf16.msra.mxu0 %v3544
    %3868 = vmatpush.bf16.msra.mxu0 %v3540
    %3869 = vmatpush.bf16.msra.mxu0 %v3536
    %3870 = vmatpush.bf16.msra.mxu0 %v3532
    %3871 = vmatpush.bf16.msra.mxu0 %v3528
    %3872 = vmatpush.bf16.msra.mxu0 %v3524
    %3873 = vmatpush.bf16.msra.mxu0 %v3520
    %3874 = vmatpush.bf16.msra.mxu0 %v3516
    %3875 = vmatmul.bf16.gmra.mxu0 %v3839
    %v3876 = vpop.f32.mrf.mxu0
    %v3877 = vadd.f32 0.0, %v3876
    %v3878 = vpop.f32.mrf.mxu0
    %3879 = vdwg.mxu0
    %3880 = vmatpush.bf16.msra.mxu0 %v3545
    %3881 = vmatpush.bf16.msra.mxu0 %v3541
    %3882 = vmatpush.bf16.msra.mxu0 %v3537
    %3883 = vmatpush.bf16.msra.mxu0 %v3533
    %3884 = vmatpush.bf16.msra.mxu0 %v3529
    %3885 = vmatpush.bf16.msra.mxu0 %v3525
    %3886 = vmatpush.bf16.msra.mxu0 %v3521
    %3887 = vmatpush.bf16.msra.mxu0 %v3517
    %3888 = vmatmul.bf16.gmra.mxu0 %v3839
    %v3889 = vpop.f32.mrf.mxu0
    %v3890 = vadd.f32 0.0, %v3889
    %v3891 = vpop.f32.mrf.mxu0
    %3892 = vdwg.mxu0
    %v3897 = vrot.slane %v3851, 4
    %v3898 = vrot.slane %v3864, 4
    %v3899 = vrot.slane %v3877, 4
    %v3900 = vrot.slane %v3890, 4
    %v3905 = vadd.f32 %v3342, %v3897
    %v3906 = vadd.f32 %v3343, %v3898
    %v3907 = vadd.f32 %v3344, %v3899
    %v3908 = vadd.f32 %v3345, %v3900
    %v3909 = vxor.u32 %v3905, 2147483648
    %v3910 = vmul.f32 %v3909, 1.442695
    %v3911 = vpow.pop %v3910
    %v3912 = vadd.f32 %v3911, 1.0
    %v3913 = vrcp.pop %v3912
    %v3914 = vmul.f32 %v3912, %v3913
    %v3915 = vsub.f32 1.0, %v3914
    %v3916 = vmul.f32 %v3913, %v3915
    %v3917 = vadd.f32 %v3913, %v3916
    %vm3918 = vweird.f32 %v3912
    %vm3919 = vweird.f32 %v3913
    %vm3920 = vmor %vm3918, %vm3919
    %v3921 = vsel %vm3920, %v3913, %v3917
    %v3922 = vand.u32 2147483647, %v3912
    %vm3923 = vcmp.eq.f32.partialorder %v3922, 8.507059e+37
    %v3924 = vand.u32 %v3912, 2147483648
    %v3925 = vor.u32 1.1754944e-38, %v3924
    %v3926 = vsel %vm3923, %v3925, %v3921
    %v3927 = vmul.f32 1.0, %v3926
    %v3928 = vxor.u32 %v3906, 2147483648
    %v3929 = vmul.f32 %v3928, 1.442695
    %v3930 = vpow.pop %v3929
    %v3931 = vadd.f32 %v3930, 1.0
    %v3932 = vrcp.pop %v3931
    %v3933 = vmul.f32 %v3931, %v3932
    %v3934 = vsub.f32 1.0, %v3933
    %v3935 = vmul.f32 %v3932, %v3934
    %v3936 = vadd.f32 %v3932, %v3935
    %vm3937 = vweird.f32 %v3931
    %vm3938 = vweird.f32 %v3932
    %vm3939 = vmor %vm3937, %vm3938
    %v3940 = vsel %vm3939, %v3932, %v3936
    %v3941 = vand.u32 2147483647, %v3931
    %vm3942 = vcmp.eq.f32.partialorder %v3941, 8.507059e+37
    %v3943 = vand.u32 %v3931, 2147483648
    %v3944 = vor.u32 1.1754944e-38, %v3943
    %v3945 = vsel %vm3942, %v3944, %v3940
    %v3946 = vmul.f32 1.0, %v3945
    %v3947 = vtanh.pop %v3907
    %v3948 = vxor.u32 %v3908, 2147483648
    %v3949 = vmul.f32 %v3948, 1.442695
    %v3950 = vpow.pop %v3949
    %v3951 = vadd.f32 %v3950, 1.0
    %v3952 = vrcp.pop %v3951
    %v3953 = vmul.f32 %v3951, %v3952
    %v3954 = vsub.f32 1.0, %v3953
    %v3955 = vmul.f32 %v3952, %v3954
    %v3956 = vadd.f32 %v3952, %v3955
    %vm3957 = vweird.f32 %v3951
    %vm3958 = vweird.f32 %v3952
    %vm3959 = vmor %vm3957, %vm3958
    %v3960 = vsel %vm3959, %v3952, %v3956
    %v3961 = vand.u32 2147483647, %v3951
    %vm3962 = vcmp.eq.f32.partialorder %v3961, 8.507059e+37
    %v3963 = vand.u32 %v3951, 2147483648
    %v3964 = vor.u32 1.1754944e-38, %v3963
    %v3965 = vsel %vm3962, %v3964, %v3960
    %v3966 = vmul.f32 1.0, %v3965
    %v3968 = vrot.slane %v3830, 6
    %v3970 = vmul.f32 %v3946, %v3968
    %v3971 = vmul.f32 %v3927, %v3947
    %v3972 = vadd.f32 %v3970, %v3971
    %v3973 = vtanh.pop %v3972
    %v3974 = vmul.f32 %v3966, %v3973
    %v3976 = vrot.slane %v3974, 4
    %v3978 = vmax.f32 %v3836, %v3976
    %v3979 = vpack.c.bf16 %v3974, %v3974
    %v3981 = vrot.slane %v3979, 2
    %3983 = vmatpush.bf16.msra.mxu0 %v3542
    %3984 = vmatpush.bf16.msra.mxu0 %v3538
    %3985 = vmatpush.bf16.msra.mxu0 %v3534
    %3986 = vmatpush.bf16.msra.mxu0 %v3530
    %3987 = vmatpush.bf16.msra.mxu0 %v3526
    %3988 = vmatpush.bf16.msra.mxu0 %v3522
    %3989 = vmatpush.bf16.msra.mxu0 %v3518
    %3990 = vmatpush.bf16.msra.mxu0 %v3514
    %3991 = vmatmul.bf16.gmra.mxu0 %v3981
    %v3992 = vpop.f32.mrf.mxu0
    %v3993 = vadd.f32 0.0, %v3992
    %v3994 = vpop.f32.mrf.mxu0
    %3995 = vdwg.mxu0
    %3996 = vmatpush.bf16.msra.mxu0 %v3543
    %3997 = vmatpush.bf16.msra.mxu0 %v3539
    %3998 = vmatpush.bf16.msra.mxu0 %v3535
    %3999 = vmatpush.bf16.msra.mxu0 %v3531
    %4000 = vmatpush.bf16.msra.mxu0 %v3527
    %4001 = vmatpush.bf16.msra.mxu0 %v3523
    %4002 = vmatpush.bf16.msra.mxu0 %v3519
    %4003 = vmatpush.bf16.msra.mxu0 %v3515
    %4004 = vmatmul.bf16.gmra.mxu0 %v3981
    %v4005 = vpop.f32.mrf.mxu0
    %v4006 = vadd.f32 0.0, %v4005
    %v4007 = vpop.f32.mrf.mxu0
    %4008 = vdwg.mxu0
    %4009 = vmatpush.bf16.msra.mxu0 %v3544
    %4010 = vmatpush.bf16.msra.mxu0 %v3540
    %4011 = vmatpush.bf16.msra.mxu0 %v3536
    %4012 = vmatpush.bf16.msra.mxu0 %v3532
    %4013 = vmatpush.bf16.msra.mxu0 %v3528
    %4014 = vmatpush.bf16.msra.mxu0 %v3524
    %4015 = vmatpush.bf16.msra.mxu0 %v3520
    %4016 = vmatpush.bf16.msra.mxu0 %v3516
    %4017 = vmatmul.bf16.gmra.mxu0 %v3981
    %v4018 = vpop.f32.mrf.mxu0
    %v4019 = vadd.f32 0.0, %v4018
    %v4020 = vpop.f32.mrf.mxu0
    %4021 = vdwg.mxu0
    %4022 = vmatpush.bf16.msra.mxu0 %v3545
    %4023 = vmatpush.bf16.msra.mxu0 %v3541
    %4024 = vmatpush.bf16.msra.mxu0 %v3537
    %4025 = vmatpush.bf16.msra.mxu0 %v3533
    %4026 = vmatpush.bf16.msra.mxu0 %v3529
    %4027 = vmatpush.bf16.msra.mxu0 %v3525
    %4028 = vmatpush.bf16.msra.mxu0 %v3521
    %4029 = vmatpush.bf16.msra.mxu0 %v3517
    %4030 = vmatmul.bf16.gmra.mxu0 %v3981
    %v4031 = vpop.f32.mrf.mxu0
    %v4032 = vadd.f32 0.0, %v4031
    %v4033 = vpop.f32.mrf.mxu0
    %4034 = vdwg.mxu0
    %v4039 = vrot.slane %v3993, 2
    %v4040 = vrot.slane %v4006, 2
    %v4041 = vrot.slane %v4019, 2
    %v4042 = vrot.slane %v4032, 2
    %v4047 = vadd.f32 %v3354, %v4039
    %v4048 = vadd.f32 %v3355, %v4040
    %v4049 = vadd.f32 %v3356, %v4041
    %v4050 = vadd.f32 %v3357, %v4042
    %v4051 = vxor.u32 %v4047, 2147483648
    %v4052 = vmul.f32 %v4051, 1.442695
    %v4053 = vpow.pop %v4052
    %v4054 = vadd.f32 %v4053, 1.0
    %v4055 = vrcp.pop %v4054
    %v4056 = vmul.f32 %v4054, %v4055
    %v4057 = vsub.f32 1.0, %v4056
    %v4058 = vmul.f32 %v4055, %v4057
    %v4059 = vadd.f32 %v4055, %v4058
    %vm4060 = vweird.f32 %v4054
    %vm4061 = vweird.f32 %v4055
    %vm4062 = vmor %vm4060, %vm4061
    %v4063 = vsel %vm4062, %v4055, %v4059
    %v4064 = vand.u32 2147483647, %v4054
    %vm4065 = vcmp.eq.f32.partialorder %v4064, 8.507059e+37
    %v4066 = vand.u32 %v4054, 2147483648
    %v4067 = vor.u32 1.1754944e-38, %v4066
    %v4068 = vsel %vm4065, %v4067, %v4063
    %v4069 = vmul.f32 1.0, %v4068
    %v4070 = vxor.u32 %v4048, 2147483648
    %v4071 = vmul.f32 %v4070, 1.442695
    %v4072 = vpow.pop %v4071
    %v4073 = vadd.f32 %v4072, 1.0
    %v4074 = vrcp.pop %v4073
    %v4075 = vmul.f32 %v4073, %v4074
    %v4076 = vsub.f32 1.0, %v4075
    %v4077 = vmul.f32 %v4074, %v4076
    %v4078 = vadd.f32 %v4074, %v4077
    %vm4079 = vweird.f32 %v4073
    %vm4080 = vweird.f32 %v4074
    %vm4081 = vmor %vm4079, %vm4080
    %v4082 = vsel %vm4081, %v4074, %v4078
    %v4083 = vand.u32 2147483647, %v4073
    %vm4084 = vcmp.eq.f32.partialorder %v4083, 8.507059e+37
    %v4085 = vand.u32 %v4073, 2147483648
    %v4086 = vor.u32 1.1754944e-38, %v4085
    %v4087 = vsel %vm4084, %v4086, %v4082
    %v4088 = vmul.f32 1.0, %v4087
    %v4089 = vtanh.pop %v4049
    %v4090 = vxor.u32 %v4050, 2147483648
    %v4091 = vmul.f32 %v4090, 1.442695
    %v4092 = vpow.pop %v4091
    %v4093 = vadd.f32 %v4092, 1.0
    %v4094 = vrcp.pop %v4093
    %v4095 = vmul.f32 %v4093, %v4094
    %v4096 = vsub.f32 1.0, %v4095
    %v4097 = vmul.f32 %v4094, %v4096
    %v4098 = vadd.f32 %v4094, %v4097
    %vm4099 = vweird.f32 %v4093
    %vm4100 = vweird.f32 %v4094
    %vm4101 = vmor %vm4099, %vm4100
    %v4102 = vsel %vm4101, %v4094, %v4098
    %v4103 = vand.u32 2147483647, %v4093
    %vm4104 = vcmp.eq.f32.partialorder %v4103, 8.507059e+37
    %v4105 = vand.u32 %v4093, 2147483648
    %v4106 = vor.u32 1.1754944e-38, %v4105
    %v4107 = vsel %vm4104, %v4106, %v4102
    %v4108 = vmul.f32 1.0, %v4107
    %v4110 = vrot.slane %v3972, 6
    %v4112 = vmul.f32 %v4088, %v4110
    %v4113 = vmul.f32 %v4069, %v4089
    %v4114 = vadd.f32 %v4112, %v4113
    %v4115 = vtanh.pop %v4114
    %v4116 = vmul.f32 %v4108, %v4115
    %v4118 = vrot.slane %v4116, 6
    %v4120 = vmax.f32 %v3978, %v4118
    %v4121 = vpack.c.bf16 %v4116, %v4116
    %v4123 = vrot.slane %v4121, 3
    %4125 = vmatpush.bf16.msra.mxu0 %v3542
    %4126 = vmatpush.bf16.msra.mxu0 %v3538
    %4127 = vmatpush.bf16.msra.mxu0 %v3534
    %4128 = vmatpush.bf16.msra.mxu0 %v3530
    %4129 = vmatpush.bf16.msra.mxu0 %v3526
    %4130 = vmatpush.bf16.msra.mxu0 %v3522
    %4131 = vmatpush.bf16.msra.mxu0 %v3518
    %4132 = vmatpush.bf16.msra.mxu0 %v3514
    %4133 = vmatmul.bf16.gmra.mxu0 %v4123
    %v4134 = vpop.f32.mrf.mxu0
    %v4135 = vadd.f32 0.0, %v4134
    %v4136 = vpop.f32.mrf.mxu0
    %4137 = vdwg.mxu0
    %4138 = vmatpush.bf16.msra.mxu0 %v3543
    %4139 = vmatpush.bf16.msra.mxu0 %v3539
    %4140 = vmatpush.bf16.msra.mxu0 %v3535
    %4141 = vmatpush.bf16.msra.mxu0 %v3531
    %4142 = vmatpush.bf16.msra.mxu0 %v3527
    %4143 = vmatpush.bf16.msra.mxu0 %v3523
    %4144 = vmatpush.bf16.msra.mxu0 %v3519
    %4145 = vmatpush.bf16.msra.mxu0 %v3515
    %4146 = vmatmul.bf16.gmra.mxu0 %v4123
    %v4147 = vpop.f32.mrf.mxu0
    %v4148 = vadd.f32 0.0, %v4147
    %v4149 = vpop.f32.mrf.mxu0
    %4150 = vdwg.mxu0
    %4151 = vmatpush.bf16.msra.mxu0 %v3544
    %4152 = vmatpush.bf16.msra.mxu0 %v3540
    %4153 = vmatpush.bf16.msra.mxu0 %v3536
    %4154 = vmatpush.bf16.msra.mxu0 %v3532
    %4155 = vmatpush.bf16.msra.mxu0 %v3528
    %4156 = vmatpush.bf16.msra.mxu0 %v3524
    %4157 = vmatpush.bf16.msra.mxu0 %v3520
    %4158 = vmatpush.bf16.msra.mxu0 %v3516
    %4159 = vmatmul.bf16.gmra.mxu0 %v4123
    %v4160 = vpop.f32.mrf.mxu0
    %v4161 = vadd.f32 0.0, %v4160
    %v4162 = vpop.f32.mrf.mxu0
    %4163 = vdwg.mxu0
    %4164 = vmatpush.bf16.msra.mxu0 %v3545
    %4165 = vmatpush.bf16.msra.mxu0 %v3541
    %4166 = vmatpush.bf16.msra.mxu0 %v3537
    %4167 = vmatpush.bf16.msra.mxu0 %v3533
    %4168 = vmatpush.bf16.msra.mxu0 %v3529
    %4169 = vmatpush.bf16.msra.mxu0 %v3525
    %4170 = vmatpush.bf16.msra.mxu0 %v3521
    %4171 = vmatpush.bf16.msra.mxu0 %v3517
    %4172 = vmatmul.bf16.gmra.mxu0 %v4123
    %v4173 = vpop.f32.mrf.mxu0
    %v4174 = vadd.f32 0.0, %v4173
    %v4175 = vpop.f32.mrf.mxu0
    %4176 = vdwg.mxu0
    %v4177 = vadd.f32 %v3370, %v4135
    %v4178 = vadd.f32 %v3371, %v4148
    %v4179 = vadd.f32 %v3372, %v4161
    %v4180 = vadd.f32 %v3373, %v4174
    %v4181 = vxor.u32 %v4177, 2147483648
    %v4182 = vmul.f32 %v4181, 1.442695
    %v4183 = vpow.pop %v4182
    %v4184 = vadd.f32 %v4183, 1.0
    %v4185 = vrcp.pop %v4184
    %v4186 = vmul.f32 %v4184, %v4185
    %v4187 = vsub.f32 1.0, %v4186
    %v4188 = vmul.f32 %v4185, %v4187
    %v4189 = vadd.f32 %v4185, %v4188
    %vm4190 = vweird.f32 %v4184
    %vm4191 = vweird.f32 %v4185
    %vm4192 = vmor %vm4190, %vm4191
    %v4193 = vsel %vm4192, %v4185, %v4189
    %v4194 = vand.u32 2147483647, %v4184
    %vm4195 = vcmp.eq.f32.partialorder %v4194, 8.507059e+37
    %v4196 = vand.u32 %v4184, 2147483648
    %v4197 = vor.u32 1.1754944e-38, %v4196
    %v4198 = vsel %vm4195, %v4197, %v4193
    %v4199 = vmul.f32 1.0, %v4198
    %v4200 = vxor.u32 %v4178, 2147483648
    %v4201 = vmul.f32 %v4200, 1.442695
    %v4202 = vpow.pop %v4201
    %v4203 = vadd.f32 %v4202, 1.0
    %v4204 = vrcp.pop %v4203
    %v4205 = vmul.f32 %v4203, %v4204
    %v4206 = vsub.f32 1.0, %v4205
    %v4207 = vmul.f32 %v4204, %v4206
    %v4208 = vadd.f32 %v4204, %v4207
    %vm4209 = vweird.f32 %v4203
    %vm4210 = vweird.f32 %v4204
    %vm4211 = vmor %vm4209, %vm4210
    %v4212 = vsel %vm4211, %v4204, %v4208
    %v4213 = vand.u32 2147483647, %v4203
    %vm4214 = vcmp.eq.f32.partialorder %v4213, 8.507059e+37
    %v4215 = vand.u32 %v4203, 2147483648
    %v4216 = vor.u32 1.1754944e-38, %v4215
    %v4217 = vsel %vm4214, %v4216, %v4212
    %v4218 = vmul.f32 1.0, %v4217
    %v4219 = vtanh.pop %v4179
    %v4220 = vxor.u32 %v4180, 2147483648
    %v4221 = vmul.f32 %v4220, 1.442695
    %v4222 = vpow.pop %v4221
    %v4223 = vadd.f32 %v4222, 1.0
    %v4224 = vrcp.pop %v4223
    %v4225 = vmul.f32 %v4223, %v4224
    %v4226 = vsub.f32 1.0, %v4225
    %v4227 = vmul.f32 %v4224, %v4226
    %v4228 = vadd.f32 %v4224, %v4227
    %vm4229 = vweird.f32 %v4223
    %vm4230 = vweird.f32 %v4224
    %vm4231 = vmor %vm4229, %vm4230
    %v4232 = vsel %vm4231, %v4224, %v4228
    %v4233 = vand.u32 2147483647, %v4223
    %vm4234 = vcmp.eq.f32.partialorder %v4233, 8.507059e+37
    %v4235 = vand.u32 %v4223, 2147483648
    %v4236 = vor.u32 1.1754944e-38, %v4235
    %v4237 = vsel %vm4234, %v4236, %v4232
    %v4238 = vmul.f32 1.0, %v4237
    %v4240 = vrot.slane %v4114, 6
    %v4242 = vmul.f32 %v4218, %v4240
    %v4243 = vmul.f32 %v4199, %v4219
    %v4244 = vadd.f32 %v4242, %v4243
    %v4245 = vtanh.pop %v4244
    %v4246 = vmul.f32 %v4238, %v4245
    %v4247 = vmax.f32 %v4120, %v4246
    %v4248 = vpack.c.bf16 %v4246, %v4246
    %4249 = vmatpush.bf16.msra.mxu0 %v3542
    %4250 = vmatpush.bf16.msra.mxu0 %v3538
    %4251 = vmatpush.bf16.msra.mxu0 %v3534
    %4252 = vmatpush.bf16.msra.mxu0 %v3530
    %4253 = vmatpush.bf16.msra.mxu0 %v3526
    %4254 = vmatpush.bf16.msra.mxu0 %v3522
    %4255 = vmatpush.bf16.msra.mxu0 %v3518
    %4256 = vmatpush.bf16.msra.mxu0 %v3514
    %4257 = vmatmul.bf16.gmra.mxu0 %v4248
    %v4258 = vpop.f32.mrf.mxu0
    %v4259 = vadd.f32 0.0, %v4258
    %v4260 = vpop.f32.mrf.mxu0
    %4261 = vdwg.mxu0
    %4262 = vmatpush.bf16.msra.mxu0 %v3543
    %4263 = vmatpush.bf16.msra.mxu0 %v3539
    %4264 = vmatpush.bf16.msra.mxu0 %v3535
    %4265 = vmatpush.bf16.msra.mxu0 %v3531
    %4266 = vmatpush.bf16.msra.mxu0 %v3527
    %4267 = vmatpush.bf16.msra.mxu0 %v3523
    %4268 = vmatpush.bf16.msra.mxu0 %v3519
    %4269 = vmatpush.bf16.msra.mxu0 %v3515
    %4270 = vmatmul.bf16.gmra.mxu0 %v4248
    %v4271 = vpop.f32.mrf.mxu0
    %v4272 = vadd.f32 0.0, %v4271
    %v4273 = vpop.f32.mrf.mxu0
    %4274 = vdwg.mxu0
    %4275 = vmatpush.bf16.msra.mxu0 %v3544
    %4276 = vmatpush.bf16.msra.mxu0 %v3540
    %4277 = vmatpush.bf16.msra.mxu0 %v3536
    %4278 = vmatpush.bf16.msra.mxu0 %v3532
    %4279 = vmatpush.bf16.msra.mxu0 %v3528
    %4280 = vmatpush.bf16.msra.mxu0 %v3524
    %4281 = vmatpush.bf16.msra.mxu0 %v3520
    %4282 = vmatpush.bf16.msra.mxu0 %v3516
    %4283 = vmatmul.bf16.gmra.mxu0 %v4248
    %v4284 = vpop.f32.mrf.mxu0
    %v4285 = vadd.f32 0.0, %v4284
    %v4286 = vpop.f32.mrf.mxu0
    %4287 = vdwg.mxu0
    %4288 = vmatpush.bf16.msra.mxu0 %v3545
    %4289 = vmatpush.bf16.msra.mxu0 %v3541
    %4290 = vmatpush.bf16.msra.mxu0 %v3537
    %4291 = vmatpush.bf16.msra.mxu0 %v3533
    %4292 = vmatpush.bf16.msra.mxu0 %v3529
    %4293 = vmatpush.bf16.msra.mxu0 %v3525
    %4294 = vmatpush.bf16.msra.mxu0 %v3521
    %4295 = vmatpush.bf16.msra.mxu0 %v3517
    %4296 = vmatmul.bf16.gmra.mxu0 %v4248
    %v4297 = vpop.f32.mrf.mxu0
    %v4298 = vadd.f32 0.0, %v4297
    %v4299 = vpop.f32.mrf.mxu0
    %4300 = vdwg.mxu0
    %v4305 = vrot.slane %v4259, 6
    %v4306 = vrot.slane %v4272, 6
    %v4307 = vrot.slane %v4285, 6
    %v4308 = vrot.slane %v4298, 6
    %v4313 = vadd.f32 %v3382, %v4305
    %v4314 = vadd.f32 %v3383, %v4306
    %v4315 = vadd.f32 %v3384, %v4307
    %v4316 = vadd.f32 %v3385, %v4308
    %v4317 = vxor.u32 %v4313, 2147483648
    %v4318 = vmul.f32 %v4317, 1.442695
    %v4319 = vpow.pop %v4318
    %v4320 = vadd.f32 %v4319, 1.0
    %v4321 = vrcp.pop %v4320
    %v4322 = vmul.f32 %v4320, %v4321
    %v4323 = vsub.f32 1.0, %v4322
    %v4324 = vmul.f32 %v4321, %v4323
    %v4325 = vadd.f32 %v4321, %v4324
    %vm4326 = vweird.f32 %v4320
    %vm4327 = vweird.f32 %v4321
    %vm4328 = vmor %vm4326, %vm4327
    %v4329 = vsel %vm4328, %v4321, %v4325
    %v4330 = vand.u32 2147483647, %v4320
    %vm4331 = vcmp.eq.f32.partialorder %v4330, 8.507059e+37
    %v4332 = vand.u32 %v4320, 2147483648
    %v4333 = vor.u32 1.1754944e-38, %v4332
    %v4334 = vsel %vm4331, %v4333, %v4329
    %v4335 = vmul.f32 1.0, %v4334
    %v4336 = vxor.u32 %v4314, 2147483648
    %v4337 = vmul.f32 %v4336, 1.442695
    %v4338 = vpow.pop %v4337
    %v4339 = vadd.f32 %v4338, 1.0
    %v4340 = vrcp.pop %v4339
    %v4341 = vmul.f32 %v4339, %v4340
    %v4342 = vsub.f32 1.0, %v4341
    %v4343 = vmul.f32 %v4340, %v4342
    %v4344 = vadd.f32 %v4340, %v4343
    %vm4345 = vweird.f32 %v4339
    %vm4346 = vweird.f32 %v4340
    %vm4347 = vmor %vm4345, %vm4346
    %v4348 = vsel %vm4347, %v4340, %v4344
    %v4349 = vand.u32 2147483647, %v4339
    %vm4350 = vcmp.eq.f32.partialorder %v4349, 8.507059e+37
    %v4351 = vand.u32 %v4339, 2147483648
    %v4352 = vor.u32 1.1754944e-38, %v4351
    %v4353 = vsel %vm4350, %v4352, %v4348
    %v4354 = vmul.f32 1.0, %v4353
    %v4355 = vtanh.pop %v4315
    %v4356 = vxor.u32 %v4316, 2147483648
    %v4357 = vmul.f32 %v4356, 1.442695
    %v4358 = vpow.pop %v4357
    %v4359 = vadd.f32 %v4358, 1.0
    %v4360 = vrcp.pop %v4359
    %v4361 = vmul.f32 %v4359, %v4360
    %v4362 = vsub.f32 1.0, %v4361
    %v4363 = vmul.f32 %v4360, %v4362
    %v4364 = vadd.f32 %v4360, %v4363
    %vm4365 = vweird.f32 %v4359
    %vm4366 = vweird.f32 %v4360
    %vm4367 = vmor %vm4365, %vm4366
    %v4368 = vsel %vm4367, %v4360, %v4364
    %v4369 = vand.u32 2147483647, %v4359
    %vm4370 = vcmp.eq.f32.partialorder %v4369, 8.507059e+37
    %v4371 = vand.u32 %v4359, 2147483648
    %v4372 = vor.u32 1.1754944e-38, %v4371
    %v4373 = vsel %vm4370, %v4372, %v4368
    %v4374 = vmul.f32 1.0, %v4373
    %v4376 = vrot.slane %v4244, 6
    %v4378 = vmul.f32 %v4354, %v4376
    %v4379 = vmul.f32 %v4335, %v4355
    %v4380 = vadd.f32 %v4378, %v4379
    %v4381 = vtanh.pop %v4380
    %v4382 = vmul.f32 %v4374, %v4381
    %v4384 = vrot.slane %v4382, 2
    %v4386 = vmax.f32 %v4247, %v4384
    %v4387 = vpack.c.bf16 %v4382, %v4382
    %v4389 = vrot.slane %v4387, 1
    %4391 = vmatpush.bf16.msra.mxu0 %v3542
    %4392 = vmatpush.bf16.msra.mxu0 %v3538
    %4393 = vmatpush.bf16.msra.mxu0 %v3534
    %4394 = vmatpush.bf16.msra.mxu0 %v3530
    %4395 = vmatpush.bf16.msra.mxu0 %v3526
    %4396 = vmatpush.bf16.msra.mxu0 %v3522
    %4397 = vmatpush.bf16.msra.mxu0 %v3518
    %4398 = vmatpush.bf16.msra.mxu0 %v3514
    %4399 = vmatmul.bf16.gmra.mxu0 %v4389
    %v4400 = vpop.f32.mrf.mxu0
    %v4401 = vadd.f32 0.0, %v4400
    %v4402 = vpop.f32.mrf.mxu0
    %4403 = vdwg.mxu0
    %4404 = vmatpush.bf16.msra.mxu0 %v3543
    %4405 = vmatpush.bf16.msra.mxu0 %v3539
    %4406 = vmatpush.bf16.msra.mxu0 %v3535
    %4407 = vmatpush.bf16.msra.mxu0 %v3531
    %4408 = vmatpush.bf16.msra.mxu0 %v3527
    %4409 = vmatpush.bf16.msra.mxu0 %v3523
    %4410 = vmatpush.bf16.msra.mxu0 %v3519
    %4411 = vmatpush.bf16.msra.mxu0 %v3515
    %4412 = vmatmul.bf16.gmra.mxu0 %v4389
    %v4413 = vpop.f32.mrf.mxu0
    %v4414 = vadd.f32 0.0, %v4413
    %v4415 = vpop.f32.mrf.mxu0
    %4416 = vdwg.mxu0
    %4417 = vmatpush.bf16.msra.mxu0 %v3544
    %4418 = vmatpush.bf16.msra.mxu0 %v3540
    %4419 = vmatpush.bf16.msra.mxu0 %v3536
    %4420 = vmatpush.bf16.msra.mxu0 %v3532
    %4421 = vmatpush.bf16.msra.mxu0 %v3528
    %4422 = vmatpush.bf16.msra.mxu0 %v3524
    %4423 = vmatpush.bf16.msra.mxu0 %v3520
    %4424 = vmatpush.bf16.msra.mxu0 %v3516
    %4425 = vmatmul.bf16.gmra.mxu0 %v4389
    %v4426 = vpop.f32.mrf.mxu0
    %v4427 = vadd.f32 0.0, %v4426
    %v4428 = vpop.f32.mrf.mxu0
    %4429 = vdwg.mxu0
    %4430 = vmatpush.bf16.msra.mxu0 %v3545
    %4431 = vmatpush.bf16.msra.mxu0 %v3541
    %4432 = vmatpush.bf16.msra.mxu0 %v3537
    %4433 = vmatpush.bf16.msra.mxu0 %v3533
    %4434 = vmatpush.bf16.msra.mxu0 %v3529
    %4435 = vmatpush.bf16.msra.mxu0 %v3525
    %4436 = vmatpush.bf16.msra.mxu0 %v3521
    %4437 = vmatpush.bf16.msra.mxu0 %v3517
    %4438 = vmatmul.bf16.gmra.mxu0 %v4389
    %v4439 = vpop.f32.mrf.mxu0
    %v4440 = vadd.f32 0.0, %v4439
    %v4441 = vpop.f32.mrf.mxu0
    %4442 = vdwg.mxu0
    %v4447 = vrot.slane %v4401, 4
    %v4448 = vrot.slane %v4414, 4
    %v4449 = vrot.slane %v4427, 4
    %v4450 = vrot.slane %v4440, 4
    %v4455 = vadd.f32 %v3370, %v4447
    %v4456 = vadd.f32 %v3371, %v4448
    %v4457 = vadd.f32 %v3372, %v4449
    %v4458 = vadd.f32 %v3373, %v4450
    %v4459 = vxor.u32 %v4455, 2147483648
    %v4460 = vmul.f32 %v4459, 1.442695
    %v4461 = vpow.pop %v4460
    %v4462 = vadd.f32 %v4461, 1.0
    %v4463 = vrcp.pop %v4462
    %v4464 = vmul.f32 %v4462, %v4463
    %v4465 = vsub.f32 1.0, %v4464
    %v4466 = vmul.f32 %v4463, %v4465
    %v4467 = vadd.f32 %v4463, %v4466
    %vm4468 = vweird.f32 %v4462
    %vm4469 = vweird.f32 %v4463
    %vm4470 = vmor %vm4468, %vm4469
    %v4471 = vsel %vm4470, %v4463, %v4467
    %v4472 = vand.u32 2147483647, %v4462
    %vm4473 = vcmp.eq.f32.partialorder %v4472, 8.507059e+37
    %v4474 = vand.u32 %v4462, 2147483648
    %v4475 = vor.u32 1.1754944e-38, %v4474
    %v4476 = vsel %vm4473, %v4475, %v4471
    %v4477 = vmul.f32 1.0, %v4476
    %v4478 = vxor.u32 %v4456, 2147483648
    %v4479 = vmul.f32 %v4478, 1.442695
    %v4480 = vpow.pop %v4479
    %v4481 = vadd.f32 %v4480, 1.0
    %v4482 = vrcp.pop %v4481
    %v4483 = vmul.f32 %v4481, %v4482
    %v4484 = vsub.f32 1.0, %v4483
    %v4485 = vmul.f32 %v4482, %v4484
    %v4486 = vadd.f32 %v4482, %v4485
    %vm4487 = vweird.f32 %v4481
    %vm4488 = vweird.f32 %v4482
    %vm4489 = vmor %vm4487, %vm4488
    %v4490 = vsel %vm4489, %v4482, %v4486
    %v4491 = vand.u32 2147483647, %v4481
    %vm4492 = vcmp.eq.f32.partialorder %v4491, 8.507059e+37
    %v4493 = vand.u32 %v4481, 2147483648
    %v4494 = vor.u32 1.1754944e-38, %v4493
    %v4495 = vsel %vm4492, %v4494, %v4490
    %v4496 = vmul.f32 1.0, %v4495
    %v4497 = vtanh.pop %v4457
    %v4498 = vxor.u32 %v4458, 2147483648
    %v4499 = vmul.f32 %v4498, 1.442695
    %v4500 = vpow.pop %v4499
    %v4501 = vadd.f32 %v4500, 1.0
    %v4502 = vrcp.pop %v4501
    %v4503 = vmul.f32 %v4501, %v4502
    %v4504 = vsub.f32 1.0, %v4503
    %v4505 = vmul.f32 %v4502, %v4504
    %v4506 = vadd.f32 %v4502, %v4505
    %vm4507 = vweird.f32 %v4501
    %vm4508 = vweird.f32 %v4502
    %vm4509 = vmor %vm4507, %vm4508
    %v4510 = vsel %vm4509, %v4502, %v4506
    %v4511 = vand.u32 2147483647, %v4501
    %vm4512 = vcmp.eq.f32.partialorder %v4511, 8.507059e+37
    %v4513 = vand.u32 %v4501, 2147483648
    %v4514 = vor.u32 1.1754944e-38, %v4513
    %v4515 = vsel %vm4512, %v4514, %v4510
    %v4516 = vmul.f32 1.0, %v4515
    %v4518 = vrot.slane %v4380, 6
    %v4520 = vmul.f32 %v4496, %v4518
    %v4521 = vmul.f32 %v4477, %v4497
    %v4522 = vadd.f32 %v4520, %v4521
    %v4523 = vtanh.pop %v4522
    %v4524 = vmul.f32 %v4516, %v4523
    %v4526 = vrot.slane %v4524, 4
    %v4528 = vmax.f32 %v4386, %v4526
    %v4529 = vpack.c.bf16 %v4524, %v4524
    %v4531 = vrot.slane %v4529, 2
    %4533 = vmatpush.bf16.msra.mxu0 %v3542
    %4534 = vmatpush.bf16.msra.mxu0 %v3538
    %4535 = vmatpush.bf16.msra.mxu0 %v3534
    %4536 = vmatpush.bf16.msra.mxu0 %v3530
    %4537 = vmatpush.bf16.msra.mxu0 %v3526
    %4538 = vmatpush.bf16.msra.mxu0 %v3522
    %4539 = vmatpush.bf16.msra.mxu0 %v3518
    %4540 = vmatpush.bf16.msra.mxu0 %v3514
    %4541 = vmatmul.bf16.gmra.mxu0 %v4531
    %v4542 = vpop.f32.mrf.mxu0
    %v4543 = vadd.f32 0.0, %v4542
    %v4544 = vpop.f32.mrf.mxu0
    %4545 = vdwg.mxu0
    %4546 = vmatpush.bf16.msra.mxu0 %v3543
    %4547 = vmatpush.bf16.msra.mxu0 %v3539
    %4548 = vmatpush.bf16.msra.mxu0 %v3535
    %4549 = vmatpush.bf16.msra.mxu0 %v3531
    %4550 = vmatpush.bf16.msra.mxu0 %v3527
    %4551 = vmatpush.bf16.msra.mxu0 %v3523
    %4552 = vmatpush.bf16.msra.mxu0 %v3519
    %4553 = vmatpush.bf16.msra.mxu0 %v3515
    %4554 = vmatmul.bf16.gmra.mxu0 %v4531
    %v4555 = vpop.f32.mrf.mxu0
    %v4556 = vadd.f32 0.0, %v4555
    %v4557 = vpop.f32.mrf.mxu0
    %4558 = vdwg.mxu0
    %4559 = vmatpush.bf16.msra.mxu0 %v3544
    %4560 = vmatpush.bf16.msra.mxu0 %v3540
    %4561 = vmatpush.bf16.msra.mxu0 %v3536
    %4562 = vmatpush.bf16.msra.mxu0 %v3532
    %4563 = vmatpush.bf16.msra.mxu0 %v3528
    %4564 = vmatpush.bf16.msra.mxu0 %v3524
    %4565 = vmatpush.bf16.msra.mxu0 %v3520
    %4566 = vmatpush.bf16.msra.mxu0 %v3516
    %4567 = vmatmul.bf16.gmra.mxu0 %v4531
    %v4568 = vpop.f32.mrf.mxu0
    %v4569 = vadd.f32 0.0, %v4568
    %v4570 = vpop.f32.mrf.mxu0
    %4571 = vdwg.mxu0
    %4572 = vmatpush.bf16.msra.mxu0 %v3545
    %4573 = vmatpush.bf16.msra.mxu0 %v3541
    %4574 = vmatpush.bf16.msra.mxu0 %v3537
    %4575 = vmatpush.bf16.msra.mxu0 %v3533
    %4576 = vmatpush.bf16.msra.mxu0 %v3529
    %4577 = vmatpush.bf16.msra.mxu0 %v3525
    %4578 = vmatpush.bf16.msra.mxu0 %v3521
    %4579 = vmatpush.bf16.msra.mxu0 %v3517
    %4580 = vmatmul.bf16.gmra.mxu0 %v4531
    %v4581 = vpop.f32.mrf.mxu0
    %v4582 = vadd.f32 0.0, %v4581
    %v4583 = vpop.f32.mrf.mxu0
    %4584 = vdwg.mxu0
    %v4589 = vrot.slane %v4543, 2
    %v4590 = vrot.slane %v4556, 2
    %v4591 = vrot.slane %v4569, 2
    %v4592 = vrot.slane %v4582, 2
    %v4597 = vadd.f32 %v3382, %v4589
    %v4598 = vadd.f32 %v3383, %v4590
    %v4599 = vadd.f32 %v3384, %v4591
    %v4600 = vadd.f32 %v3385, %v4592
    %v4601 = vxor.u32 %v4597, 2147483648
    %v4602 = vmul.f32 %v4601, 1.442695
    %v4603 = vpow.pop %v4602
    %v4604 = vadd.f32 %v4603, 1.0
    %v4605 = vrcp.pop %v4604
    %v4606 = vmul.f32 %v4604, %v4605
    %v4607 = vsub.f32 1.0, %v4606
    %v4608 = vmul.f32 %v4605, %v4607
    %v4609 = vadd.f32 %v4605, %v4608
    %vm4610 = vweird.f32 %v4604
    %vm4611 = vweird.f32 %v4605
    %vm4612 = vmor %vm4610, %vm4611
    %v4613 = vsel %vm4612, %v4605, %v4609
    %v4614 = vand.u32 2147483647, %v4604
    %vm4615 = vcmp.eq.f32.partialorder %v4614, 8.507059e+37
    %v4616 = vand.u32 %v4604, 2147483648
    %v4617 = vor.u32 1.1754944e-38, %v4616
    %v4618 = vsel %vm4615, %v4617, %v4613
    %v4619 = vmul.f32 1.0, %v4618
    %v4620 = vxor.u32 %v4598, 2147483648
    %v4621 = vmul.f32 %v4620, 1.442695
    %v4622 = vpow.pop %v4621
    %v4623 = vadd.f32 %v4622, 1.0
    %v4624 = vrcp.pop %v4623
    %v4625 = vmul.f32 %v4623, %v4624
    %v4626 = vsub.f32 1.0, %v4625
    %v4627 = vmul.f32 %v4624, %v4626
    %v4628 = vadd.f32 %v4624, %v4627
    %vm4629 = vweird.f32 %v4623
    %vm4630 = vweird.f32 %v4624
    %vm4631 = vmor %vm4629, %vm4630
    %v4632 = vsel %vm4631, %v4624, %v4628
    %v4633 = vand.u32 2147483647, %v4623
    %vm4634 = vcmp.eq.f32.partialorder %v4633, 8.507059e+37
    %v4635 = vand.u32 %v4623, 2147483648
    %v4636 = vor.u32 1.1754944e-38, %v4635
    %v4637 = vsel %vm4634, %v4636, %v4632
    %v4638 = vmul.f32 1.0, %v4637
    %v4639 = vtanh.pop %v4599
    %v4640 = vxor.u32 %v4600, 2147483648
    %v4641 = vmul.f32 %v4640, 1.442695
    %v4642 = vpow.pop %v4641
    %v4643 = vadd.f32 %v4642, 1.0
    %v4644 = vrcp.pop %v4643
    %v4645 = vmul.f32 %v4643, %v4644
    %v4646 = vsub.f32 1.0, %v4645
    %v4647 = vmul.f32 %v4644, %v4646
    %v4648 = vadd.f32 %v4644, %v4647
    %vm4649 = vweird.f32 %v4643
    %vm4650 = vweird.f32 %v4644
    %vm4651 = vmor %vm4649, %vm4650
    %v4652 = vsel %vm4651, %v4644, %v4648
    %v4653 = vand.u32 2147483647, %v4643
    %vm4654 = vcmp.eq.f32.partialorder %v4653, 8.507059e+37
    %v4655 = vand.u32 %v4643, 2147483648
    %v4656 = vor.u32 1.1754944e-38, %v4655
    %v4657 = vsel %vm4654, %v4656, %v4652
    %v4658 = vmul.f32 1.0, %v4657
    %v4660 = vrot.slane %v4522, 6
    %v4662 = vmul.f32 %v4638, %v4660
    %v4663 = vmul.f32 %v4619, %v4639
    %v4664 = vadd.f32 %v4662, %v4663
    %v4665 = vtanh.pop %v4664
    %v4666 = vmul.f32 %v4658, %v4665
    %v4668 = vrot.slane %v4666, 6
    %v4670 = vmax.f32 %v4528, %v4668
    %v4671 = vunpack.c.l.bf16 %v171
    %v4672 = vunpack.c.h.bf16 %v171
    %v4673 = vunpack.c.l.bf16 %v172
    %v4674 = vunpack.c.h.bf16 %v172
    %v4675 = vunpack.c.l.bf16 %v173
    %v4676 = vunpack.c.h.bf16 %v173
    %v4683 = vrot.slane %v4671, 2
    %v4684 = vrot.slane %v4672, 2
    %v4685 = vrot.slane %v4673, 2
    %v4686 = vrot.slane %v4674, 2
    %v4687 = vrot.slane %v4675, 2
    %v4688 = vrot.slane %v4676, 2
    %v4695 = vmax.f32 %v4671, %v4683
    %v4696 = vmax.f32 %v4672, %v4684
    %v4697 = vmax.f32 %v4673, %v4685
    %v4698 = vmax.f32 %v4674, %v4686
    %v4699 = vmax.f32 %v4675, %v4687
    %v4700 = vmax.f32 %v4676, %v4688
    %v4701 = vpack.c.bf16 %v4696, %v4695
    %v4702 = vpack.c.bf16 %v4698, %v4697
    %v4703 = vpack.c.bf16 %v4700, %v4699
    %v4704 = vunpack.c.l.bf16 %v4701
    %v4705 = vunpack.c.h.bf16 %v4701
    %v4706 = vunpack.c.l.bf16 %v4702
    %v4707 = vunpack.c.h.bf16 %v4702
    %v4708 = vunpack.c.l.bf16 %v4703
    %v4709 = vunpack.c.h.bf16 %v4703
    %v4710 = vrot.slane %v4671, 4
    %v4711 = vrot.slane %v4672, 4
    %v4712 = vrot.slane %v4673, 4
    %v4713 = vrot.slane %v4674, 4
    %v4714 = vrot.slane %v4675, 4
    %v4715 = vrot.slane %v4676, 4
    %v4722 = vmax.f32 %v4704, %v4710
    %v4723 = vmax.f32 %v4705, %v4711
    %v4724 = vmax.f32 %v4706, %v4712
    %v4725 = vmax.f32 %v4707, %v4713
    %v4726 = vmax.f32 %v4708, %v4714
    %v4727 = vmax.f32 %v4709, %v4715
    %v4728 = vpack.c.bf16 %v4723, %v4722
    %v4729 = vpack.c.bf16 %v4725, %v4724
    %v4730 = vpack.c.bf16 %v4727, %v4726
    %v4731 = vunpack.c.l.bf16 %v4728
    %v4732 = vunpack.c.h.bf16 %v4728
    %v4733 = vunpack.c.l.bf16 %v4729
    %v4734 = vunpack.c.h.bf16 %v4729
    %v4735 = vunpack.c.l.bf16 %v4730
    %v4736 = vunpack.c.h.bf16 %v4730
    %v4737 = vrot.slane %v4671, 6
    %v4738 = vrot.slane %v4672, 6
    %v4739 = vrot.slane %v4673, 6
    %v4740 = vrot.slane %v4674, 6
    %v4741 = vrot.slane %v4675, 6
    %v4742 = vrot.slane %v4676, 6
    %v4749 = vmax.f32 %v4731, %v4737
    %v4750 = vmax.f32 %v4732, %v4738
    %v4751 = vmax.f32 %v4733, %v4739
    %v4752 = vmax.f32 %v4734, %v4740
    %v4753 = vmax.f32 %v4735, %v4741
    %v4754 = vmax.f32 %v4736, %v4742
    %v4755 = vpack.c.bf16 %v4750, %v4749
    %v4756 = vpack.c.bf16 %v4752, %v4751
    %v4757 = vpack.c.bf16 %v4754, %v4753
    %v4758 = vunpack.c.l.bf16 %v4755
    %v4759 = vunpack.c.h.bf16 %v4755
    %v4760 = vunpack.c.l.bf16 %v4756
    %v4761 = vunpack.c.h.bf16 %v4756
    %v4762 = vunpack.c.l.bf16 %v4757
    %v4763 = vunpack.c.h.bf16 %v4757
    %v4764 = vunpack.c.l.bf16 %v174
    %v4765 = vunpack.c.h.bf16 %v174
    %v4766 = vunpack.c.l.bf16 %v175
    %v4767 = vunpack.c.h.bf16 %v175
    %v4768 = vunpack.c.l.bf16 %v176
    %v4769 = vunpack.c.h.bf16 %v176
    %v4770 = vmax.f32 %v4758, %v4764
    %v4771 = vmax.f32 %v4759, %v4765
    %v4772 = vmax.f32 %v4760, %v4766
    %v4773 = vmax.f32 %v4761, %v4767
    %v4774 = vmax.f32 %v4762, %v4768
    %v4775 = vmax.f32 %v4763, %v4769
    %v4776 = vpack.c.bf16 %v4771, %v4770
    %v4777 = vpack.c.bf16 %v4773, %v4772
    %v4778 = vpack.c.bf16 %v4775, %v4774
    %v4779 = vunpack.c.l.bf16 %v4776
    %v4780 = vunpack.c.h.bf16 %v4776
    %v4781 = vunpack.c.l.bf16 %v4777
    %v4782 = vunpack.c.h.bf16 %v4777
    %v4783 = vunpack.c.l.bf16 %v4778
    %v4784 = vunpack.c.h.bf16 %v4778
    %v4791 = vrot.slane %v4764, 2
    %v4792 = vrot.slane %v4765, 2
    %v4793 = vrot.slane %v4766, 2
    %v4794 = vrot.slane %v4767, 2
    %v4795 = vrot.slane %v4768, 2
    %v4796 = vrot.slane %v4769, 2
    %v4803 = vmax.f32 %v4779, %v4791
    %v4804 = vmax.f32 %v4780, %v4792
    %v4805 = vmax.f32 %v4781, %v4793
    %v4806 = vmax.f32 %v4782, %v4794
    %v4807 = vmax.f32 %v4783, %v4795
    %v4808 = vmax.f32 %v4784, %v4796
    %v4809 = vpack.c.bf16 %v4804, %v4803
    %v4810 = vpack.c.bf16 %v4806, %v4805
    %v4811 = vpack.c.bf16 %v4808, %v4807
    %v4812 = vunpack.c.l.bf16 %v4809
    %v4813 = vunpack.c.h.bf16 %v4809
    %v4814 = vunpack.c.l.bf16 %v4810
    %v4815 = vunpack.c.h.bf16 %v4810
    %v4816 = vunpack.c.l.bf16 %v4811
    %v4817 = vunpack.c.h.bf16 %v4811
    %v4818 = vrot.slane %v4764, 4
    %v4819 = vrot.slane %v4765, 4
    %v4820 = vrot.slane %v4766, 4
    %v4821 = vrot.slane %v4767, 4
    %v4822 = vrot.slane %v4768, 4
    %v4823 = vrot.slane %v4769, 4
    %v4830 = vmax.f32 %v4812, %v4818
    %v4831 = vmax.f32 %v4813, %v4819
    %v4832 = vmax.f32 %v4814, %v4820
    %v4833 = vmax.f32 %v4815, %v4821
    %v4834 = vmax.f32 %v4816, %v4822
    %v4835 = vmax.f32 %v4817, %v4823
    %v4836 = vpack.c.bf16 %v4831, %v4830
    %v4837 = vpack.c.bf16 %v4833, %v4832
    %v4838 = vpack.c.bf16 %v4835, %v4834
    %v4839 = vunpack.c.l.bf16 %v4836
    %v4840 = vunpack.c.h.bf16 %v4836
    %v4841 = vunpack.c.l.bf16 %v4837
    %v4842 = vunpack.c.h.bf16 %v4837
    %v4843 = vunpack.c.l.bf16 %v4838
    %v4844 = vunpack.c.h.bf16 %v4838
    %v4845 = vrot.slane %v4764, 6
    %v4846 = vrot.slane %v4765, 6
    %v4847 = vrot.slane %v4766, 6
    %v4848 = vrot.slane %v4767, 6
    %v4849 = vrot.slane %v4768, 6
    %v4850 = vrot.slane %v4769, 6
    %v4857 = vmax.f32 %v4839, %v4845
    %v4858 = vmax.f32 %v4840, %v4846
    %v4859 = vmax.f32 %v4841, %v4847
    %v4860 = vmax.f32 %v4842, %v4848
    %v4861 = vmax.f32 %v4843, %v4849
    %v4862 = vmax.f32 %v4844, %v4850
    %v4863 = vpack.c.bf16 %v4858, %v4857
    %v4864 = vpack.c.bf16 %v4860, %v4859
    %v4865 = vpack.c.bf16 %v4862, %v4861
    %v4866 = vunpack.c.l.bf16 %v4863
    %v4867 = vunpack.c.h.bf16 %v4863
    %v4868 = vunpack.c.l.bf16 %v4864
    %v4869 = vunpack.c.h.bf16 %v4864
    %v4870 = vunpack.c.l.bf16 %v4865
    %v4871 = vunpack.c.h.bf16 %v4865
    %v4872 = vmax.f32 %v4866, 0.0
    %v4873 = vmax.f32 %v4867, 0.0
    %v4874 = vmax.f32 %v4868, 0.0
    %v4875 = vmax.f32 %v4869, 0.0
    %v4876 = vmax.f32 %v4870, 0.0
    %v4877 = vmax.f32 %v4871, 0.0
    %v4878 = vpack.c.bf16 %v4872, %v4872
    %v4879 = vpack.c.bf16 %v4873, %v4873
    %v4880 = vpack.c.bf16 %v4874, %v4874
    %v4881 = vpack.c.bf16 %v4875, %v4875
    %v4882 = vpack.c.bf16 %v4876, %v4876
    %v4883 = vpack.c.bf16 %v4877, %v4877
    %v4884 = vld [vmem:[%s7] sm:$0xf]
    %v4885 = vld [vmem:[%s7 + $0x4] sm:$0xf]
    %v4886 = vld [vmem:[%s7 + $0x8] sm:$0xf]
    %v4887 = vld [vmem:[%s7 + $0xc] sm:$0xf]
    %v4888 = vld [vmem:[%s7 + $0x10] sm:$0xf]
    %v4889 = vld [vmem:[%s7 + $0x14] sm:$0xf]
    %v4890 = vld [vmem:[%s7 + $0x18] sm:$0xf]
    %v4891 = vld [vmem:[%s7 + $0x1c] sm:$0xf]
    %v4892 = vld [vmem:[%s7 + $0x20] sm:$0xf]
    %v4893 = vld [vmem:[%s7 + $0x24] sm:$0xf]
    %v4894 = vld [vmem:[%s7 + $0x28] sm:$0xf]
    %v4895 = vld [vmem:[%s7 + $0x2c] sm:$0xf]
    %v4896 = vld [vmem:[%s7 + $0x30] sm:$0xf]
    %v4897 = vld [vmem:[%s7 + $0x34] sm:$0xf]
    %v4898 = vld [vmem:[%s7 + $0x38] sm:$0xf]
    %v4899 = vld [vmem:[%s7 + $0x3c] sm:$0xf]
    %v4900 = vld [vmem:[%s7 + $0x40] sm:$0xf]
    %v4901 = vld [vmem:[%s7 + $0x44] sm:$0xf]
    %v4902 = vld [vmem:[%s7 + $0x48] sm:$0xf]
    %v4903 = vld [vmem:[%s7 + $0x4c] sm:$0xf]
    %v4904 = vld [vmem:[%s7 + $0x50] sm:$0xf]
    %v4905 = vld [vmem:[%s7 + $0x54] sm:$0xf]
    %v4906 = vld [vmem:[%s7 + $0x58] sm:$0xf]
    %v4907 = vld [vmem:[%s7 + $0x5c] sm:$0xf]
    %v4908 = vld [vmem:[%s7 + $0x60] sm:$0xf]
    %v4909 = vld [vmem:[%s7 + $0x64] sm:$0xf]
    %v4910 = vld [vmem:[%s7 + $0x68] sm:$0xf]
    %v4911 = vld [vmem:[%s7 + $0x6c] sm:$0xf]
    %v4912 = vld [vmem:[%s7 + $0x70] sm:$0xf]
    %v4913 = vld [vmem:[%s7 + $0x74] sm:$0xf]
    %v4914 = vld [vmem:[%s7 + $0x78] sm:$0xf]
    %v4915 = vld [vmem:[%s7 + $0x7c] sm:$0xf]
    %v4916 = vld [vmem:[%s7 + $0x80] sm:$0xf]
    %v4917 = vld [vmem:[%s7 + $0x84] sm:$0xf]
    %v4918 = vld [vmem:[%s7 + $0x88] sm:$0xf]
    %v4919 = vld [vmem:[%s7 + $0x8c] sm:$0xf]
    %v4920 = vld [vmem:[%s7 + $0x90] sm:$0xf]
    %v4921 = vld [vmem:[%s7 + $0x94] sm:$0xf]
    %v4922 = vld [vmem:[%s7 + $0x98] sm:$0xf]
    %v4923 = vld [vmem:[%s7 + $0x9c] sm:$0xf]
    %v4924 = vld [vmem:[%s7 + $0xa0] sm:$0xf]
    %v4925 = vld [vmem:[%s7 + $0xa4] sm:$0xf]
    %v4926 = vld [vmem:[%s7 + $0xa8] sm:$0xf]
    %v4927 = vld [vmem:[%s7 + $0xac] sm:$0xf]
    %v4928 = vld [vmem:[%s7 + $0xb0] sm:$0xf]
    %v4929 = vld [vmem:[%s7 + $0xb4] sm:$0xf]
    %v4930 = vld [vmem:[%s7 + $0xb8] sm:$0xf]
    %v4931 = vld [vmem:[%s7 + $0xbc] sm:$0xf]
    %v4932 = vld [vmem:[%s7 + $0xc0] sm:$0xf]
    %v4933 = vld [vmem:[%s7 + $0xc4] sm:$0xf]
    %v4934 = vld [vmem:[%s7 + $0xc8] sm:$0xf]
    %v4935 = vld [vmem:[%s7 + $0xcc] sm:$0xf]
    %v4936 = vld [vmem:[%s7 + $0xd0] sm:$0xf]
    %v4937 = vld [vmem:[%s7 + $0xd4] sm:$0xf]
    %v4938 = vld [vmem:[%s7 + $0xd8] sm:$0xf]
    %v4939 = vld [vmem:[%s7 + $0xdc] sm:$0xf]
    %v4940 = vld [vmem:[%s7 + $0xe0] sm:$0xf]
    %v4941 = vld [vmem:[%s7 + $0xe4] sm:$0xf]
    %v4942 = vld [vmem:[%s7 + $0xe8] sm:$0xf]
    %v4943 = vld [vmem:[%s7 + $0xec] sm:$0xf]
    %v4944 = vld [vmem:[%s7 + $0xf0] sm:$0xf]
    %v4945 = vld [vmem:[%s7 + $0xf4] sm:$0xf]
    %v4946 = vld [vmem:[%s7 + $0xf8] sm:$0xf]
    %v4947 = vld [vmem:[%s7 + $0xfc] sm:$0xf]
    %v4948 = vld [vmem:[%s7 + $0x100] sm:$0xf]
    %v4949 = vld [vmem:[%s7 + $0x104] sm:$0xf]
    %v4950 = vld [vmem:[%s7 + $0x108] sm:$0xf]
    %v4951 = vld [vmem:[%s7 + $0x10c] sm:$0xf]
    %v4952 = vld [vmem:[%s7 + $0x110] sm:$0xf]
    %v4953 = vld [vmem:[%s7 + $0x114] sm:$0xf]
    %v4954 = vld [vmem:[%s7 + $0x118] sm:$0xf]
    %v4955 = vld [vmem:[%s7 + $0x11c] sm:$0xf]
    %v4956 = vld [vmem:[%s7 + $0x120] sm:$0xf]
    %v4957 = vld [vmem:[%s7 + $0x124] sm:$0xf]
    %v4958 = vld [vmem:[%s7 + $0x128] sm:$0xf]
    %v4959 = vld [vmem:[%s7 + $0x12c] sm:$0xf]
    %v4960 = vld [vmem:[%s7 + $0x130] sm:$0xf]
    %v4961 = vld [vmem:[%s7 + $0x134] sm:$0xf]
    %v4962 = vld [vmem:[%s7 + $0x138] sm:$0xf]
    %v4963 = vld [vmem:[%s7 + $0x13c] sm:$0xf]
    %v4964 = vld [vmem:[%s7 + $0x140] sm:$0xf]
    %v4965 = vld [vmem:[%s7 + $0x144] sm:$0xf]
    %v4966 = vld [vmem:[%s7 + $0x148] sm:$0xf]
    %v4967 = vld [vmem:[%s7 + $0x14c] sm:$0xf]
    %v4968 = vld [vmem:[%s7 + $0x150] sm:$0xf]
    %v4969 = vld [vmem:[%s7 + $0x154] sm:$0xf]
    %v4970 = vld [vmem:[%s7 + $0x158] sm:$0xf]
    %v4971 = vld [vmem:[%s7 + $0x15c] sm:$0xf]
    %v4972 = vld [vmem:[%s7 + $0x160] sm:$0xf]
    %v4973 = vld [vmem:[%s7 + $0x164] sm:$0xf]
    %v4974 = vld [vmem:[%s7 + $0x168] sm:$0xf]
    %v4975 = vld [vmem:[%s7 + $0x16c] sm:$0xf]
    %v4976 = vld [vmem:[%s7 + $0x170] sm:$0xf]
    %v4977 = vld [vmem:[%s7 + $0x174] sm:$0xf]
    %v4978 = vld [vmem:[%s7 + $0x178] sm:$0xf]
    %v4979 = vld [vmem:[%s7 + $0x17c] sm:$0xf]
    %v4980 = vpack.c.bf16 %v4670, %v4670
    %v4981 = vld [vmem:[#allocation10] sm:$0xf]
    %v4982 = vld [vmem:[#allocation10 + $0x4] sm:$0xf]
    %v4983 = vld [vmem:[#allocation10 + $0x8] sm:$0xf]
    %v4984 = vld [vmem:[#allocation10 + $0xc] sm:$0xf]
    %v4985 = vld [vmem:[#allocation10 + $0x10] sm:$0xf]
    %v4986 = vld [vmem:[#allocation10 + $0x14] sm:$0xf]
    %v4987 = vld [vmem:[#allocation10 + $0x18] sm:$0xf]
    %v4988 = vld [vmem:[#allocation10 + $0x1c] sm:$0xf]
    %v4989 = vld [vmem:[#allocation10 + $0x20] sm:$0xf]
    %v4990 = vld [vmem:[#allocation10 + $0x24] sm:$0xf]
    %v4991 = vld [vmem:[#allocation10 + $0x28] sm:$0xf]
    %v4992 = vld [vmem:[#allocation10 + $0x2c] sm:$0xf]
    %v4993 = vld [vmem:[#allocation10 + $0x30] sm:$0xf]
    %v4994 = vld [vmem:[#allocation10 + $0x34] sm:$0xf]
    %v4995 = vld [vmem:[#allocation10 + $0x38] sm:$0xf]
    %v4996 = vld [vmem:[#allocation10 + $0x3c] sm:$0xf]
    %v5013 = vunpack.c.l.b16 %v4981
    %v5014 = vunpack.c.l.b16 %v4982
    %v5015 = vunpack.c.l.b16 %v4983
    %v5016 = vunpack.c.l.b16 %v4984
    %v5017 = vunpack.c.l.b16 %v4985
    %v5018 = vunpack.c.l.b16 %v4986
    %v5019 = vunpack.c.l.b16 %v4987
    %v5020 = vunpack.c.l.b16 %v4988
    %v5021 = vunpack.c.l.b16 %v4989
    %v5022 = vunpack.c.l.b16 %v4990
    %v5023 = vunpack.c.l.b16 %v4991
    %v5024 = vunpack.c.l.b16 %v4992
    %v5025 = vunpack.c.l.b16 %v4993
    %v5026 = vunpack.c.l.b16 %v4994
    %v5027 = vunpack.c.l.b16 %v4995
    %v5028 = vunpack.c.l.b16 %v4996
    %v5029 = vpack.c.b16 %v5014, %v5013
    %v5030 = vpack.c.b16 %v5016, %v5015
    %v5031 = vpack.c.b16 %v5018, %v5017
    %v5032 = vpack.c.b16 %v5020, %v5019
    %v5033 = vpack.c.b16 %v5022, %v5021
    %v5034 = vpack.c.b16 %v5024, %v5023
    %v5035 = vpack.c.b16 %v5026, %v5025
    %v5036 = vpack.c.b16 %v5028, %v5027
    %5045 = vmatpush.bf16.msra.mxu0 %v5036
    %5046 = vmatpush.bf16.msra.mxu0 %v5035
    %5047 = vmatpush.bf16.msra.mxu0 %v5034
    %5048 = vmatpush.bf16.msra.mxu0 %v5033
    %5049 = vmatpush.bf16.msra.mxu0 %v5032
    %5050 = vmatpush.bf16.msra.mxu0 %v5031
    %5051 = vmatpush.bf16.msra.mxu0 %v5030
    %5052 = vmatpush.bf16.msra.mxu0 %v5029
    %5053 = vmatmul.bf16.gmra.mxu0 %v4980
    %v5054 = vpop.f32.mrf.mxu0
    %v5055 = vadd.f32 0.0, %v5054
    %v5056 = vpop.f32.mrf.mxu0
    %5057 = vdwg.mxu0
    %v5154 = vunpack.c.l.b16 %v4884
    %v5155 = vunpack.c.l.b16 %v4885
    %v5156 = vunpack.c.l.b16 %v4886
    %v5157 = vunpack.c.l.b16 %v4887
    %v5158 = vunpack.c.l.b16 %v4888
    %v5159 = vunpack.c.l.b16 %v4889
    %v5160 = vunpack.c.l.b16 %v4890
    %v5161 = vunpack.c.l.b16 %v4891
    %v5162 = vunpack.c.l.b16 %v4892
    %v5163 = vunpack.c.l.b16 %v4893
    %v5164 = vunpack.c.l.b16 %v4894
    %v5165 = vunpack.c.l.b16 %v4895
    %v5166 = vunpack.c.l.b16 %v4896
    %v5167 = vunpack.c.l.b16 %v4897
    %v5168 = vunpack.c.l.b16 %v4898
    %v5169 = vunpack.c.l.b16 %v4899
    %v5170 = vunpack.c.l.b16 %v4900
    %v5171 = vunpack.c.l.b16 %v4901
    %v5172 = vunpack.c.l.b16 %v4902
    %v5173 = vunpack.c.l.b16 %v4903
    %v5174 = vunpack.c.l.b16 %v4904
    %v5175 = vunpack.c.l.b16 %v4905
    %v5176 = vunpack.c.l.b16 %v4906
    %v5177 = vunpack.c.l.b16 %v4907
    %v5178 = vunpack.c.l.b16 %v4908
    %v5179 = vunpack.c.l.b16 %v4909
    %v5180 = vunpack.c.l.b16 %v4910
    %v5181 = vunpack.c.l.b16 %v4911
    %v5182 = vunpack.c.l.b16 %v4912
    %v5183 = vunpack.c.l.b16 %v4913
    %v5184 = vunpack.c.l.b16 %v4914
    %v5185 = vunpack.c.l.b16 %v4915
    %v5186 = vunpack.c.l.b16 %v4916
    %v5187 = vunpack.c.l.b16 %v4917
    %v5188 = vunpack.c.l.b16 %v4918
    %v5189 = vunpack.c.l.b16 %v4919
    %v5190 = vunpack.c.l.b16 %v4920
    %v5191 = vunpack.c.l.b16 %v4921
    %v5192 = vunpack.c.l.b16 %v4922
    %v5193 = vunpack.c.l.b16 %v4923
    %v5194 = vunpack.c.l.b16 %v4924
    %v5195 = vunpack.c.l.b16 %v4925
    %v5196 = vunpack.c.l.b16 %v4926
    %v5197 = vunpack.c.l.b16 %v4927
    %v5198 = vunpack.c.l.b16 %v4928
    %v5199 = vunpack.c.l.b16 %v4929
    %v5200 = vunpack.c.l.b16 %v4930
    %v5201 = vunpack.c.l.b16 %v4931
    %v5202 = vunpack.c.l.b16 %v4932
    %v5203 = vunpack.c.l.b16 %v4933
    %v5204 = vunpack.c.l.b16 %v4934
    %v5205 = vunpack.c.l.b16 %v4935
    %v5206 = vunpack.c.l.b16 %v4936
    %v5207 = vunpack.c.l.b16 %v4937
    %v5208 = vunpack.c.l.b16 %v4938
    %v5209 = vunpack.c.l.b16 %v4939
    %v5210 = vunpack.c.l.b16 %v4940
    %v5211 = vunpack.c.l.b16 %v4941
    %v5212 = vunpack.c.l.b16 %v4942
    %v5213 = vunpack.c.l.b16 %v4943
    %v5214 = vunpack.c.l.b16 %v4944
    %v5215 = vunpack.c.l.b16 %v4945
    %v5216 = vunpack.c.l.b16 %v4946
    %v5217 = vunpack.c.l.b16 %v4947
    %v5218 = vunpack.c.l.b16 %v4948
    %v5219 = vunpack.c.l.b16 %v4949
    %v5220 = vunpack.c.l.b16 %v4950
    %v5221 = vunpack.c.l.b16 %v4951
    %v5222 = vunpack.c.l.b16 %v4952
    %v5223 = vunpack.c.l.b16 %v4953
    %v5224 = vunpack.c.l.b16 %v4954
    %v5225 = vunpack.c.l.b16 %v4955
    %v5226 = vunpack.c.l.b16 %v4956
    %v5227 = vunpack.c.l.b16 %v4957
    %v5228 = vunpack.c.l.b16 %v4958
    %v5229 = vunpack.c.l.b16 %v4959
    %v5230 = vunpack.c.l.b16 %v4960
    %v5231 = vunpack.c.l.b16 %v4961
    %v5232 = vunpack.c.l.b16 %v4962
    %v5233 = vunpack.c.l.b16 %v4963
    %v5234 = vunpack.c.l.b16 %v4964
    %v5235 = vunpack.c.l.b16 %v4965
    %v5236 = vunpack.c.l.b16 %v4966
    %v5237 = vunpack.c.l.b16 %v4967
    %v5238 = vunpack.c.l.b16 %v4968
    %v5239 = vunpack.c.l.b16 %v4969
    %v5240 = vunpack.c.l.b16 %v4970
    %v5241 = vunpack.c.l.b16 %v4971
    %v5242 = vunpack.c.l.b16 %v4972
    %v5243 = vunpack.c.l.b16 %v4973
    %v5244 = vunpack.c.l.b16 %v4974
    %v5245 = vunpack.c.l.b16 %v4975
    %v5246 = vunpack.c.l.b16 %v4976
    %v5247 = vunpack.c.l.b16 %v4977
    %v5248 = vunpack.c.l.b16 %v4978
    %v5249 = vunpack.c.l.b16 %v4979
    %v5250 = vpack.c.b16 %v5155, %v5154
    %v5251 = vpack.c.b16 %v5157, %v5156
    %v5252 = vpack.c.b16 %v5159, %v5158
    %v5253 = vpack.c.b16 %v5161, %v5160
    %v5254 = vpack.c.b16 %v5163, %v5162
    %v5255 = vpack.c.b16 %v5165, %v5164
    %v5256 = vpack.c.b16 %v5167, %v5166
    %v5257 = vpack.c.b16 %v5169, %v5168
    %v5258 = vpack.c.b16 %v5171, %v5170
    %v5259 = vpack.c.b16 %v5173, %v5172
    %v5260 = vpack.c.b16 %v5175, %v5174
    %v5261 = vpack.c.b16 %v5177, %v5176
    %v5262 = vpack.c.b16 %v5179, %v5178
    %v5263 = vpack.c.b16 %v5181, %v5180
    %v5264 = vpack.c.b16 %v5183, %v5182
    %v5265 = vpack.c.b16 %v5185, %v5184
    %v5266 = vpack.c.b16 %v5187, %v5186
    %v5267 = vpack.c.b16 %v5189, %v5188
    %v5268 = vpack.c.b16 %v5191, %v5190
    %v5269 = vpack.c.b16 %v5193, %v5192
    %v5270 = vpack.c.b16 %v5195, %v5194
    %v5271 = vpack.c.b16 %v5197, %v5196
    %v5272 = vpack.c.b16 %v5199, %v5198
    %v5273 = vpack.c.b16 %v5201, %v5200
    %v5274 = vpack.c.b16 %v5203, %v5202
    %v5275 = vpack.c.b16 %v5205, %v5204
    %v5276 = vpack.c.b16 %v5207, %v5206
    %v5277 = vpack.c.b16 %v5209, %v5208
    %v5278 = vpack.c.b16 %v5211, %v5210
    %v5279 = vpack.c.b16 %v5213, %v5212
    %v5280 = vpack.c.b16 %v5215, %v5214
    %v5281 = vpack.c.b16 %v5217, %v5216
    %v5282 = vpack.c.b16 %v5219, %v5218
    %v5283 = vpack.c.b16 %v5221, %v5220
    %v5284 = vpack.c.b16 %v5223, %v5222
    %v5285 = vpack.c.b16 %v5225, %v5224
    %v5286 = vpack.c.b16 %v5227, %v5226
    %v5287 = vpack.c.b16 %v5229, %v5228
    %v5288 = vpack.c.b16 %v5231, %v5230
    %v5289 = vpack.c.b16 %v5233, %v5232
    %v5290 = vpack.c.b16 %v5235, %v5234
    %v5291 = vpack.c.b16 %v5237, %v5236
    %v5292 = vpack.c.b16 %v5239, %v5238
    %v5293 = vpack.c.b16 %v5241, %v5240
    %v5294 = vpack.c.b16 %v5243, %v5242
    %v5295 = vpack.c.b16 %v5245, %v5244
    %v5296 = vpack.c.b16 %v5247, %v5246
    %v5297 = vpack.c.b16 %v5249, %v5248
    %5346 = vmatpush.bf16.msra.mxu0 %v5257
    %5347 = vmatpush.bf16.msra.mxu0 %v5256
    %5348 = vmatpush.bf16.msra.mxu0 %v5255
    %5349 = vmatpush.bf16.msra.mxu0 %v5254
    %5350 = vmatpush.bf16.msra.mxu0 %v5253
    %5351 = vmatpush.bf16.msra.mxu0 %v5252
    %5352 = vmatpush.bf16.msra.mxu0 %v5251
    %5353 = vmatpush.bf16.msra.mxu0 %v5250
    %5354 = vmatmul.bf16.gmra.mxu0 %v4878
    %v5355 = vpop.f32.mrf.mxu0
    %v5356 = vadd.f32 %v5055, %v5355
    %v5357 = vpop.f32.mrf.mxu0
    %5358 = vdwg.mxu0
    %5359 = vmatpush.bf16.msra.mxu0 %v5265
    %5360 = vmatpush.bf16.msra.mxu0 %v5264
    %5361 = vmatpush.bf16.msra.mxu0 %v5263
    %5362 = vmatpush.bf16.msra.mxu0 %v5262
    %5363 = vmatpush.bf16.msra.mxu0 %v5261
    %5364 = vmatpush.bf16.msra.mxu0 %v5260
    %5365 = vmatpush.bf16.msra.mxu0 %v5259
    %5366 = vmatpush.bf16.msra.mxu0 %v5258
    %5367 = vmatmul.bf16.gmra.mxu0 %v4879
    %v5368 = vpop.f32.mrf.mxu0
    %v5369 = vadd.f32 %v5356, %v5368
    %v5370 = vpop.f32.mrf.mxu0
    %5371 = vdwg.mxu0
    %5372 = vmatpush.bf16.msra.mxu0 %v5273
    %5373 = vmatpush.bf16.msra.mxu0 %v5272
    %5374 = vmatpush.bf16.msra.mxu0 %v5271
    %5375 = vmatpush.bf16.msra.mxu0 %v5270
    %5376 = vmatpush.bf16.msra.mxu0 %v5269
    %5377 = vmatpush.bf16.msra.mxu0 %v5268
    %5378 = vmatpush.bf16.msra.mxu0 %v5267
    %5379 = vmatpush.bf16.msra.mxu0 %v5266
    %5380 = vmatmul.bf16.gmra.mxu0 %v4880
    %v5381 = vpop.f32.mrf.mxu0
    %v5382 = vadd.f32 %v5369, %v5381
    %v5383 = vpop.f32.mrf.mxu0
    %5384 = vdwg.mxu0
    %5385 = vmatpush.bf16.msra.mxu0 %v5281
    %5386 = vmatpush.bf16.msra.mxu0 %v5280
    %5387 = vmatpush.bf16.msra.mxu0 %v5279
    %5388 = vmatpush.bf16.msra.mxu0 %v5278
    %5389 = vmatpush.bf16.msra.mxu0 %v5277
    %5390 = vmatpush.bf16.msra.mxu0 %v5276
    %5391 = vmatpush.bf16.msra.mxu0 %v5275
    %5392 = vmatpush.bf16.msra.mxu0 %v5274
    %5393 = vmatmul.bf16.gmra.mxu0 %v4881
    %v5394 = vpop.f32.mrf.mxu0
    %v5395 = vadd.f32 %v5382, %v5394
    %v5396 = vpop.f32.mrf.mxu0
    %5397 = vdwg.mxu0
    %5398 = vmatpush.bf16.msra.mxu0 %v5289
    %5399 = vmatpush.bf16.msra.mxu0 %v5288
    %5400 = vmatpush.bf16.msra.mxu0 %v5287
    %5401 = vmatpush.bf16.msra.mxu0 %v5286
    %5402 = vmatpush.bf16.msra.mxu0 %v5285
    %5403 = vmatpush.bf16.msra.mxu0 %v5284
    %5404 = vmatpush.bf16.msra.mxu0 %v5283
    %5405 = vmatpush.bf16.msra.mxu0 %v5282
    %5406 = vmatmul.bf16.gmra.mxu0 %v4882
    %v5407 = vpop.f32.mrf.mxu0
    %v5408 = vadd.f32 %v5395, %v5407
    %v5409 = vpop.f32.mrf.mxu0
    %5410 = vdwg.mxu0
    %5411 = vmatpush.bf16.msra.mxu0 %v5297
    %5412 = vmatpush.bf16.msra.mxu0 %v5296
    %5413 = vmatpush.bf16.msra.mxu0 %v5295
    %5414 = vmatpush.bf16.msra.mxu0 %v5294
    %5415 = vmatpush.bf16.msra.mxu0 %v5293
    %5416 = vmatpush.bf16.msra.mxu0 %v5292
    %5417 = vmatpush.bf16.msra.mxu0 %v5291
    %5418 = vmatpush.bf16.msra.mxu0 %v5290
    %5419 = vmatmul.bf16.gmra.mxu0 %v4883
    %v5420 = vpop.f32.mrf.mxu0
    %v5421 = vadd.f32 %v5408, %v5420
    %v5422 = vpop.f32.mrf.mxu0
    %5423 = vdwg.mxu0
    %v5424 = vld [vmem:[%s9] sm:$0x1]
    %v5426 = vperm.slane %v5424, 0
    %v5428 = vadd.f32 %v5421, %v5426
    %5429 = vst [vmem:[#allocation11] sm:$0x3] %v5428
    // Predicated region
    $region62: #{forward.1} parent=1 // pred_check
      _
    $region63: #{forward.1} parent=1 // pred_check_branch
      %5431 = sbr.rel (0) target = $region65
    $region64: #{forward.1} parent=1 // pred_region
      %5433 = vsyncadd [#allocation4], 0
      %s5435 = sshll.u32 [#allocation11], 4
      %s5436 = int_to_ptr.vmem [resolvable:$true] %s5435
      %s5437 = sshll.u32 %s10, 4
      %s5438 = int_to_ptr.hbm [resolvable:$true] %s5437
      %5440 = dma.vmem_to_hbm [thread:$0]  %s5436, 32, %s5438, [#allocation4]
    $region65: #{forward.1} parent=1 // pred_fallthru
      _
    // Predicated region
    $region66: #{forward.1} parent=1 // pred_check
      _
    $region67: #{forward.1} parent=1 // pred_check_branch
      %5442 = sbr.rel (0) target = $region69
    $region68: #{forward.1} parent=1 // pred_region
      %5444 = dma.done [#allocation4], 32
    $region69: #{forward.1} parent=1 // pred_fallthru
      _
    %5445 = vsyncpa [#allocation3], 1
    %5446 = vsyncpa [#allocation6], 1
    %5447 = vsyncpa [#allocation9], 1
    %5448 = vsyncpa [#allocation4], 1

</llo_original>
